<compile_context>
chip_gen: v7x
topology: tpu7x:2x2x1
jax: 0.10.0
libtpu: 0.0.40
codegen_flags: <defaults>
</compile_context>

<pallas_src>
import jax
import jax.numpy as jnp
from jax.experimental import pallas as pl
from jax.experimental.pallas import tpu as pltpu


def _cfim_kernel(x_ref, we_ref, wo_ref, b_ref, de_ref, do_ref, o_ref):
    # x_ref : (B, C//2, 2*HW) f32  lane-dense view of x; row r holds channels
    #                              (2r, 2r+1): lanes [0,HW)=ch 2r, [HW,2HW)=ch 2r+1
    # we_ref: (C//2, C//2) bf16    conv weight columns for even input channels
    # wo_ref: (C//2, C//2) bf16    conv weight columns for odd  input channels
    # b_ref : (C//2, 1)    bf16    conv bias (column)
    # de_ref: (C//2, C//2) bf16    dense2 weight rows for even output channels
    # do_ref: (C//2, C//2) bf16    dense2 weight rows for odd  output channels
    # o_ref : (B, C//2, 2*HW) f32
    B, C2, HW2 = x_ref.shape
    HW = HW2 // 2
    inv_hw = jnp.float32(1.0 / HW)
    lane = jax.lax.broadcasted_iota(jnp.int32, (C2, HW2), 1)

    for b in range(B):  # B is tiny and static -> unrolled inside one grid step
        # Global average pool; channels stay on the sublane axis (no relayout).
        g_even = jnp.sum(x_ref[b, :, :HW], axis=1, keepdims=True) * inv_hw  # (C2,1) ch 0,2,..
        g_odd = jnp.sum(x_ref[b, :, HW:], axis=1, keepdims=True) * inv_hw   # (C2,1) ch 1,3,..

        # 1x1 Conv2d(C -> C//2): y = W @ gap + bias, with W's columns pre-split
        # into even/odd channel halves to match the pooled layout.
        y = (jnp.dot(we_ref[...], g_even.astype(jnp.bfloat16),
                     preferred_element_type=jnp.float32)
             + jnp.dot(wo_ref[...], g_odd.astype(jnp.bfloat16),
                       preferred_element_type=jnp.float32)
             + b_ref[...].astype(jnp.float32))                              # (C2, 1)

        # energy_qk is a single scalar; softmax over that length-1 axis == 1.0,
        # so att_qkv == y exactly (dead XLU reduce + EUP exp removed).
        y_bf = y.astype(jnp.bfloat16)

        # dense2: 1x1 Conv2d(256 -> 512, bias=False); rows pre-split so the
        # result already matches the (even, odd) output-tile layout.
        z_even = jnp.dot(de_ref[...], y_bf, preferred_element_type=jnp.float32)  # (C2,1)
        z_odd = jnp.dot(do_ref[...], y_bf, preferred_element_type=jnp.float32)   # (C2,1)

        # Residual broadcast-add over spatial: lanes [0,HW) take the even
        # channel's z, lanes [HW,2HW) the odd channel's.  Full 128-lane stores.
        zb = jnp.where(lane < HW, z_even, z_odd)                            # (C2, 2HW)
        o_ref[b] = x_ref[b] + zb


def cfim_forward(x_nchw, conv_w, conv_b, dense_w):
    """x_nchw: (B, C, H, W); conv_w: (C//2, C); conv_b: (C//2,); dense_w: (C, C//2)."""
    B, C, H, W = x_nchw.shape
    C2 = conv_w.shape[0]
    assert C % 2 == 0 and C2 == C // 2 and dense_w.shape == (C, C2)
    HW = H * W
    HW2 = 2 * HW

    # Free, contiguous reshape: row r of the last two dims holds channels
    # (2r, 2r+1) side by side -> 128-lane-dense tiles for HW = 64.
    x2 = x_nchw.reshape(B, C2, HW2).astype(jnp.float32)

    # Pre-split weights into even/odd channel halves and cast to bf16
    # (halves the dominant weight HBM traffic; dots accumulate in f32).
    w_even = conv_w[:, 0::2].astype(jnp.bfloat16)            # (C2, C2)
    w_odd = conv_w[:, 1::2].astype(jnp.bfloat16)             # (C2, C2)
    b_col = conv_b.reshape(C2, 1).astype(jnp.bfloat16)       # (C2, 1)
    d_even = dense_w[0::2, :].astype(jnp.bfloat16)           # (C2, C2)
    d_odd = dense_w[1::2, :].astype(jnp.bfloat16)            # (C2, C2)

    out2 = pl.pallas_call(
        _cfim_kernel,
        out_shape=jax.ShapeDtypeStruct((B, C2, HW2), jnp.float32),
        grid_spec=pltpu.PrefetchScalarGridSpec(
            num_scalar_prefetch=0,
            grid=(1,),  # single step: whole op (< 2 MiB) fits VMEM on all gens
            in_specs=[
                pl.BlockSpec((B, C2, HW2), lambda i: (0, 0, 0)),
                pl.BlockSpec((C2, C2), lambda i: (0, 0)),
                pl.BlockSpec((C2, C2), lambda i: (0, 0)),
                pl.BlockSpec((C2, 1), lambda i: (0, 0)),
                pl.BlockSpec((C2, C2), lambda i: (0, 0)),
                pl.BlockSpec((C2, C2), lambda i: (0, 0)),
            ],
            out_specs=pl.BlockSpec((B, C2, HW2), lambda i: (0, 0, 0)),
        ),
        compiler_params=pltpu.CompilerParams(
            dimension_semantics=("arbitrary",)),
    )(x2, w_even, w_odd, b_col, d_even, d_odd)

    return out2.reshape(B, C, H, W)


def cfim_reference(x, conv_w, conv_b, dense_w):
    """Pure-JAX (f32) reference of the exact PyTorch forward."""
    gap = jnp.mean(x, axis=(2, 3))                           # (B, C)
    y = gap @ conv_w.T + conv_b                              # (B, C2)
    # softmax over the singleton energy axis == identity -> att_qkv == y
    z = y @ dense_w.T                                        # (B, C)
    return x + z[:, :, None, None]


if __name__ == "__main__":
    B, C, H, W = 2, 512, 8, 8       # C=512 forced by the hard-coded Conv2d(256, 512)
    C2 = C // 2

    key = jax.random.PRNGKey(0)
    kx, kw1, kb1, kw2 = jax.random.split(key, 4)

    x = jax.random.normal(kx, (B, C, H, W), dtype=jnp.float32)
    # Deterministic synthetic parameters (shapes from the module's __init__).
    conv_w = jax.random.normal(kw1, (C2, C), dtype=jnp.float32) * 0.05   # Conv2d(C, C//2, 1).weight
    conv_b = jax.random.normal(kb1, (C2,), dtype=jnp.float32) * 0.05     # Conv2d(C, C//2, 1).bias
    dense_w = jax.random.normal(kw2, (C, C2), dtype=jnp.float32) * 0.05  # Conv2d(256, 512, 1).weight

    out = cfim_forward(x, conv_w, conv_b, dense_w)
    out = jax.block_until_ready(out)

    ref = cfim_reference(x, conv_w, conv_b, dense_w)
    assert out.shape == (B, C, H, W)
    # bf16 weights in-kernel -> loosened tolerance vs the full-f32 reference.
    assert jnp.allclose(out, ref, atol=2e-2, rtol=2e-2), "mismatch vs reference"

    print("KERNEL_OK")
</pallas_src>

<mosaic_0001>
module attributes {stable_mosaic.version = 11 : i64} {
  func.func @_cfim_kernel(%arg0: i32, %arg1: memref<2x256x128xf32, #tpu.memory_space<vmem>>, %arg2: memref<256x256xbf16, #tpu.memory_space<vmem>>, %arg3: memref<256x256xbf16, #tpu.memory_space<vmem>>, %arg4: memref<256x1xbf16, #tpu.memory_space<vmem>>, %arg5: memref<256x256xbf16, #tpu.memory_space<vmem>>, %arg6: memref<256x256xbf16, #tpu.memory_space<vmem>>, %arg7: memref<2x256x128xf32, #tpu.memory_space<vmem>>) attributes {dimension_semantics = [#tpu.dimension_semantics<arbitrary>], iteration_bounds = array<i64: 1>, scalar_prefetch = 0 : i64, scratch_operands = 0 : i64, tpu.core_type = #tpu.core_type<tc>, window_params = [{pipeline_mode = #tpu.pipeline_mode<synchronous>, transform_indices = @transform_0, window_bounds = array<i64: 2, 256, 128>}, {pipeline_mode = #tpu.pipeline_mode<synchronous>, transform_indices = @transform_1, window_bounds = array<i64: 256, 256>}, {pipeline_mode = #tpu.pipeline_mode<synchronous>, transform_indices = @transform_2, window_bounds = array<i64: 256, 256>}, {pipeline_mode = #tpu.pipeline_mode<synchronous>, transform_indices = @transform_3, window_bounds = array<i64: 256, 1>}, {pipeline_mode = #tpu.pipeline_mode<synchronous>, transform_indices = @transform_4, window_bounds = array<i64: 256, 256>}, {pipeline_mode = #tpu.pipeline_mode<synchronous>, transform_indices = @transform_5, window_bounds = array<i64: 256, 256>}, {pipeline_mode = #tpu.pipeline_mode<synchronous>, transform_indices = @transform_6, window_bounds = array<i64: 2, 256, 128>}]} {
    %0 = tpu.iota {dimensions = array<i32: 1>} : vector<256x128xi32>
    %c0 = arith.constant 0 : index
    %c0_0 = arith.constant 0 : index
    %c0_1 = arith.constant 0 : index
    %1 = vector.load %arg1[%c0, %c0_0, %c0_1] : memref<2x256x128xf32, #tpu.memory_space<vmem>>, vector<1x256x64xf32>
    %2 = vector.shape_cast %1 : vector<1x256x64xf32> to vector<256x64xf32>
    %cst = arith.constant dense<0.000000e+00> : vector<256xf32>
    %3 = vector.multi_reduction <add>, %2, %cst [1] : vector<256x64xf32> to vector<256xf32>
    %4 = vector.shape_cast %3 : vector<256xf32> to vector<256x1xf32>
    %cst_2 = arith.constant 1.562500e-02 : f32
    %5 = vector.broadcast %cst_2 : f32 to vector<256x1xf32>
    %6 = arith.mulf %4, %5 : vector<256x1xf32>
    %c0_3 = arith.constant 0 : index
    %c0_4 = arith.constant 0 : index
    %c64 = arith.constant 64 : index
    %7 = vector.load %arg1[%c0_3, %c0_4, %c64] : memref<2x256x128xf32, #tpu.memory_space<vmem>>, vector<1x256x64xf32>
    %8 = vector.shape_cast %7 : vector<1x256x64xf32> to vector<256x64xf32>
    %cst_5 = arith.constant dense<0.000000e+00> : vector<256xf32>
    %9 = vector.multi_reduction <add>, %8, %cst_5 [1] : vector<256x64xf32> to vector<256xf32>
    %10 = vector.shape_cast %9 : vector<256xf32> to vector<256x1xf32>
    %cst_6 = arith.constant 1.562500e-02 : f32
    %11 = vector.broadcast %cst_6 : f32 to vector<256x1xf32>
    %12 = arith.mulf %10, %11 : vector<256x1xf32>
    %c0_7 = arith.constant 0 : index
    %c0_8 = arith.constant 0 : index
    %13 = vector.load %arg2[%c0_7, %c0_8] : memref<256x256xbf16, #tpu.memory_space<vmem>>, vector<256x256xbf16>
    %14 = arith.truncf %6 : vector<256x1xf32> to vector<256x1xbf16>
    %cst_9 = arith.constant dense<0.000000e+00> : vector<256x1xf32>
    %15 = tpu.matmul %13, %14, %cst_9 {dimension_numbers = #tpu.dot_dimension_numbers<[1], [0], [0], [1], [0, 0, 1, 1], [], []>} : vector<256x256xbf16>, vector<256x1xbf16>, vector<256x1xf32> -> vector<256x1xf32>
    %c0_10 = arith.constant 0 : index
    %c0_11 = arith.constant 0 : index
    %16 = vector.load %arg3[%c0_10, %c0_11] : memref<256x256xbf16, #tpu.memory_space<vmem>>, vector<256x256xbf16>
    %17 = arith.truncf %12 : vector<256x1xf32> to vector<256x1xbf16>
    %cst_12 = arith.constant dense<0.000000e+00> : vector<256x1xf32>
    %18 = tpu.matmul %16, %17, %cst_12 {dimension_numbers = #tpu.dot_dimension_numbers<[1], [0], [0], [1], [0, 0, 1, 1], [], []>} : vector<256x256xbf16>, vector<256x1xbf16>, vector<256x1xf32> -> vector<256x1xf32>
    %19 = arith.addf %15, %18 : vector<256x1xf32>
    %c0_13 = arith.constant 0 : index
    %c0_14 = arith.constant 0 : index
    %20 = vector.load %arg4[%c0_13, %c0_14] : memref<256x1xbf16, #tpu.memory_space<vmem>>, vector<256x1xbf16>
    %21 = arith.extf %20 : vector<256x1xbf16> to vector<256x1xf32>
    %22 = arith.addf %19, %21 : vector<256x1xf32>
    %23 = arith.truncf %22 : vector<256x1xf32> to vector<256x1xbf16>
    %c0_15 = arith.constant 0 : index
    %c0_16 = arith.constant 0 : index
    %24 = vector.load %arg5[%c0_15, %c0_16] : memref<256x256xbf16, #tpu.memory_space<vmem>>, vector<256x256xbf16>
    %cst_17 = arith.constant dense<0.000000e+00> : vector<256x1xf32>
    %25 = tpu.matmul %24, %23, %cst_17 {dimension_numbers = #tpu.dot_dimension_numbers<[1], [0], [0], [1], [0, 0, 1, 1], [], []>} : vector<256x256xbf16>, vector<256x1xbf16>, vector<256x1xf32> -> vector<256x1xf32>
    %c0_18 = arith.constant 0 : index
    %c0_19 = arith.constant 0 : index
    %26 = vector.load %arg6[%c0_18, %c0_19] : memref<256x256xbf16, #tpu.memory_space<vmem>>, vector<256x256xbf16>
    %cst_20 = arith.constant dense<0.000000e+00> : vector<256x1xf32>
    %27 = tpu.matmul %26, %23, %cst_20 {dimension_numbers = #tpu.dot_dimension_numbers<[1], [0], [0], [1], [0, 0, 1, 1], [], []>} : vector<256x256xbf16>, vector<256x1xbf16>, vector<256x1xf32> -> vector<256x1xf32>
    %c64_i32 = arith.constant 64 : i32
    %28 = vector.broadcast %c64_i32 : i32 to vector<256x128xi32>
    %29 = arith.cmpi slt, %0, %28 : vector<256x128xi32>
    %30 = vector.shape_cast %25 : vector<256x1xf32> to vector<256x1xf32>
    %31 = vector.broadcast %30 : vector<256x1xf32> to vector<256x128xf32>
    %32 = vector.shape_cast %27 : vector<256x1xf32> to vector<256x1xf32>
    %33 = vector.broadcast %32 : vector<256x1xf32> to vector<256x128xf32>
    %34 = arith.select %29, %31, %33 : vector<256x128xi1>, vector<256x128xf32>
    %c0_21 = arith.constant 0 : index
    %c0_22 = arith.constant 0 : index
    %c0_23 = arith.constant 0 : index
    %35 = vector.load %arg1[%c0_21, %c0_22, %c0_23] : memref<2x256x128xf32, #tpu.memory_space<vmem>>, vector<1x256x128xf32>
    %36 = vector.shape_cast %35 : vector<1x256x128xf32> to vector<256x128xf32>
    %37 = arith.addf %36, %34 : vector<256x128xf32>
    %c0_24 = arith.constant 0 : index
    %c0_25 = arith.constant 0 : index
    %c0_26 = arith.constant 0 : index
    %38 = vector.load %arg7[%c0_24, %c0_25, %c0_26] : memref<2x256x128xf32, #tpu.memory_space<vmem>>, vector<1x256x128xf32>
    %39 = vector.shape_cast %38 : vector<1x256x128xf32> to vector<256x128xf32>
    %40 = vector.shape_cast %37 : vector<256x128xf32> to vector<1x256x128xf32>
    tpu.vector_store %arg7[%c0_24, %c0_25, %c0_26], %40 {strides = array<i32>} : memref<2x256x128xf32, #tpu.memory_space<vmem>>, vector<1x256x128xf32>,
    %c1 = arith.constant 1 : index
    %c0_27 = arith.constant 0 : index
    %c0_28 = arith.constant 0 : index
    %41 = vector.load %arg1[%c1, %c0_27, %c0_28] : memref<2x256x128xf32, #tpu.memory_space<vmem>>, vector<1x256x64xf32>
    %42 = vector.shape_cast %41 : vector<1x256x64xf32> to vector<256x64xf32>
    %cst_29 = arith.constant dense<0.000000e+00> : vector<256xf32>
    %43 = vector.multi_reduction <add>, %42, %cst_29 [1] : vector<256x64xf32> to vector<256xf32>
    %44 = vector.shape_cast %43 : vector<256xf32> to vector<256x1xf32>
    %cst_30 = arith.constant 1.562500e-02 : f32
    %45 = vector.broadcast %cst_30 : f32 to vector<256x1xf32>
    %46 = arith.mulf %44, %45 : vector<256x1xf32>
    %c1_31 = arith.constant 1 : index
    %c0_32 = arith.constant 0 : index
    %c64_33 = arith.constant 64 : index
    %47 = vector.load %arg1[%c1_31, %c0_32, %c64_33] : memref<2x256x128xf32, #tpu.memory_space<vmem>>, vector<1x256x64xf32>
    %48 = vector.shape_cast %47 : vector<1x256x64xf32> to vector<256x64xf32>
    %cst_34 = arith.constant dense<0.000000e+00> : vector<256xf32>
    %49 = vector.multi_reduction <add>, %48, %cst_34 [1] : vector<256x64xf32> to vector<256xf32>
    %50 = vector.shape_cast %49 : vector<256xf32> to vector<256x1xf32>
    %cst_35 = arith.constant 1.562500e-02 : f32
    %51 = vector.broadcast %cst_35 : f32 to vector<256x1xf32>
    %52 = arith.mulf %50, %51 : vector<256x1xf32>
    %c0_36 = arith.constant 0 : index
    %c0_37 = arith.constant 0 : index
    %53 = vector.load %arg2[%c0_36, %c0_37] : memref<256x256xbf16, #tpu.memory_space<vmem>>, vector<256x256xbf16>
    %54 = arith.truncf %46 : vector<256x1xf32> to vector<256x1xbf16>
    %cst_38 = arith.constant dense<0.000000e+00> : vector<256x1xf32>
    %55 = tpu.matmul %53, %54, %cst_38 {dimension_numbers = #tpu.dot_dimension_numbers<[1], [0], [0], [1], [0, 0, 1, 1], [], []>} : vector<256x256xbf16>, vector<256x1xbf16>, vector<256x1xf32> -> vector<256x1xf32>
    %c0_39 = arith.constant 0 : index
    %c0_40 = arith.constant 0 : index
    %56 = vector.load %arg3[%c0_39, %c0_40] : memref<256x256xbf16, #tpu.memory_space<vmem>>, vector<256x256xbf16>
    %57 = arith.truncf %52 : vector<256x1xf32> to vector<256x1xbf16>
    %cst_41 = arith.constant dense<0.000000e+00> : vector<256x1xf32>
    %58 = tpu.matmul %56, %57, %cst_41 {dimension_numbers = #tpu.dot_dimension_numbers<[1], [0], [0], [1], [0, 0, 1, 1], [], []>} : vector<256x256xbf16>, vector<256x1xbf16>, vector<256x1xf32> -> vector<256x1xf32>
    %59 = arith.addf %55, %58 : vector<256x1xf32>
    %c0_42 = arith.constant 0 : index
    %c0_43 = arith.constant 0 : index
    %60 = vector.load %arg4[%c0_42, %c0_43] : memref<256x1xbf16, #tpu.memory_space<vmem>>, vector<256x1xbf16>
    %61 = arith.extf %60 : vector<256x1xbf16> to vector<256x1xf32>
    %62 = arith.addf %59, %61 : vector<256x1xf32>
    %63 = arith.truncf %62 : vector<256x1xf32> to vector<256x1xbf16>
    %c0_44 = arith.constant 0 : index
    %c0_45 = arith.constant 0 : index
    %64 = vector.load %arg5[%c0_44, %c0_45] : memref<256x256xbf16, #tpu.memory_space<vmem>>, vector<256x256xbf16>
    %cst_46 = arith.constant dense<0.000000e+00> : vector<256x1xf32>
    %65 = tpu.matmul %64, %63, %cst_46 {dimension_numbers = #tpu.dot_dimension_numbers<[1], [0], [0], [1], [0, 0, 1, 1], [], []>} : vector<256x256xbf16>, vector<256x1xbf16>, vector<256x1xf32> -> vector<256x1xf32>
    %c0_47 = arith.constant 0 : index
    %c0_48 = arith.constant 0 : index
    %66 = vector.load %arg6[%c0_47, %c0_48] : memref<256x256xbf16, #tpu.memory_space<vmem>>, vector<256x256xbf16>
    %cst_49 = arith.constant dense<0.000000e+00> : vector<256x1xf32>
    %67 = tpu.matmul %66, %63, %cst_49 {dimension_numbers = #tpu.dot_dimension_numbers<[1], [0], [0], [1], [0, 0, 1, 1], [], []>} : vector<256x256xbf16>, vector<256x1xbf16>, vector<256x1xf32> -> vector<256x1xf32>
    %c64_i32_50 = arith.constant 64 : i32
    %68 = vector.broadcast %c64_i32_50 : i32 to vector<256x128xi32>
    %69 = arith.cmpi slt, %0, %68 : vector<256x128xi32>
    %70 = vector.shape_cast %65 : vector<256x1xf32> to vector<256x1xf32>
    %71 = vector.broadcast %70 : vector<256x1xf32> to vector<256x128xf32>
    %72 = vector.shape_cast %67 : vector<256x1xf32> to vector<256x1xf32>
    %73 = vector.broadcast %72 : vector<256x1xf32> to vector<256x128xf32>
    %74 = arith.select %69, %71, %73 : vector<256x128xi1>, vector<256x128xf32>
    %c1_51 = arith.constant 1 : index
    %c0_52 = arith.constant 0 : index
    %c0_53 = arith.constant 0 : index
    %75 = vector.load %arg1[%c1_51, %c0_52, %c0_53] : memref<2x256x128xf32, #tpu.memory_space<vmem>>, vector<1x256x128xf32>
    %76 = vector.shape_cast %75 : vector<1x256x128xf32> to vector<256x128xf32>
    %77 = arith.addf %76, %74 : vector<256x128xf32>
    %c1_54 = arith.constant 1 : index
    %c0_55 = arith.constant 0 : index
    %c0_56 = arith.constant 0 : index
    %78 = vector.load %arg7[%c1_54, %c0_55, %c0_56] : memref<2x256x128xf32, #tpu.memory_space<vmem>>, vector<1x256x128xf32>
    %79 = vector.shape_cast %78 : vector<1x256x128xf32> to vector<256x128xf32>
    %80 = vector.shape_cast %77 : vector<256x128xf32> to vector<1x256x128xf32>
    tpu.vector_store %arg7[%c1_54, %c0_55, %c0_56], %80 {strides = array<i32>} : memref<2x256x128xf32, #tpu.memory_space<vmem>>, vector<1x256x128xf32>,
    return
  }
  func.func @transform_0(%arg0: i32) -> (i32, i32, i32) {
    %c0_i32 = arith.constant 0 : i32
    %c0_i32_0 = arith.constant 0 : i32
    %c0_i32_1 = arith.constant 0 : i32
    %c0_i32_2 = arith.constant 0 : i32
    return %c0_i32, %c0_i32_0, %c0_i32_1 : i32, i32, i32
  }
  func.func @transform_1(%arg0: i32) -> (i32, i32) {
    %c0_i32 = arith.constant 0 : i32
    %c0_i32_0 = arith.constant 0 : i32
    %c0_i32_1 = arith.constant 0 : i32
    return %c0_i32, %c0_i32_0 : i32, i32
  }
  func.func @transform_2(%arg0: i32) -> (i32, i32) {
    %c0_i32 = arith.constant 0 : i32
    %c0_i32_0 = arith.constant 0 : i32
    %c0_i32_1 = arith.constant 0 : i32
    return %c0_i32, %c0_i32_0 : i32, i32
  }
  func.func @transform_3(%arg0: i32) -> (i32, i32) {
    %c0_i32 = arith.constant 0 : i32
    %c0_i32_0 = arith.constant 0 : i32
    %c0_i32_1 = arith.constant 0 : i32
    return %c0_i32, %c0_i32_0 : i32, i32
  }
  func.func @transform_4(%arg0: i32) -> (i32, i32) {
    %c0_i32 = arith.constant 0 : i32
    %c0_i32_0 = arith.constant 0 : i32
    %c0_i32_1 = arith.constant 0 : i32
    return %c0_i32, %c0_i32_0 : i32, i32
  }
  func.func @transform_5(%arg0: i32) -> (i32, i32) {
    %c0_i32 = arith.constant 0 : i32
    %c0_i32_0 = arith.constant 0 : i32
    %c0_i32_1 = arith.constant 0 : i32
    return %c0_i32, %c0_i32_0 : i32, i32
  }
  func.func @transform_6(%arg0: i32) -> (i32, i32, i32) {
    %c0_i32 = arith.constant 0 : i32
    %c0_i32_0 = arith.constant 0 : i32
    %c0_i32_1 = arith.constant 0 : i32
    %c0_i32_2 = arith.constant 0 : i32
    return %c0_i32, %c0_i32_0, %c0_i32_1 : i32, i32, i32
  }
}

</mosaic_0001>

<llo_original>
// kernel: tpu_custom_call.1
$region0: #{tpu_custom_call.1}
  #allocation0 [shape = 'u32[]', space=smem, size = 0x4, offset = 0x4, fixed_abs, tag = 'smem constant byte address 0x4 - core index']
  #allocation1 [shape = 'u32[144,128]{1,0:T(1,128)}', space=vmem, size = 0x12000, scoped, tag = 'internal scratch']
  %s0 = inlined_call_operand.hbm [shape: f32[2,256,128], index: 0, kind: input, shape index: {}]
  %s1 = inlined_call_operand.hbm [shape: bf16[256,256], index: 1, kind: input, shape index: {}]
  %s2 = inlined_call_operand.hbm [shape: bf16[256,256], index: 2, kind: input, shape index: {}]
  %s3 = inlined_call_operand.vmem [shape: bf16[256,1], index: 3, kind: input, shape index: {}]
  %s4 = inlined_call_operand.hbm [shape: bf16[256,256], index: 4, kind: input, shape index: {}]
  %s5 = inlined_call_operand.hbm [shape: bf16[256,256], index: 5, kind: input, shape index: {}]
  %s6 = inlined_call_operand.hbm [shape: f32[2,256,128], index: 6, kind: output, shape index: {}]
  %s7 = sld [smem:[#allocation0]]
  $region54: #{tpu_custom_call.1} parent=0
    _
  %s9 = ssub.s32 1, %s7
  %s10 = scalar_select 0, %s9, %s7
  $region1: #{tpu_custom_call.1} parent=0
    #allocation2 [shape = 'u8[262144]{0}', space=vmem, size = 0x40000, scoped, tag = 'input window, operand 0, single buffered']
    #allocation3 [shape = 's32[1]{0}', space=sflag, size = 0x4, scoped, tag = 'scoped memory for tpu_custom_call.1']
    #allocation4 [shape = 's32[1]{0}', space=sflag, size = 0x4, scoped, tag = 'scoped memory for tpu_custom_call.1']
    #allocation5 [shape = 'u8[131072]{0}', space=vmem, size = 0x20000, scoped, tag = 'input window, operand 1, single buffered']
    #allocation6 [shape = 's32[1]{0}', space=sflag, size = 0x4, scoped, tag = 'scoped memory for tpu_custom_call.1']
    #allocation7 [shape = 'u8[131072]{0}', space=vmem, size = 0x20000, scoped, tag = 'input window, operand 2, single buffered']
    #allocation8 [shape = 'u8[131072]{0}', space=vmem, size = 0x20000, scoped, tag = 'input window, operand 4, single buffered']
    #allocation9 [shape = 's32[1]{0}', space=sflag, size = 0x4, scoped, tag = 'scoped memory for tpu_custom_call.1']
    #allocation10 [shape = 'u8[131072]{0}', space=vmem, size = 0x20000, scoped, tag = 'input window, operand 5, single buffered']
    #allocation11 [shape = 'u8[262144]{0}', space=vmem, size = 0x40000, scoped, tag = 'output window, operand 0, single buffered']
    %11 = vsyncpa [#allocation3], 0
    %12 = vsyncpa [#allocation6], 0
    %13 = vsyncpa [#allocation9], 0
    %14 = vsyncpa [#allocation4], 0
    // Predicated region
    $region2: #{tpu_custom_call.1} parent=1 // pred_check
      _
    $region3: #{tpu_custom_call.1} parent=1 // pred_check_branch
      %16 = sbr.rel (0) target = $region5
    $region4: #{tpu_custom_call.1} parent=1 // pred_region
      %s18 = ssub.s32 8192, 8192
      %19 = vsyncadd [#allocation3], %s18
      %s20 = sshll.u32 [#allocation2], 4
      %s21 = int_to_ptr.vmem [resolvable:$true] %s20
      %26 = dma.hbm_to_vmem [thread:$0]  %s0, 8192, %s21, [#allocation3], 128, 128, 8
    $region5: #{tpu_custom_call.1} parent=1 // pred_fallthru
      _
    // Predicated region
    $region6: #{tpu_custom_call.1} parent=1 // pred_check
      _
    $region7: #{tpu_custom_call.1} parent=1 // pred_check_branch
      %28 = sbr.rel (0) target = $region9
    $region8: #{tpu_custom_call.1} parent=1 // pred_region
      %s30 = ssub.s32 4096, 4096
      %31 = vsyncadd [#allocation6], %s30
      %s32 = sshll.u32 [#allocation5], 4
      %s33 = int_to_ptr.vmem [resolvable:$true] %s32
      %38 = dma.hbm_to_vmem [thread:$0]  %s1, 4096, %s33, [#allocation6], 128, 128, 8
    $region9: #{tpu_custom_call.1} parent=1 // pred_fallthru
      _
    // Predicated region
    $region10: #{tpu_custom_call.1} parent=1 // pred_check
      _
    $region11: #{tpu_custom_call.1} parent=1 // pred_check_branch
      %40 = sbr.rel (0) target = $region13
    $region12: #{tpu_custom_call.1} parent=1 // pred_region
      %s42 = ssub.s32 4096, 4096
      %43 = vsyncadd [#allocation6], %s42
      %s44 = sshll.u32 [#allocation7], 4
      %s45 = int_to_ptr.vmem [resolvable:$true] %s44
      %50 = dma.hbm_to_vmem [thread:$0]  %s2, 4096, %s45, [#allocation6], 128, 128, 8
    $region13: #{tpu_custom_call.1} parent=1 // pred_fallthru
      _
    // Predicated region
    $region14: #{tpu_custom_call.1} parent=1 // pred_check
      _
    $region15: #{tpu_custom_call.1} parent=1 // pred_check_branch
      %52 = sbr.rel (0) target = $region17
    $region16: #{tpu_custom_call.1} parent=1 // pred_region
      _
    $region17: #{tpu_custom_call.1} parent=1 // pred_fallthru
      _
    // Predicated region
    $region18: #{tpu_custom_call.1} parent=1 // pred_check
      _
    $region19: #{tpu_custom_call.1} parent=1 // pred_check_branch
      %54 = sbr.rel (0) target = $region21
    $region20: #{tpu_custom_call.1} parent=1 // pred_region
      %s56 = ssub.s32 4096, 4096
      %57 = vsyncadd [#allocation9], %s56
      %s58 = sshll.u32 [#allocation8], 4
      %s59 = int_to_ptr.vmem [resolvable:$true] %s58
      %64 = dma.hbm_to_vmem [thread:$0]  %s4, 4096, %s59, [#allocation9], 128, 128, 8
    $region21: #{tpu_custom_call.1} parent=1 // pred_fallthru
      _
    // Predicated region
    $region22: #{tpu_custom_call.1} parent=1 // pred_check
      _
    $region23: #{tpu_custom_call.1} parent=1 // pred_check_branch
      %66 = sbr.rel (0) target = $region25
    $region24: #{tpu_custom_call.1} parent=1 // pred_region
      %s68 = ssub.s32 4096, 4096
      %69 = vsyncadd [#allocation9], %s68
      %s70 = sshll.u32 [#allocation10], 4
      %s71 = int_to_ptr.vmem [resolvable:$true] %s70
      %76 = dma.hbm_to_vmem [thread:$0]  %s5, 4096, %s71, [#allocation9], 128, 128, 8
    $region25: #{tpu_custom_call.1} parent=1 // pred_fallthru
      _
    // Predicated region
    $region26: #{tpu_custom_call.1} parent=1 // pred_check
      _
    $region27: #{tpu_custom_call.1} parent=1 // pred_check_branch
      %78 = sbr.rel (0) target = $region29
    $region28: #{tpu_custom_call.1} parent=1 // pred_region
      %79 = dma.done [#allocation3], 8192
    $region29: #{tpu_custom_call.1} parent=1 // pred_fallthru
      _
    // Predicated region
    $region30: #{tpu_custom_call.1} parent=1 // pred_check
      _
    $region31: #{tpu_custom_call.1} parent=1 // pred_check_branch
      %81 = sbr.rel (0) target = $region33
    $region32: #{tpu_custom_call.1} parent=1 // pred_region
      %82 = dma.done [#allocation6], 4096
    $region33: #{tpu_custom_call.1} parent=1 // pred_fallthru
      _
    // Predicated region
    $region34: #{tpu_custom_call.1} parent=1 // pred_check
      _
    $region35: #{tpu_custom_call.1} parent=1 // pred_check_branch
      %84 = sbr.rel (0) target = $region37
    $region36: #{tpu_custom_call.1} parent=1 // pred_region
      %85 = dma.done [#allocation6], 4096
    $region37: #{tpu_custom_call.1} parent=1 // pred_fallthru
      _
    // Predicated region
    $region38: #{tpu_custom_call.1} parent=1 // pred_check
      _
    $region39: #{tpu_custom_call.1} parent=1 // pred_check_branch
      %87 = sbr.rel (0) target = $region41
    $region40: #{tpu_custom_call.1} parent=1 // pred_region
      %88 = dma.done [#allocation9], 4096
    $region41: #{tpu_custom_call.1} parent=1 // pred_fallthru
      _
    // Predicated region
    $region42: #{tpu_custom_call.1} parent=1 // pred_check
      _
    $region43: #{tpu_custom_call.1} parent=1 // pred_check_branch
      %90 = sbr.rel (0) target = $region45
    $region44: #{tpu_custom_call.1} parent=1 // pred_region
      %91 = dma.done [#allocation9], 4096
    $region45: #{tpu_custom_call.1} parent=1 // pred_fallthru
      _
    %v93 = vlaneseq
    %v94 = vand.u32 %v93, 127
    %v95 = vld [vmem:[#allocation2] sm:$0xff]
    %v96 = vld [vmem:[#allocation2 + $0x8] sm:$0xff]
    %v97 = vld [vmem:[#allocation2 + $0x10] sm:$0xff]
    %v98 = vld [vmem:[#allocation2 + $0x18] sm:$0xff]
    %v99 = vld [vmem:[#allocation2 + $0x20] sm:$0xff]
    %v100 = vld [vmem:[#allocation2 + $0x28] sm:$0xff]
    %v101 = vld [vmem:[#allocation2 + $0x30] sm:$0xff]
    %v102 = vld [vmem:[#allocation2 + $0x38] sm:$0xff]
    %v103 = vld [vmem:[#allocation2 + $0x40] sm:$0xff]
    %v104 = vld [vmem:[#allocation2 + $0x48] sm:$0xff]
    %v105 = vld [vmem:[#allocation2 + $0x50] sm:$0xff]
    %v106 = vld [vmem:[#allocation2 + $0x58] sm:$0xff]
    %v107 = vld [vmem:[#allocation2 + $0x60] sm:$0xff]
    %v108 = vld [vmem:[#allocation2 + $0x68] sm:$0xff]
    %v109 = vld [vmem:[#allocation2 + $0x70] sm:$0xff]
    %v110 = vld [vmem:[#allocation2 + $0x78] sm:$0xff]
    %v111 = vld [vmem:[#allocation2 + $0x80] sm:$0xff]
    %v112 = vld [vmem:[#allocation2 + $0x88] sm:$0xff]
    %v113 = vld [vmem:[#allocation2 + $0x90] sm:$0xff]
    %v114 = vld [vmem:[#allocation2 + $0x98] sm:$0xff]
    %v115 = vld [vmem:[#allocation2 + $0xa0] sm:$0xff]
    %v116 = vld [vmem:[#allocation2 + $0xa8] sm:$0xff]
    %v117 = vld [vmem:[#allocation2 + $0xb0] sm:$0xff]
    %v118 = vld [vmem:[#allocation2 + $0xb8] sm:$0xff]
    %v119 = vld [vmem:[#allocation2 + $0xc0] sm:$0xff]
    %v120 = vld [vmem:[#allocation2 + $0xc8] sm:$0xff]
    %v121 = vld [vmem:[#allocation2 + $0xd0] sm:$0xff]
    %v122 = vld [vmem:[#allocation2 + $0xd8] sm:$0xff]
    %v123 = vld [vmem:[#allocation2 + $0xe0] sm:$0xff]
    %v124 = vld [vmem:[#allocation2 + $0xe8] sm:$0xff]
    %v125 = vld [vmem:[#allocation2 + $0xf0] sm:$0xff]
    %v126 = vld [vmem:[#allocation2 + $0xf8] sm:$0xff]
    %vm127 = vcmask 523264
    %v128 = vsel %vm127, %v95, 0.0
    %129 = vadd.xlane.f32.xlu0 %v128
    %v130 = vpop.xlane.xlu0 %129
    %v131 = vsel %vm127, %v96, 0.0
    %132 = vadd.xlane.f32.xlu0 %v131
    %v133 = vpop.xlane.xlu0 %132
    %v134 = vsel %vm127, %v97, 0.0
    %135 = vadd.xlane.f32.xlu0 %v134
    %v136 = vpop.xlane.xlu0 %135
    %v137 = vsel %vm127, %v98, 0.0
    %138 = vadd.xlane.f32.xlu0 %v137
    %v139 = vpop.xlane.xlu0 %138
    %v140 = vsel %vm127, %v99, 0.0
    %141 = vadd.xlane.f32.xlu0 %v140
    %v142 = vpop.xlane.xlu0 %141
    %v143 = vsel %vm127, %v100, 0.0
    %144 = vadd.xlane.f32.xlu0 %v143
    %v145 = vpop.xlane.xlu0 %144
    %v146 = vsel %vm127, %v101, 0.0
    %147 = vadd.xlane.f32.xlu0 %v146
    %v148 = vpop.xlane.xlu0 %147
    %v149 = vsel %vm127, %v102, 0.0
    %150 = vadd.xlane.f32.xlu0 %v149
    %v151 = vpop.xlane.xlu0 %150
    %v152 = vsel %vm127, %v103, 0.0
    %153 = vadd.xlane.f32.xlu0 %v152
    %v154 = vpop.xlane.xlu0 %153
    %v155 = vsel %vm127, %v104, 0.0
    %156 = vadd.xlane.f32.xlu0 %v155
    %v157 = vpop.xlane.xlu0 %156
    %v158 = vsel %vm127, %v105, 0.0
    %159 = vadd.xlane.f32.xlu0 %v158
    %v160 = vpop.xlane.xlu0 %159
    %v161 = vsel %vm127, %v106, 0.0
    %162 = vadd.xlane.f32.xlu0 %v161
    %v163 = vpop.xlane.xlu0 %162
    %v164 = vsel %vm127, %v107, 0.0
    %165 = vadd.xlane.f32.xlu0 %v164
    %v166 = vpop.xlane.xlu0 %165
    %v167 = vsel %vm127, %v108, 0.0
    %168 = vadd.xlane.f32.xlu0 %v167
    %v169 = vpop.xlane.xlu0 %168
    %v170 = vsel %vm127, %v109, 0.0
    %171 = vadd.xlane.f32.xlu0 %v170
    %v172 = vpop.xlane.xlu0 %171
    %v173 = vsel %vm127, %v110, 0.0
    %174 = vadd.xlane.f32.xlu0 %v173
    %v175 = vpop.xlane.xlu0 %174
    %v176 = vsel %vm127, %v111, 0.0
    %177 = vadd.xlane.f32.xlu0 %v176
    %v178 = vpop.xlane.xlu0 %177
    %v179 = vsel %vm127, %v112, 0.0
    %180 = vadd.xlane.f32.xlu0 %v179
    %v181 = vpop.xlane.xlu0 %180
    %v182 = vsel %vm127, %v113, 0.0
    %183 = vadd.xlane.f32.xlu0 %v182
    %v184 = vpop.xlane.xlu0 %183
    %v185 = vsel %vm127, %v114, 0.0
    %186 = vadd.xlane.f32.xlu0 %v185
    %v187 = vpop.xlane.xlu0 %186
    %v188 = vsel %vm127, %v115, 0.0
    %189 = vadd.xlane.f32.xlu0 %v188
    %v190 = vpop.xlane.xlu0 %189
    %v191 = vsel %vm127, %v116, 0.0
    %192 = vadd.xlane.f32.xlu0 %v191
    %v193 = vpop.xlane.xlu0 %192
    %v194 = vsel %vm127, %v117, 0.0
    %195 = vadd.xlane.f32.xlu0 %v194
    %v196 = vpop.xlane.xlu0 %195
    %v197 = vsel %vm127, %v118, 0.0
    %198 = vadd.xlane.f32.xlu0 %v197
    %v199 = vpop.xlane.xlu0 %198
    %v200 = vsel %vm127, %v119, 0.0
    %201 = vadd.xlane.f32.xlu0 %v200
    %v202 = vpop.xlane.xlu0 %201
    %v203 = vsel %vm127, %v120, 0.0
    %204 = vadd.xlane.f32.xlu0 %v203
    %v205 = vpop.xlane.xlu0 %204
    %v206 = vsel %vm127, %v121, 0.0
    %207 = vadd.xlane.f32.xlu0 %v206
    %v208 = vpop.xlane.xlu0 %207
    %v209 = vsel %vm127, %v122, 0.0
    %210 = vadd.xlane.f32.xlu0 %v209
    %v211 = vpop.xlane.xlu0 %210
    %v212 = vsel %vm127, %v123, 0.0
    %213 = vadd.xlane.f32.xlu0 %v212
    %v214 = vpop.xlane.xlu0 %213
    %v215 = vsel %vm127, %v124, 0.0
    %216 = vadd.xlane.f32.xlu0 %v215
    %v217 = vpop.xlane.xlu0 %216
    %v218 = vsel %vm127, %v125, 0.0
    %219 = vadd.xlane.f32.xlu0 %v218
    %v220 = vpop.xlane.xlu0 %219
    %v221 = vsel %vm127, %v126, 0.0
    %222 = vadd.xlane.f32.xlu0 %v221
    %v223 = vpop.xlane.xlu0 %222
    %v224 = vmul.f32 %v130, 0.015625
    %v225 = vmul.f32 %v133, 0.015625
    %v226 = vmul.f32 %v136, 0.015625
    %v227 = vmul.f32 %v139, 0.015625
    %v228 = vmul.f32 %v142, 0.015625
    %v229 = vmul.f32 %v145, 0.015625
    %v230 = vmul.f32 %v148, 0.015625
    %v231 = vmul.f32 %v151, 0.015625
    %v232 = vmul.f32 %v154, 0.015625
    %v233 = vmul.f32 %v157, 0.015625
    %v234 = vmul.f32 %v160, 0.015625
    %v235 = vmul.f32 %v163, 0.015625
    %v236 = vmul.f32 %v166, 0.015625
    %v237 = vmul.f32 %v169, 0.015625
    %v238 = vmul.f32 %v172, 0.015625
    %v239 = vmul.f32 %v175, 0.015625
    %v240 = vmul.f32 %v178, 0.015625
    %v241 = vmul.f32 %v181, 0.015625
    %v242 = vmul.f32 %v184, 0.015625
    %v243 = vmul.f32 %v187, 0.015625
    %v244 = vmul.f32 %v190, 0.015625
    %v245 = vmul.f32 %v193, 0.015625
    %v246 = vmul.f32 %v196, 0.015625
    %v247 = vmul.f32 %v199, 0.015625
    %v248 = vmul.f32 %v202, 0.015625
    %v249 = vmul.f32 %v205, 0.015625
    %v250 = vmul.f32 %v208, 0.015625
    %v251 = vmul.f32 %v211, 0.015625
    %v252 = vmul.f32 %v214, 0.015625
    %v253 = vmul.f32 %v217, 0.015625
    %v254 = vmul.f32 %v220, 0.015625
    %v255 = vmul.f32 %v223, 0.015625
    %288 = vrot.lane.b32.xlu0 %v95, 64
    %v289 = vpop.permute.xlu0 %288
    %290 = vrot.lane.b32.xlu0 %v96, 64
    %v291 = vpop.permute.xlu0 %290
    %292 = vrot.lane.b32.xlu0 %v97, 64
    %v293 = vpop.permute.xlu0 %292
    %294 = vrot.lane.b32.xlu0 %v98, 64
    %v295 = vpop.permute.xlu0 %294
    %296 = vrot.lane.b32.xlu0 %v99, 64
    %v297 = vpop.permute.xlu0 %296
    %298 = vrot.lane.b32.xlu0 %v100, 64
    %v299 = vpop.permute.xlu0 %298
    %300 = vrot.lane.b32.xlu0 %v101, 64
    %v301 = vpop.permute.xlu0 %300
    %302 = vrot.lane.b32.xlu0 %v102, 64
    %v303 = vpop.permute.xlu0 %302
    %304 = vrot.lane.b32.xlu0 %v103, 64
    %v305 = vpop.permute.xlu0 %304
    %306 = vrot.lane.b32.xlu0 %v104, 64
    %v307 = vpop.permute.xlu0 %306
    %308 = vrot.lane.b32.xlu0 %v105, 64
    %v309 = vpop.permute.xlu0 %308
    %310 = vrot.lane.b32.xlu0 %v106, 64
    %v311 = vpop.permute.xlu0 %310
    %312 = vrot.lane.b32.xlu0 %v107, 64
    %v313 = vpop.permute.xlu0 %312
    %314 = vrot.lane.b32.xlu0 %v108, 64
    %v315 = vpop.permute.xlu0 %314
    %316 = vrot.lane.b32.xlu0 %v109, 64
    %v317 = vpop.permute.xlu0 %316
    %318 = vrot.lane.b32.xlu0 %v110, 64
    %v319 = vpop.permute.xlu0 %318
    %320 = vrot.lane.b32.xlu0 %v111, 64
    %v321 = vpop.permute.xlu0 %320
    %322 = vrot.lane.b32.xlu0 %v112, 64
    %v323 = vpop.permute.xlu0 %322
    %324 = vrot.lane.b32.xlu0 %v113, 64
    %v325 = vpop.permute.xlu0 %324
    %326 = vrot.lane.b32.xlu0 %v114, 64
    %v327 = vpop.permute.xlu0 %326
    %328 = vrot.lane.b32.xlu0 %v115, 64
    %v329 = vpop.permute.xlu0 %328
    %330 = vrot.lane.b32.xlu0 %v116, 64
    %v331 = vpop.permute.xlu0 %330
    %332 = vrot.lane.b32.xlu0 %v117, 64
    %v333 = vpop.permute.xlu0 %332
    %334 = vrot.lane.b32.xlu0 %v118, 64
    %v335 = vpop.permute.xlu0 %334
    %336 = vrot.lane.b32.xlu0 %v119, 64
    %v337 = vpop.permute.xlu0 %336
    %338 = vrot.lane.b32.xlu0 %v120, 64
    %v339 = vpop.permute.xlu0 %338
    %340 = vrot.lane.b32.xlu0 %v121, 64
    %v341 = vpop.permute.xlu0 %340
    %342 = vrot.lane.b32.xlu0 %v122, 64
    %v343 = vpop.permute.xlu0 %342
    %344 = vrot.lane.b32.xlu0 %v123, 64
    %v345 = vpop.permute.xlu0 %344
    %346 = vrot.lane.b32.xlu0 %v124, 64
    %v347 = vpop.permute.xlu0 %346
    %348 = vrot.lane.b32.xlu0 %v125, 64
    %v349 = vpop.permute.xlu0 %348
    %350 = vrot.lane.b32.xlu0 %v126, 64
    %v351 = vpop.permute.xlu0 %350
    %v384 = vsel %vm127, %v289, 0.0
    %385 = vadd.xlane.f32.xlu0 %v384
    %v386 = vpop.xlane.xlu0 %385
    %v387 = vsel %vm127, %v291, 0.0
    %388 = vadd.xlane.f32.xlu0 %v387
    %v389 = vpop.xlane.xlu0 %388
    %v390 = vsel %vm127, %v293, 0.0
    %391 = vadd.xlane.f32.xlu0 %v390
    %v392 = vpop.xlane.xlu0 %391
    %v393 = vsel %vm127, %v295, 0.0
    %394 = vadd.xlane.f32.xlu0 %v393
    %v395 = vpop.xlane.xlu0 %394
    %v396 = vsel %vm127, %v297, 0.0
    %397 = vadd.xlane.f32.xlu0 %v396
    %v398 = vpop.xlane.xlu0 %397
    %v399 = vsel %vm127, %v299, 0.0
    %400 = vadd.xlane.f32.xlu0 %v399
    %v401 = vpop.xlane.xlu0 %400
    %v402 = vsel %vm127, %v301, 0.0
    %403 = vadd.xlane.f32.xlu0 %v402
    %v404 = vpop.xlane.xlu0 %403
    %v405 = vsel %vm127, %v303, 0.0
    %406 = vadd.xlane.f32.xlu0 %v405
    %v407 = vpop.xlane.xlu0 %406
    %v408 = vsel %vm127, %v305, 0.0
    %409 = vadd.xlane.f32.xlu0 %v408
    %v410 = vpop.xlane.xlu0 %409
    %v411 = vsel %vm127, %v307, 0.0
    %412 = vadd.xlane.f32.xlu0 %v411
    %v413 = vpop.xlane.xlu0 %412
    %v414 = vsel %vm127, %v309, 0.0
    %415 = vadd.xlane.f32.xlu0 %v414
    %v416 = vpop.xlane.xlu0 %415
    %v417 = vsel %vm127, %v311, 0.0
    %418 = vadd.xlane.f32.xlu0 %v417
    %v419 = vpop.xlane.xlu0 %418
    %v420 = vsel %vm127, %v313, 0.0
    %421 = vadd.xlane.f32.xlu0 %v420
    %v422 = vpop.xlane.xlu0 %421
    %v423 = vsel %vm127, %v315, 0.0
    %424 = vadd.xlane.f32.xlu0 %v423
    %v425 = vpop.xlane.xlu0 %424
    %v426 = vsel %vm127, %v317, 0.0
    %427 = vadd.xlane.f32.xlu0 %v426
    %v428 = vpop.xlane.xlu0 %427
    %v429 = vsel %vm127, %v319, 0.0
    %430 = vadd.xlane.f32.xlu0 %v429
    %v431 = vpop.xlane.xlu0 %430
    %v432 = vsel %vm127, %v321, 0.0
    %433 = vadd.xlane.f32.xlu0 %v432
    %v434 = vpop.xlane.xlu0 %433
    %v435 = vsel %vm127, %v323, 0.0
    %436 = vadd.xlane.f32.xlu0 %v435
    %v437 = vpop.xlane.xlu0 %436
    %v438 = vsel %vm127, %v325, 0.0
    %439 = vadd.xlane.f32.xlu0 %v438
    %v440 = vpop.xlane.xlu0 %439
    %v441 = vsel %vm127, %v327, 0.0
    %442 = vadd.xlane.f32.xlu0 %v441
    %v443 = vpop.xlane.xlu0 %442
    %v444 = vsel %vm127, %v329, 0.0
    %445 = vadd.xlane.f32.xlu0 %v444
    %v446 = vpop.xlane.xlu0 %445
    %v447 = vsel %vm127, %v331, 0.0
    %448 = vadd.xlane.f32.xlu0 %v447
    %v449 = vpop.xlane.xlu0 %448
    %v450 = vsel %vm127, %v333, 0.0
    %451 = vadd.xlane.f32.xlu0 %v450
    %v452 = vpop.xlane.xlu0 %451
    %v453 = vsel %vm127, %v335, 0.0
    %454 = vadd.xlane.f32.xlu0 %v453
    %v455 = vpop.xlane.xlu0 %454
    %v456 = vsel %vm127, %v337, 0.0
    %457 = vadd.xlane.f32.xlu0 %v456
    %v458 = vpop.xlane.xlu0 %457
    %v459 = vsel %vm127, %v339, 0.0
    %460 = vadd.xlane.f32.xlu0 %v459
    %v461 = vpop.xlane.xlu0 %460
    %v462 = vsel %vm127, %v341, 0.0
    %463 = vadd.xlane.f32.xlu0 %v462
    %v464 = vpop.xlane.xlu0 %463
    %v465 = vsel %vm127, %v343, 0.0
    %466 = vadd.xlane.f32.xlu0 %v465
    %v467 = vpop.xlane.xlu0 %466
    %v468 = vsel %vm127, %v345, 0.0
    %469 = vadd.xlane.f32.xlu0 %v468
    %v470 = vpop.xlane.xlu0 %469
    %v471 = vsel %vm127, %v347, 0.0
    %472 = vadd.xlane.f32.xlu0 %v471
    %v473 = vpop.xlane.xlu0 %472
    %v474 = vsel %vm127, %v349, 0.0
    %475 = vadd.xlane.f32.xlu0 %v474
    %v476 = vpop.xlane.xlu0 %475
    %v477 = vsel %vm127, %v351, 0.0
    %478 = vadd.xlane.f32.xlu0 %v477
    %v479 = vpop.xlane.xlu0 %478
    %v480 = vmul.f32 %v386, 0.015625
    %v481 = vmul.f32 %v389, 0.015625
    %v482 = vmul.f32 %v392, 0.015625
    %v483 = vmul.f32 %v395, 0.015625
    %v484 = vmul.f32 %v398, 0.015625
    %v485 = vmul.f32 %v401, 0.015625
    %v486 = vmul.f32 %v404, 0.015625
    %v487 = vmul.f32 %v407, 0.015625
    %v488 = vmul.f32 %v410, 0.015625
    %v489 = vmul.f32 %v413, 0.015625
    %v490 = vmul.f32 %v416, 0.015625
    %v491 = vmul.f32 %v419, 0.015625
    %v492 = vmul.f32 %v422, 0.015625
    %v493 = vmul.f32 %v425, 0.015625
    %v494 = vmul.f32 %v428, 0.015625
    %v495 = vmul.f32 %v431, 0.015625
    %v496 = vmul.f32 %v434, 0.015625
    %v497 = vmul.f32 %v437, 0.015625
    %v498 = vmul.f32 %v440, 0.015625
    %v499 = vmul.f32 %v443, 0.015625
    %v500 = vmul.f32 %v446, 0.015625
    %v501 = vmul.f32 %v449, 0.015625
    %v502 = vmul.f32 %v452, 0.015625
    %v503 = vmul.f32 %v455, 0.015625
    %v504 = vmul.f32 %v458, 0.015625
    %v505 = vmul.f32 %v461, 0.015625
    %v506 = vmul.f32 %v464, 0.015625
    %v507 = vmul.f32 %v467, 0.015625
    %v508 = vmul.f32 %v470, 0.015625
    %v509 = vmul.f32 %v473, 0.015625
    %v510 = vmul.f32 %v476, 0.015625
    %v511 = vmul.f32 %v479, 0.015625
    %v512 = vld [vmem:[#allocation5] sm:$0xff]
    %v513 = vld [vmem:[#allocation5 + $0x8] sm:$0xff]
    %v514 = vld [vmem:[#allocation5 + $0x10] sm:$0xff]
    %v515 = vld [vmem:[#allocation5 + $0x18] sm:$0xff]
    %v516 = vld [vmem:[#allocation5 + $0x20] sm:$0xff]
    %v517 = vld [vmem:[#allocation5 + $0x28] sm:$0xff]
    %v518 = vld [vmem:[#allocation5 + $0x30] sm:$0xff]
    %v519 = vld [vmem:[#allocation5 + $0x38] sm:$0xff]
    %v520 = vld [vmem:[#allocation5 + $0x40] sm:$0xff]
    %v521 = vld [vmem:[#allocation5 + $0x48] sm:$0xff]
    %v522 = vld [vmem:[#allocation5 + $0x50] sm:$0xff]
    %v523 = vld [vmem:[#allocation5 + $0x58] sm:$0xff]
    %v524 = vld [vmem:[#allocation5 + $0x60] sm:$0xff]
    %v525 = vld [vmem:[#allocation5 + $0x68] sm:$0xff]
    %v526 = vld [vmem:[#allocation5 + $0x70] sm:$0xff]
    %v527 = vld [vmem:[#allocation5 + $0x78] sm:$0xff]
    %v528 = vld [vmem:[#allocation5 + $0x80] sm:$0xff]
    %v529 = vld [vmem:[#allocation5 + $0x88] sm:$0xff]
    %v530 = vld [vmem:[#allocation5 + $0x90] sm:$0xff]
    %v531 = vld [vmem:[#allocation5 + $0x98] sm:$0xff]
    %v532 = vld [vmem:[#allocation5 + $0xa0] sm:$0xff]
    %v533 = vld [vmem:[#allocation5 + $0xa8] sm:$0xff]
    %v534 = vld [vmem:[#allocation5 + $0xb0] sm:$0xff]
    %v535 = vld [vmem:[#allocation5 + $0xb8] sm:$0xff]
    %v536 = vld [vmem:[#allocation5 + $0xc0] sm:$0xff]
    %v537 = vld [vmem:[#allocation5 + $0xc8] sm:$0xff]
    %v538 = vld [vmem:[#allocation5 + $0xd0] sm:$0xff]
    %v539 = vld [vmem:[#allocation5 + $0xd8] sm:$0xff]
    %v540 = vld [vmem:[#allocation5 + $0xe0] sm:$0xff]
    %v541 = vld [vmem:[#allocation5 + $0xe8] sm:$0xff]
    %v542 = vld [vmem:[#allocation5 + $0xf0] sm:$0xff]
    %v543 = vld [vmem:[#allocation5 + $0xf8] sm:$0xff]
    %v544 = vpack.c.bf16 %v225, %v224
    %v545 = vpack.c.bf16 %v227, %v226
    %v546 = vpack.c.bf16 %v229, %v228
    %v547 = vpack.c.bf16 %v231, %v230
    %v548 = vpack.c.bf16 %v233, %v232
    %v549 = vpack.c.bf16 %v235, %v234
    %v550 = vpack.c.bf16 %v237, %v236
    %v551 = vpack.c.bf16 %v239, %v238
    %v552 = vpack.c.bf16 %v241, %v240
    %v553 = vpack.c.bf16 %v243, %v242
    %v554 = vpack.c.bf16 %v245, %v244
    %v555 = vpack.c.bf16 %v247, %v246
    %v556 = vpack.c.bf16 %v249, %v248
    %v557 = vpack.c.bf16 %v251, %v250
    %v558 = vpack.c.bf16 %v253, %v252
    %v559 = vpack.c.bf16 %v255, %v254
    %v560 = vld [vmem:[#allocation7] sm:$0xff]
    %v561 = vld [vmem:[#allocation7 + $0x8] sm:$0xff]
    %v562 = vld [vmem:[#allocation7 + $0x10] sm:$0xff]
    %v563 = vld [vmem:[#allocation7 + $0x18] sm:$0xff]
    %v564 = vld [vmem:[#allocation7 + $0x20] sm:$0xff]
    %v565 = vld [vmem:[#allocation7 + $0x28] sm:$0xff]
    %v566 = vld [vmem:[#allocation7 + $0x30] sm:$0xff]
    %v567 = vld [vmem:[#allocation7 + $0x38] sm:$0xff]
    %v568 = vld [vmem:[#allocation7 + $0x40] sm:$0xff]
    %v569 = vld [vmem:[#allocation7 + $0x48] sm:$0xff]
    %v570 = vld [vmem:[#allocation7 + $0x50] sm:$0xff]
    %v571 = vld [vmem:[#allocation7 + $0x58] sm:$0xff]
    %v572 = vld [vmem:[#allocation7 + $0x60] sm:$0xff]
    %v573 = vld [vmem:[#allocation7 + $0x68] sm:$0xff]
    %v574 = vld [vmem:[#allocation7 + $0x70] sm:$0xff]
    %v575 = vld [vmem:[#allocation7 + $0x78] sm:$0xff]
    %v576 = vld [vmem:[#allocation7 + $0x80] sm:$0xff]
    %v577 = vld [vmem:[#allocation7 + $0x88] sm:$0xff]
    %v578 = vld [vmem:[#allocation7 + $0x90] sm:$0xff]
    %v579 = vld [vmem:[#allocation7 + $0x98] sm:$0xff]
    %v580 = vld [vmem:[#allocation7 + $0xa0] sm:$0xff]
    %v581 = vld [vmem:[#allocation7 + $0xa8] sm:$0xff]
    %v582 = vld [vmem:[#allocation7 + $0xb0] sm:$0xff]
    %v583 = vld [vmem:[#allocation7 + $0xb8] sm:$0xff]
    %v584 = vld [vmem:[#allocation7 + $0xc0] sm:$0xff]
    %v585 = vld [vmem:[#allocation7 + $0xc8] sm:$0xff]
    %v586 = vld [vmem:[#allocation7 + $0xd0] sm:$0xff]
    %v587 = vld [vmem:[#allocation7 + $0xd8] sm:$0xff]
    %v588 = vld [vmem:[#allocation7 + $0xe0] sm:$0xff]
    %v589 = vld [vmem:[#allocation7 + $0xe8] sm:$0xff]
    %v590 = vld [vmem:[#allocation7 + $0xf0] sm:$0xff]
    %v591 = vld [vmem:[#allocation7 + $0xf8] sm:$0xff]
    %v592 = vpack.c.bf16 %v481, %v480
    %v593 = vpack.c.bf16 %v483, %v482
    %v594 = vpack.c.bf16 %v485, %v484
    %v595 = vpack.c.bf16 %v487, %v486
    %v596 = vpack.c.bf16 %v489, %v488
    %v597 = vpack.c.bf16 %v491, %v490
    %v598 = vpack.c.bf16 %v493, %v492
    %v599 = vpack.c.bf16 %v495, %v494
    %v600 = vpack.c.bf16 %v497, %v496
    %v601 = vpack.c.bf16 %v499, %v498
    %v602 = vpack.c.bf16 %v501, %v500
    %v603 = vpack.c.bf16 %v503, %v502
    %v604 = vpack.c.bf16 %v505, %v504
    %v605 = vpack.c.bf16 %v507, %v506
    %v606 = vpack.c.bf16 %v509, %v508
    %v607 = vpack.c.bf16 %v511, %v510
    %v640 = vunpack.c.l.b16 %v560
    %v641 = vunpack.c.h.b16 %v560
    %v642 = vunpack.c.l.b16 %v561
    %v643 = vunpack.c.h.b16 %v561
    %v644 = vunpack.c.l.b16 %v562
    %v645 = vunpack.c.h.b16 %v562
    %v646 = vunpack.c.l.b16 %v563
    %v647 = vunpack.c.h.b16 %v563
    %v648 = vunpack.c.l.b16 %v564
    %v649 = vunpack.c.h.b16 %v564
    %v650 = vunpack.c.l.b16 %v565
    %v651 = vunpack.c.h.b16 %v565
    %v652 = vunpack.c.l.b16 %v566
    %v653 = vunpack.c.h.b16 %v566
    %v654 = vunpack.c.l.b16 %v567
    %v655 = vunpack.c.h.b16 %v567
    %v656 = vunpack.c.l.b16 %v568
    %v657 = vunpack.c.h.b16 %v568
    %v658 = vunpack.c.l.b16 %v569
    %v659 = vunpack.c.h.b16 %v569
    %v660 = vunpack.c.l.b16 %v570
    %v661 = vunpack.c.h.b16 %v570
    %v662 = vunpack.c.l.b16 %v571
    %v663 = vunpack.c.h.b16 %v571
    %v664 = vunpack.c.l.b16 %v572
    %v665 = vunpack.c.h.b16 %v572
    %v666 = vunpack.c.l.b16 %v573
    %v667 = vunpack.c.h.b16 %v573
    %v668 = vunpack.c.l.b16 %v574
    %v669 = vunpack.c.h.b16 %v574
    %v670 = vunpack.c.l.b16 %v575
    %v671 = vunpack.c.h.b16 %v575
    %v672 = vunpack.c.l.b16 %v576
    %v673 = vunpack.c.h.b16 %v576
    %v674 = vunpack.c.l.b16 %v577
    %v675 = vunpack.c.h.b16 %v577
    %v676 = vunpack.c.l.b16 %v578
    %v677 = vunpack.c.h.b16 %v578
    %v678 = vunpack.c.l.b16 %v579
    %v679 = vunpack.c.h.b16 %v579
    %v680 = vunpack.c.l.b16 %v580
    %v681 = vunpack.c.h.b16 %v580
    %v682 = vunpack.c.l.b16 %v581
    %v683 = vunpack.c.h.b16 %v581
    %v684 = vunpack.c.l.b16 %v582
    %v685 = vunpack.c.h.b16 %v582
    %v686 = vunpack.c.l.b16 %v583
    %v687 = vunpack.c.h.b16 %v583
    %v688 = vunpack.c.l.b16 %v584
    %v689 = vunpack.c.h.b16 %v584
    %v690 = vunpack.c.l.b16 %v585
    %v691 = vunpack.c.h.b16 %v585
    %v692 = vunpack.c.l.b16 %v586
    %v693 = vunpack.c.h.b16 %v586
    %v694 = vunpack.c.l.b16 %v587
    %v695 = vunpack.c.h.b16 %v587
    %v696 = vunpack.c.l.b16 %v588
    %v697 = vunpack.c.h.b16 %v588
    %v698 = vunpack.c.l.b16 %v589
    %v699 = vunpack.c.h.b16 %v589
    %v700 = vunpack.c.l.b16 %v590
    %v701 = vunpack.c.h.b16 %v590
    %v702 = vunpack.c.l.b16 %v591
    %v703 = vunpack.c.h.b16 %v591
    %v704 = vpack.c.b16 %v642, %v640
    %v705 = vpack.c.b16 %v643, %v641
    %v706 = vpack.c.b16 %v646, %v644
    %v707 = vpack.c.b16 %v647, %v645
    %v708 = vpack.c.b16 %v650, %v648
    %v709 = vpack.c.b16 %v651, %v649
    %v710 = vpack.c.b16 %v654, %v652
    %v711 = vpack.c.b16 %v655, %v653
    %v712 = vpack.c.b16 %v658, %v656
    %v713 = vpack.c.b16 %v659, %v657
    %v714 = vpack.c.b16 %v662, %v660
    %v715 = vpack.c.b16 %v663, %v661
    %v716 = vpack.c.b16 %v666, %v664
    %v717 = vpack.c.b16 %v667, %v665
    %v718 = vpack.c.b16 %v670, %v668
    %v719 = vpack.c.b16 %v671, %v669
    %v720 = vpack.c.b16 %v674, %v672
    %v721 = vpack.c.b16 %v675, %v673
    %v722 = vpack.c.b16 %v678, %v676
    %v723 = vpack.c.b16 %v679, %v677
    %v724 = vpack.c.b16 %v682, %v680
    %v725 = vpack.c.b16 %v683, %v681
    %v726 = vpack.c.b16 %v686, %v684
    %v727 = vpack.c.b16 %v687, %v685
    %v728 = vpack.c.b16 %v690, %v688
    %v729 = vpack.c.b16 %v691, %v689
    %v730 = vpack.c.b16 %v694, %v692
    %v731 = vpack.c.b16 %v695, %v693
    %v732 = vpack.c.b16 %v698, %v696
    %v733 = vpack.c.b16 %v699, %v697
    %v734 = vpack.c.b16 %v702, %v700
    %v735 = vpack.c.b16 %v703, %v701
    %768 = vmatprep.subr.bf16.mxu0 0
    %769 = vmatpush1.bf16.msra.mxu0 %v592
    %770 = vmatprep.subr.bf16.mxu0 0
    %771 = vmatpush1.bf16.msra.mxu0 %v593
    %772 = vmatprep.subr.bf16.mxu0 0
    %773 = vmatpush1.bf16.msra.mxu0 %v594
    %774 = vmatprep.subr.bf16.mxu0 0
    %775 = vmatpush1.bf16.msra.mxu0 %v595
    %776 = vmatprep.subr.bf16.mxu0 0
    %777 = vmatpush1.bf16.msra.mxu0 %v596
    %778 = vmatprep.subr.bf16.mxu0 0
    %779 = vmatpush1.bf16.msra.mxu0 %v597
    %780 = vmatprep.subr.bf16.mxu0 0
    %781 = vmatpush1.bf16.msra.mxu0 %v598
    %782 = vmatprep.subr.bf16.mxu0 0
    %783 = vmatpush1.bf16.msra.mxu0 %v599
    %784 = vmatprep.subr.bf16.mxu0 0
    %785 = vmatpush1.bf16.msra.mxu0 %v600
    %786 = vmatprep.subr.bf16.mxu0 0
    %787 = vmatpush1.bf16.msra.mxu0 %v601
    %788 = vmatprep.subr.bf16.mxu0 0
    %789 = vmatpush1.bf16.msra.mxu0 %v602
    %790 = vmatprep.subr.bf16.mxu0 0
    %791 = vmatpush1.bf16.msra.mxu0 %v603
    %792 = vmatprep.subr.bf16.mxu0 0
    %793 = vmatpush1.bf16.msra.mxu0 %v604
    %794 = vmatprep.subr.bf16.mxu0 0
    %795 = vmatpush1.bf16.msra.mxu0 %v605
    %796 = vmatprep.subr.bf16.mxu0 0
    %797 = vmatpush1.bf16.msra.mxu0 %v606
    %798 = vmatprep.subr.bf16.mxu0 0
    %799 = vmatpush1.bf16.msra.mxu0 %v607
    %800 = vmatprep.mubr.bf16.mxu0 %v705
    %801 = vmatmul.mubr.bf16.gmra.mrb[0].mxu0 %v704
    %v802 = vpop.f32.mrb[0].mxu0
    %v803 = vadd.f32 0.0, %v802
    %v804 = vpop.f32.mrb[0].mxu0
    %v805 = vpop.f32.mrb[0].mxu0
    %v806 = vadd.f32 0.0, %v805
    %v807 = vpop.f32.mrb[0].mxu0
    %808 = vmatprep.mubr.bf16.mxu0 %v707
    %809 = vmatmul.mubr.bf16.gmra.mrb[0].mxu0 %v706
    %v810 = vpop.f32.mrb[0].mxu0
    %v811 = vadd.f32 0.0, %v810
    %v812 = vpop.f32.mrb[0].mxu0
    %v813 = vpop.f32.mrb[0].mxu0
    %v814 = vadd.f32 0.0, %v813
    %v815 = vpop.f32.mrb[0].mxu0
    %816 = vmatprep.mubr.bf16.mxu0 %v709
    %817 = vmatmul.mubr.bf16.gmra.mrb[0].mxu0 %v708
    %v818 = vpop.f32.mrb[0].mxu0
    %v819 = vadd.f32 0.0, %v818
    %v820 = vpop.f32.mrb[0].mxu0
    %v821 = vpop.f32.mrb[0].mxu0
    %v822 = vadd.f32 0.0, %v821
    %v823 = vpop.f32.mrb[0].mxu0
    %824 = vmatprep.mubr.bf16.mxu0 %v711
    %825 = vmatmul.mubr.bf16.gmra.mrb[0].mxu0 %v710
    %v826 = vpop.f32.mrb[0].mxu0
    %v827 = vadd.f32 0.0, %v826
    %v828 = vpop.f32.mrb[0].mxu0
    %v829 = vpop.f32.mrb[0].mxu0
    %v830 = vadd.f32 0.0, %v829
    %v831 = vpop.f32.mrb[0].mxu0
    %832 = vmatprep.mubr.bf16.mxu0 %v713
    %833 = vmatmul.mubr.bf16.gmra.mrb[0].mxu0 %v712
    %v834 = vpop.f32.mrb[0].mxu0
    %v835 = vadd.f32 0.0, %v834
    %v836 = vpop.f32.mrb[0].mxu0
    %v837 = vpop.f32.mrb[0].mxu0
    %v838 = vadd.f32 0.0, %v837
    %v839 = vpop.f32.mrb[0].mxu0
    %840 = vmatprep.mubr.bf16.mxu0 %v715
    %841 = vmatmul.mubr.bf16.gmra.mrb[0].mxu0 %v714
    %v842 = vpop.f32.mrb[0].mxu0
    %v843 = vadd.f32 0.0, %v842
    %v844 = vpop.f32.mrb[0].mxu0
    %v845 = vpop.f32.mrb[0].mxu0
    %v846 = vadd.f32 0.0, %v845
    %v847 = vpop.f32.mrb[0].mxu0
    %848 = vmatprep.mubr.bf16.mxu0 %v717
    %849 = vmatmul.mubr.bf16.gmra.mrb[0].mxu0 %v716
    %v850 = vpop.f32.mrb[0].mxu0
    %v851 = vadd.f32 0.0, %v850
    %v852 = vpop.f32.mrb[0].mxu0
    %v853 = vpop.f32.mrb[0].mxu0
    %v854 = vadd.f32 0.0, %v853
    %v855 = vpop.f32.mrb[0].mxu0
    %856 = vmatprep.mubr.bf16.mxu0 %v719
    %857 = vmatmul.mubr.bf16.gmra.mrb[0].mxu0 %v718
    %v858 = vpop.f32.mrb[0].mxu0
    %v859 = vadd.f32 0.0, %v858
    %v860 = vpop.f32.mrb[0].mxu0
    %v861 = vpop.f32.mrb[0].mxu0
    %v862 = vadd.f32 0.0, %v861
    %v863 = vpop.f32.mrb[0].mxu0
    %864 = vmatprep.mubr.bf16.mxu0 %v721
    %865 = vmatmul.mubr.bf16.gmra.mrb[0].mxu0 %v720
    %v866 = vpop.f32.mrb[0].mxu0
    %v867 = vadd.f32 0.0, %v866
    %v868 = vpop.f32.mrb[0].mxu0
    %v869 = vpop.f32.mrb[0].mxu0
    %v870 = vadd.f32 0.0, %v869
    %v871 = vpop.f32.mrb[0].mxu0
    %872 = vmatprep.mubr.bf16.mxu0 %v723
    %873 = vmatmul.mubr.bf16.gmra.mrb[0].mxu0 %v722
    %v874 = vpop.f32.mrb[0].mxu0
    %v875 = vadd.f32 0.0, %v874
    %v876 = vpop.f32.mrb[0].mxu0
    %v877 = vpop.f32.mrb[0].mxu0
    %v878 = vadd.f32 0.0, %v877
    %v879 = vpop.f32.mrb[0].mxu0
    %880 = vmatprep.mubr.bf16.mxu0 %v725
    %881 = vmatmul.mubr.bf16.gmra.mrb[0].mxu0 %v724
    %v882 = vpop.f32.mrb[0].mxu0
    %v883 = vadd.f32 0.0, %v882
    %v884 = vpop.f32.mrb[0].mxu0
    %v885 = vpop.f32.mrb[0].mxu0
    %v886 = vadd.f32 0.0, %v885
    %v887 = vpop.f32.mrb[0].mxu0
    %888 = vmatprep.mubr.bf16.mxu0 %v727
    %889 = vmatmul.mubr.bf16.gmra.mrb[0].mxu0 %v726
    %v890 = vpop.f32.mrb[0].mxu0
    %v891 = vadd.f32 0.0, %v890
    %v892 = vpop.f32.mrb[0].mxu0
    %v893 = vpop.f32.mrb[0].mxu0
    %v894 = vadd.f32 0.0, %v893
    %v895 = vpop.f32.mrb[0].mxu0
    %896 = vmatprep.mubr.bf16.mxu0 %v729
    %897 = vmatmul.mubr.bf16.gmra.mrb[0].mxu0 %v728
    %v898 = vpop.f32.mrb[0].mxu0
    %v899 = vadd.f32 0.0, %v898
    %v900 = vpop.f32.mrb[0].mxu0
    %v901 = vpop.f32.mrb[0].mxu0
    %v902 = vadd.f32 0.0, %v901
    %v903 = vpop.f32.mrb[0].mxu0
    %904 = vmatprep.mubr.bf16.mxu0 %v731
    %905 = vmatmul.mubr.bf16.gmra.mrb[0].mxu0 %v730
    %v906 = vpop.f32.mrb[0].mxu0
    %v907 = vadd.f32 0.0, %v906
    %v908 = vpop.f32.mrb[0].mxu0
    %v909 = vpop.f32.mrb[0].mxu0
    %v910 = vadd.f32 0.0, %v909
    %v911 = vpop.f32.mrb[0].mxu0
    %912 = vmatprep.mubr.bf16.mxu0 %v733
    %913 = vmatmul.mubr.bf16.gmra.mrb[0].mxu0 %v732
    %v914 = vpop.f32.mrb[0].mxu0
    %v915 = vadd.f32 0.0, %v914
    %v916 = vpop.f32.mrb[0].mxu0
    %v917 = vpop.f32.mrb[0].mxu0
    %v918 = vadd.f32 0.0, %v917
    %v919 = vpop.f32.mrb[0].mxu0
    %920 = vmatprep.mubr.bf16.mxu0 %v735
    %921 = vmatmul.mubr.bf16.gmra.mrb[0].mxu0 %v734
    %v922 = vpop.f32.mrb[0].mxu0
    %v923 = vadd.f32 0.0, %v922
    %v924 = vpop.f32.mrb[0].mxu0
    %v925 = vpop.f32.mrb[0].mxu0
    %v926 = vadd.f32 0.0, %v925
    %v927 = vpop.f32.mrb[0].mxu0
    %928 = vdwg.mxu0
    %v961 = vunpack.c.l.b16 %v512
    %v962 = vunpack.c.h.b16 %v512
    %v963 = vunpack.c.l.b16 %v513
    %v964 = vunpack.c.h.b16 %v513
    %v965 = vunpack.c.l.b16 %v514
    %v966 = vunpack.c.h.b16 %v514
    %v967 = vunpack.c.l.b16 %v515
    %v968 = vunpack.c.h.b16 %v515
    %v969 = vunpack.c.l.b16 %v516
    %v970 = vunpack.c.h.b16 %v516
    %v971 = vunpack.c.l.b16 %v517
    %v972 = vunpack.c.h.b16 %v517
    %v973 = vunpack.c.l.b16 %v518
    %v974 = vunpack.c.h.b16 %v518
    %v975 = vunpack.c.l.b16 %v519
    %v976 = vunpack.c.h.b16 %v519
    %v977 = vunpack.c.l.b16 %v520
    %v978 = vunpack.c.h.b16 %v520
    %v979 = vunpack.c.l.b16 %v521
    %v980 = vunpack.c.h.b16 %v521
    %v981 = vunpack.c.l.b16 %v522
    %v982 = vunpack.c.h.b16 %v522
    %v983 = vunpack.c.l.b16 %v523
    %v984 = vunpack.c.h.b16 %v523
    %v985 = vunpack.c.l.b16 %v524
    %v986 = vunpack.c.h.b16 %v524
    %v987 = vunpack.c.l.b16 %v525
    %v988 = vunpack.c.h.b16 %v525
    %v989 = vunpack.c.l.b16 %v526
    %v990 = vunpack.c.h.b16 %v526
    %v991 = vunpack.c.l.b16 %v527
    %v992 = vunpack.c.h.b16 %v527
    %v993 = vunpack.c.l.b16 %v528
    %v994 = vunpack.c.h.b16 %v528
    %v995 = vunpack.c.l.b16 %v529
    %v996 = vunpack.c.h.b16 %v529
    %v997 = vunpack.c.l.b16 %v530
    %v998 = vunpack.c.h.b16 %v530
    %v999 = vunpack.c.l.b16 %v531
    %v1000 = vunpack.c.h.b16 %v531
    %v1001 = vunpack.c.l.b16 %v532
    %v1002 = vunpack.c.h.b16 %v532
    %v1003 = vunpack.c.l.b16 %v533
    %v1004 = vunpack.c.h.b16 %v533
    %v1005 = vunpack.c.l.b16 %v534
    %v1006 = vunpack.c.h.b16 %v534
    %v1007 = vunpack.c.l.b16 %v535
    %v1008 = vunpack.c.h.b16 %v535
    %v1009 = vunpack.c.l.b16 %v536
    %v1010 = vunpack.c.h.b16 %v536
    %v1011 = vunpack.c.l.b16 %v537
    %v1012 = vunpack.c.h.b16 %v537
    %v1013 = vunpack.c.l.b16 %v538
    %v1014 = vunpack.c.h.b16 %v538
    %v1015 = vunpack.c.l.b16 %v539
    %v1016 = vunpack.c.h.b16 %v539
    %v1017 = vunpack.c.l.b16 %v540
    %v1018 = vunpack.c.h.b16 %v540
    %v1019 = vunpack.c.l.b16 %v541
    %v1020 = vunpack.c.h.b16 %v541
    %v1021 = vunpack.c.l.b16 %v542
    %v1022 = vunpack.c.h.b16 %v542
    %v1023 = vunpack.c.l.b16 %v543
    %v1024 = vunpack.c.h.b16 %v543
    %v1025 = vpack.c.b16 %v963, %v961
    %v1026 = vpack.c.b16 %v964, %v962
    %v1027 = vpack.c.b16 %v967, %v965
    %v1028 = vpack.c.b16 %v968, %v966
    %v1029 = vpack.c.b16 %v971, %v969
    %v1030 = vpack.c.b16 %v972, %v970
    %v1031 = vpack.c.b16 %v975, %v973
    %v1032 = vpack.c.b16 %v976, %v974
    %v1033 = vpack.c.b16 %v979, %v977
    %v1034 = vpack.c.b16 %v980, %v978
    %v1035 = vpack.c.b16 %v983, %v981
    %v1036 = vpack.c.b16 %v984, %v982
    %v1037 = vpack.c.b16 %v987, %v985
    %v1038 = vpack.c.b16 %v988, %v986
    %v1039 = vpack.c.b16 %v991, %v989
    %v1040 = vpack.c.b16 %v992, %v990
    %v1041 = vpack.c.b16 %v995, %v993
    %v1042 = vpack.c.b16 %v996, %v994
    %v1043 = vpack.c.b16 %v999, %v997
    %v1044 = vpack.c.b16 %v1000, %v998
    %v1045 = vpack.c.b16 %v1003, %v1001
    %v1046 = vpack.c.b16 %v1004, %v1002
    %v1047 = vpack.c.b16 %v1007, %v1005
    %v1048 = vpack.c.b16 %v1008, %v1006
    %v1049 = vpack.c.b16 %v1011, %v1009
    %v1050 = vpack.c.b16 %v1012, %v1010
    %v1051 = vpack.c.b16 %v1015, %v1013
    %v1052 = vpack.c.b16 %v1016, %v1014
    %v1053 = vpack.c.b16 %v1019, %v1017
    %v1054 = vpack.c.b16 %v1020, %v1018
    %v1055 = vpack.c.b16 %v1023, %v1021
    %v1056 = vpack.c.b16 %v1024, %v1022
    %1089 = vmatprep.subr.bf16.mxu0 0
    %1090 = vmatpush1.bf16.msra.mxu0 %v544
    %1091 = vmatprep.subr.bf16.mxu0 0
    %1092 = vmatpush1.bf16.msra.mxu0 %v545
    %1093 = vmatprep.subr.bf16.mxu0 0
    %1094 = vmatpush1.bf16.msra.mxu0 %v546
    %1095 = vmatprep.subr.bf16.mxu0 0
    %1096 = vmatpush1.bf16.msra.mxu0 %v547
    %1097 = vmatprep.subr.bf16.mxu0 0
    %1098 = vmatpush1.bf16.msra.mxu0 %v548
    %1099 = vmatprep.subr.bf16.mxu0 0
    %1100 = vmatpush1.bf16.msra.mxu0 %v549
    %1101 = vmatprep.subr.bf16.mxu0 0
    %1102 = vmatpush1.bf16.msra.mxu0 %v550
    %1103 = vmatprep.subr.bf16.mxu0 0
    %1104 = vmatpush1.bf16.msra.mxu0 %v551
    %1105 = vmatprep.subr.bf16.mxu0 0
    %1106 = vmatpush1.bf16.msra.mxu0 %v552
    %1107 = vmatprep.subr.bf16.mxu0 0
    %1108 = vmatpush1.bf16.msra.mxu0 %v553
    %1109 = vmatprep.subr.bf16.mxu0 0
    %1110 = vmatpush1.bf16.msra.mxu0 %v554
    %1111 = vmatprep.subr.bf16.mxu0 0
    %1112 = vmatpush1.bf16.msra.mxu0 %v555
    %1113 = vmatprep.subr.bf16.mxu0 0
    %1114 = vmatpush1.bf16.msra.mxu0 %v556
    %1115 = vmatprep.subr.bf16.mxu0 0
    %1116 = vmatpush1.bf16.msra.mxu0 %v557
    %1117 = vmatprep.subr.bf16.mxu0 0
    %1118 = vmatpush1.bf16.msra.mxu0 %v558
    %1119 = vmatprep.subr.bf16.mxu0 0
    %1120 = vmatpush1.bf16.msra.mxu0 %v559
    %1121 = vmatprep.mubr.bf16.mxu0 %v1026
    %1122 = vmatmul.mubr.bf16.gmra.mrb[0].mxu0 %v1025
    %v1123 = vpop.f32.mrb[0].mxu0
    %v1124 = vadd.f32 %v803, %v1123
    %v1125 = vpop.f32.mrb[0].mxu0
    %v1126 = vpop.f32.mrb[0].mxu0
    %v1127 = vadd.f32 %v806, %v1126
    %v1128 = vpop.f32.mrb[0].mxu0
    %1129 = vmatprep.mubr.bf16.mxu0 %v1028
    %1130 = vmatmul.mubr.bf16.gmra.mrb[0].mxu0 %v1027
    %v1131 = vpop.f32.mrb[0].mxu0
    %v1132 = vadd.f32 %v811, %v1131
    %v1133 = vpop.f32.mrb[0].mxu0
    %v1134 = vpop.f32.mrb[0].mxu0
    %v1135 = vadd.f32 %v814, %v1134
    %v1136 = vpop.f32.mrb[0].mxu0
    %1137 = vmatprep.mubr.bf16.mxu0 %v1030
    %1138 = vmatmul.mubr.bf16.gmra.mrb[0].mxu0 %v1029
    %v1139 = vpop.f32.mrb[0].mxu0
    %v1140 = vadd.f32 %v819, %v1139
    %v1141 = vpop.f32.mrb[0].mxu0
    %v1142 = vpop.f32.mrb[0].mxu0
    %v1143 = vadd.f32 %v822, %v1142
    %v1144 = vpop.f32.mrb[0].mxu0
    %1145 = vmatprep.mubr.bf16.mxu0 %v1032
    %1146 = vmatmul.mubr.bf16.gmra.mrb[0].mxu0 %v1031
    %v1147 = vpop.f32.mrb[0].mxu0
    %v1148 = vadd.f32 %v827, %v1147
    %v1149 = vpop.f32.mrb[0].mxu0
    %v1150 = vpop.f32.mrb[0].mxu0
    %v1151 = vadd.f32 %v830, %v1150
    %v1152 = vpop.f32.mrb[0].mxu0
    %1153 = vmatprep.mubr.bf16.mxu0 %v1034
    %1154 = vmatmul.mubr.bf16.gmra.mrb[0].mxu0 %v1033
    %v1155 = vpop.f32.mrb[0].mxu0
    %v1156 = vadd.f32 %v835, %v1155
    %v1157 = vpop.f32.mrb[0].mxu0
    %v1158 = vpop.f32.mrb[0].mxu0
    %v1159 = vadd.f32 %v838, %v1158
    %v1160 = vpop.f32.mrb[0].mxu0
    %1161 = vmatprep.mubr.bf16.mxu0 %v1036
    %1162 = vmatmul.mubr.bf16.gmra.mrb[0].mxu0 %v1035
    %v1163 = vpop.f32.mrb[0].mxu0
    %v1164 = vadd.f32 %v843, %v1163
    %v1165 = vpop.f32.mrb[0].mxu0
    %v1166 = vpop.f32.mrb[0].mxu0
    %v1167 = vadd.f32 %v846, %v1166
    %v1168 = vpop.f32.mrb[0].mxu0
    %1169 = vmatprep.mubr.bf16.mxu0 %v1038
    %1170 = vmatmul.mubr.bf16.gmra.mrb[0].mxu0 %v1037
    %v1171 = vpop.f32.mrb[0].mxu0
    %v1172 = vadd.f32 %v851, %v1171
    %v1173 = vpop.f32.mrb[0].mxu0
    %v1174 = vpop.f32.mrb[0].mxu0
    %v1175 = vadd.f32 %v854, %v1174
    %v1176 = vpop.f32.mrb[0].mxu0
    %1177 = vmatprep.mubr.bf16.mxu0 %v1040
    %1178 = vmatmul.mubr.bf16.gmra.mrb[0].mxu0 %v1039
    %v1179 = vpop.f32.mrb[0].mxu0
    %v1180 = vadd.f32 %v859, %v1179
    %v1181 = vpop.f32.mrb[0].mxu0
    %v1182 = vpop.f32.mrb[0].mxu0
    %v1183 = vadd.f32 %v862, %v1182
    %v1184 = vpop.f32.mrb[0].mxu0
    %1185 = vmatprep.mubr.bf16.mxu0 %v1042
    %1186 = vmatmul.mubr.bf16.gmra.mrb[0].mxu0 %v1041
    %v1187 = vpop.f32.mrb[0].mxu0
    %v1188 = vadd.f32 %v867, %v1187
    %v1189 = vpop.f32.mrb[0].mxu0
    %v1190 = vpop.f32.mrb[0].mxu0
    %v1191 = vadd.f32 %v870, %v1190
    %v1192 = vpop.f32.mrb[0].mxu0
    %1193 = vmatprep.mubr.bf16.mxu0 %v1044
    %1194 = vmatmul.mubr.bf16.gmra.mrb[0].mxu0 %v1043
    %v1195 = vpop.f32.mrb[0].mxu0
    %v1196 = vadd.f32 %v875, %v1195
    %v1197 = vpop.f32.mrb[0].mxu0
    %v1198 = vpop.f32.mrb[0].mxu0
    %v1199 = vadd.f32 %v878, %v1198
    %v1200 = vpop.f32.mrb[0].mxu0
    %1201 = vmatprep.mubr.bf16.mxu0 %v1046
    %1202 = vmatmul.mubr.bf16.gmra.mrb[0].mxu0 %v1045
    %v1203 = vpop.f32.mrb[0].mxu0
    %v1204 = vadd.f32 %v883, %v1203
    %v1205 = vpop.f32.mrb[0].mxu0
    %v1206 = vpop.f32.mrb[0].mxu0
    %v1207 = vadd.f32 %v886, %v1206
    %v1208 = vpop.f32.mrb[0].mxu0
    %1209 = vmatprep.mubr.bf16.mxu0 %v1048
    %1210 = vmatmul.mubr.bf16.gmra.mrb[0].mxu0 %v1047
    %v1211 = vpop.f32.mrb[0].mxu0
    %v1212 = vadd.f32 %v891, %v1211
    %v1213 = vpop.f32.mrb[0].mxu0
    %v1214 = vpop.f32.mrb[0].mxu0
    %v1215 = vadd.f32 %v894, %v1214
    %v1216 = vpop.f32.mrb[0].mxu0
    %1217 = vmatprep.mubr.bf16.mxu0 %v1050
    %1218 = vmatmul.mubr.bf16.gmra.mrb[0].mxu0 %v1049
    %v1219 = vpop.f32.mrb[0].mxu0
    %v1220 = vadd.f32 %v899, %v1219
    %v1221 = vpop.f32.mrb[0].mxu0
    %v1222 = vpop.f32.mrb[0].mxu0
    %v1223 = vadd.f32 %v902, %v1222
    %v1224 = vpop.f32.mrb[0].mxu0
    %1225 = vmatprep.mubr.bf16.mxu0 %v1052
    %1226 = vmatmul.mubr.bf16.gmra.mrb[0].mxu0 %v1051
    %v1227 = vpop.f32.mrb[0].mxu0
    %v1228 = vadd.f32 %v907, %v1227
    %v1229 = vpop.f32.mrb[0].mxu0
    %v1230 = vpop.f32.mrb[0].mxu0
    %v1231 = vadd.f32 %v910, %v1230
    %v1232 = vpop.f32.mrb[0].mxu0
    %1233 = vmatprep.mubr.bf16.mxu0 %v1054
    %1234 = vmatmul.mubr.bf16.gmra.mrb[0].mxu0 %v1053
    %v1235 = vpop.f32.mrb[0].mxu0
    %v1236 = vadd.f32 %v915, %v1235
    %v1237 = vpop.f32.mrb[0].mxu0
    %v1238 = vpop.f32.mrb[0].mxu0
    %v1239 = vadd.f32 %v918, %v1238
    %v1240 = vpop.f32.mrb[0].mxu0
    %1241 = vmatprep.mubr.bf16.mxu0 %v1056
    %1242 = vmatmul.mubr.bf16.gmra.mrb[0].mxu0 %v1055
    %v1243 = vpop.f32.mrb[0].mxu0
    %v1244 = vadd.f32 %v923, %v1243
    %v1245 = vpop.f32.mrb[0].mxu0
    %v1246 = vpop.f32.mrb[0].mxu0
    %v1247 = vadd.f32 %v926, %v1246
    %v1248 = vpop.f32.mrb[0].mxu0
    %1249 = vdwg.mxu0
    %v1250 = vld [vmem:[%s3] sm:$0xf]
    %v1251 = vld [vmem:[%s3 + $0x4] sm:$0xf]
    %v1252 = vld [vmem:[%s3 + $0x8] sm:$0xf]
    %v1253 = vld [vmem:[%s3 + $0xc] sm:$0xf]
    %v1254 = vld [vmem:[%s3 + $0x10] sm:$0xf]
    %v1255 = vld [vmem:[%s3 + $0x14] sm:$0xf]
    %v1256 = vld [vmem:[%s3 + $0x18] sm:$0xf]
    %v1257 = vld [vmem:[%s3 + $0x1c] sm:$0xf]
    %v1258 = vld [vmem:[%s3 + $0x20] sm:$0xf]
    %v1259 = vld [vmem:[%s3 + $0x24] sm:$0xf]
    %v1260 = vld [vmem:[%s3 + $0x28] sm:$0xf]
    %v1261 = vld [vmem:[%s3 + $0x2c] sm:$0xf]
    %v1262 = vld [vmem:[%s3 + $0x30] sm:$0xf]
    %v1263 = vld [vmem:[%s3 + $0x34] sm:$0xf]
    %v1264 = vld [vmem:[%s3 + $0x38] sm:$0xf]
    %v1265 = vld [vmem:[%s3 + $0x3c] sm:$0xf]
    %v1266 = vld [vmem:[%s3 + $0x40] sm:$0xf]
    %v1267 = vld [vmem:[%s3 + $0x44] sm:$0xf]
    %v1268 = vld [vmem:[%s3 + $0x48] sm:$0xf]
    %v1269 = vld [vmem:[%s3 + $0x4c] sm:$0xf]
    %v1270 = vld [vmem:[%s3 + $0x50] sm:$0xf]
    %v1271 = vld [vmem:[%s3 + $0x54] sm:$0xf]
    %v1272 = vld [vmem:[%s3 + $0x58] sm:$0xf]
    %v1273 = vld [vmem:[%s3 + $0x5c] sm:$0xf]
    %v1274 = vld [vmem:[%s3 + $0x60] sm:$0xf]
    %v1275 = vld [vmem:[%s3 + $0x64] sm:$0xf]
    %v1276 = vld [vmem:[%s3 + $0x68] sm:$0xf]
    %v1277 = vld [vmem:[%s3 + $0x6c] sm:$0xf]
    %v1278 = vld [vmem:[%s3 + $0x70] sm:$0xf]
    %v1279 = vld [vmem:[%s3 + $0x74] sm:$0xf]
    %v1280 = vld [vmem:[%s3 + $0x78] sm:$0xf]
    %v1281 = vld [vmem:[%s3 + $0x7c] sm:$0xf]
    %v1282 = vunpack.c.l.bf16 %v1250
    %v1283 = vunpack.c.l.bf16 %v1251
    %v1284 = vunpack.c.l.bf16 %v1252
    %v1285 = vunpack.c.l.bf16 %v1253
    %v1286 = vunpack.c.l.bf16 %v1254
    %v1287 = vunpack.c.l.bf16 %v1255
    %v1288 = vunpack.c.l.bf16 %v1256
    %v1289 = vunpack.c.l.bf16 %v1257
    %v1290 = vunpack.c.l.bf16 %v1258
    %v1291 = vunpack.c.l.bf16 %v1259
    %v1292 = vunpack.c.l.bf16 %v1260
    %v1293 = vunpack.c.l.bf16 %v1261
    %v1294 = vunpack.c.l.bf16 %v1262
    %v1295 = vunpack.c.l.bf16 %v1263
    %v1296 = vunpack.c.l.bf16 %v1264
    %v1297 = vunpack.c.l.bf16 %v1265
    %v1298 = vunpack.c.l.bf16 %v1266
    %v1299 = vunpack.c.l.bf16 %v1267
    %v1300 = vunpack.c.l.bf16 %v1268
    %v1301 = vunpack.c.l.bf16 %v1269
    %v1302 = vunpack.c.l.bf16 %v1270
    %v1303 = vunpack.c.l.bf16 %v1271
    %v1304 = vunpack.c.l.bf16 %v1272
    %v1305 = vunpack.c.l.bf16 %v1273
    %v1306 = vunpack.c.l.bf16 %v1274
    %v1307 = vunpack.c.l.bf16 %v1275
    %v1308 = vunpack.c.l.bf16 %v1276
    %v1309 = vunpack.c.l.bf16 %v1277
    %v1310 = vunpack.c.l.bf16 %v1278
    %v1311 = vunpack.c.l.bf16 %v1279
    %v1312 = vunpack.c.l.bf16 %v1280
    %v1313 = vunpack.c.l.bf16 %v1281
    %v1314 = vadd.f32 %v1124, %v1282
    %v1315 = vadd.f32 %v1127, %v1283
    %v1316 = vadd.f32 %v1132, %v1284
    %v1317 = vadd.f32 %v1135, %v1285
    %v1318 = vadd.f32 %v1140, %v1286
    %v1319 = vadd.f32 %v1143, %v1287
    %v1320 = vadd.f32 %v1148, %v1288
    %v1321 = vadd.f32 %v1151, %v1289
    %v1322 = vadd.f32 %v1156, %v1290
    %v1323 = vadd.f32 %v1159, %v1291
    %v1324 = vadd.f32 %v1164, %v1292
    %v1325 = vadd.f32 %v1167, %v1293
    %v1326 = vadd.f32 %v1172, %v1294
    %v1327 = vadd.f32 %v1175, %v1295
    %v1328 = vadd.f32 %v1180, %v1296
    %v1329 = vadd.f32 %v1183, %v1297
    %v1330 = vadd.f32 %v1188, %v1298
    %v1331 = vadd.f32 %v1191, %v1299
    %v1332 = vadd.f32 %v1196, %v1300
    %v1333 = vadd.f32 %v1199, %v1301
    %v1334 = vadd.f32 %v1204, %v1302
    %v1335 = vadd.f32 %v1207, %v1303
    %v1336 = vadd.f32 %v1212, %v1304
    %v1337 = vadd.f32 %v1215, %v1305
    %v1338 = vadd.f32 %v1220, %v1306
    %v1339 = vadd.f32 %v1223, %v1307
    %v1340 = vadd.f32 %v1228, %v1308
    %v1341 = vadd.f32 %v1231, %v1309
    %v1342 = vadd.f32 %v1236, %v1310
    %v1343 = vadd.f32 %v1239, %v1311
    %v1344 = vadd.f32 %v1244, %v1312
    %v1345 = vadd.f32 %v1247, %v1313
    %v1346 = vpack.c.bf16 %v1315, %v1314
    %v1347 = vpack.c.bf16 %v1317, %v1316
    %v1348 = vpack.c.bf16 %v1319, %v1318
    %v1349 = vpack.c.bf16 %v1321, %v1320
    %v1350 = vpack.c.bf16 %v1323, %v1322
    %v1351 = vpack.c.bf16 %v1325, %v1324
    %v1352 = vpack.c.bf16 %v1327, %v1326
    %v1353 = vpack.c.bf16 %v1329, %v1328
    %v1354 = vpack.c.bf16 %v1331, %v1330
    %v1355 = vpack.c.bf16 %v1333, %v1332
    %v1356 = vpack.c.bf16 %v1335, %v1334
    %v1357 = vpack.c.bf16 %v1337, %v1336
    %v1358 = vpack.c.bf16 %v1339, %v1338
    %v1359 = vpack.c.bf16 %v1341, %v1340
    %v1360 = vpack.c.bf16 %v1343, %v1342
    %v1361 = vpack.c.bf16 %v1345, %v1344
    %v1362 = vld [vmem:[#allocation8] sm:$0xff]
    %v1363 = vld [vmem:[#allocation8 + $0x8] sm:$0xff]
    %v1364 = vld [vmem:[#allocation8 + $0x10] sm:$0xff]
    %v1365 = vld [vmem:[#allocation8 + $0x18] sm:$0xff]
    %v1366 = vld [vmem:[#allocation8 + $0x20] sm:$0xff]
    %v1367 = vld [vmem:[#allocation8 + $0x28] sm:$0xff]
    %v1368 = vld [vmem:[#allocation8 + $0x30] sm:$0xff]
    %v1369 = vld [vmem:[#allocation8 + $0x38] sm:$0xff]
    %v1370 = vld [vmem:[#allocation8 + $0x40] sm:$0xff]
    %v1371 = vld [vmem:[#allocation8 + $0x48] sm:$0xff]
    %v1372 = vld [vmem:[#allocation8 + $0x50] sm:$0xff]
    %v1373 = vld [vmem:[#allocation8 + $0x58] sm:$0xff]
    %v1374 = vld [vmem:[#allocation8 + $0x60] sm:$0xff]
    %v1375 = vld [vmem:[#allocation8 + $0x68] sm:$0xff]
    %v1376 = vld [vmem:[#allocation8 + $0x70] sm:$0xff]
    %v1377 = vld [vmem:[#allocation8 + $0x78] sm:$0xff]
    %v1378 = vld [vmem:[#allocation8 + $0x80] sm:$0xff]
    %v1379 = vld [vmem:[#allocation8 + $0x88] sm:$0xff]
    %v1380 = vld [vmem:[#allocation8 + $0x90] sm:$0xff]
    %v1381 = vld [vmem:[#allocation8 + $0x98] sm:$0xff]
    %v1382 = vld [vmem:[#allocation8 + $0xa0] sm:$0xff]
    %v1383 = vld [vmem:[#allocation8 + $0xa8] sm:$0xff]
    %v1384 = vld [vmem:[#allocation8 + $0xb0] sm:$0xff]
    %v1385 = vld [vmem:[#allocation8 + $0xb8] sm:$0xff]
    %v1386 = vld [vmem:[#allocation8 + $0xc0] sm:$0xff]
    %v1387 = vld [vmem:[#allocation8 + $0xc8] sm:$0xff]
    %v1388 = vld [vmem:[#allocation8 + $0xd0] sm:$0xff]
    %v1389 = vld [vmem:[#allocation8 + $0xd8] sm:$0xff]
    %v1390 = vld [vmem:[#allocation8 + $0xe0] sm:$0xff]
    %v1391 = vld [vmem:[#allocation8 + $0xe8] sm:$0xff]
    %v1392 = vld [vmem:[#allocation8 + $0xf0] sm:$0xff]
    %v1393 = vld [vmem:[#allocation8 + $0xf8] sm:$0xff]
    %v1426 = vunpack.c.l.b16 %v1362
    %v1427 = vunpack.c.h.b16 %v1362
    %v1428 = vunpack.c.l.b16 %v1363
    %v1429 = vunpack.c.h.b16 %v1363
    %v1430 = vunpack.c.l.b16 %v1364
    %v1431 = vunpack.c.h.b16 %v1364
    %v1432 = vunpack.c.l.b16 %v1365
    %v1433 = vunpack.c.h.b16 %v1365
    %v1434 = vunpack.c.l.b16 %v1366
    %v1435 = vunpack.c.h.b16 %v1366
    %v1436 = vunpack.c.l.b16 %v1367
    %v1437 = vunpack.c.h.b16 %v1367
    %v1438 = vunpack.c.l.b16 %v1368
    %v1439 = vunpack.c.h.b16 %v1368
    %v1440 = vunpack.c.l.b16 %v1369
    %v1441 = vunpack.c.h.b16 %v1369
    %v1442 = vunpack.c.l.b16 %v1370
    %v1443 = vunpack.c.h.b16 %v1370
    %v1444 = vunpack.c.l.b16 %v1371
    %v1445 = vunpack.c.h.b16 %v1371
    %v1446 = vunpack.c.l.b16 %v1372
    %v1447 = vunpack.c.h.b16 %v1372
    %v1448 = vunpack.c.l.b16 %v1373
    %v1449 = vunpack.c.h.b16 %v1373
    %v1450 = vunpack.c.l.b16 %v1374
    %v1451 = vunpack.c.h.b16 %v1374
    %v1452 = vunpack.c.l.b16 %v1375
    %v1453 = vunpack.c.h.b16 %v1375
    %v1454 = vunpack.c.l.b16 %v1376
    %v1455 = vunpack.c.h.b16 %v1376
    %v1456 = vunpack.c.l.b16 %v1377
    %v1457 = vunpack.c.h.b16 %v1377
    %v1458 = vunpack.c.l.b16 %v1378
    %v1459 = vunpack.c.h.b16 %v1378
    %v1460 = vunpack.c.l.b16 %v1379
    %v1461 = vunpack.c.h.b16 %v1379
    %v1462 = vunpack.c.l.b16 %v1380
    %v1463 = vunpack.c.h.b16 %v1380
    %v1464 = vunpack.c.l.b16 %v1381
    %v1465 = vunpack.c.h.b16 %v1381
    %v1466 = vunpack.c.l.b16 %v1382
    %v1467 = vunpack.c.h.b16 %v1382
    %v1468 = vunpack.c.l.b16 %v1383
    %v1469 = vunpack.c.h.b16 %v1383
    %v1470 = vunpack.c.l.b16 %v1384
    %v1471 = vunpack.c.h.b16 %v1384
    %v1472 = vunpack.c.l.b16 %v1385
    %v1473 = vunpack.c.h.b16 %v1385
    %v1474 = vunpack.c.l.b16 %v1386
    %v1475 = vunpack.c.h.b16 %v1386
    %v1476 = vunpack.c.l.b16 %v1387
    %v1477 = vunpack.c.h.b16 %v1387
    %v1478 = vunpack.c.l.b16 %v1388
    %v1479 = vunpack.c.h.b16 %v1388
    %v1480 = vunpack.c.l.b16 %v1389
    %v1481 = vunpack.c.h.b16 %v1389
    %v1482 = vunpack.c.l.b16 %v1390
    %v1483 = vunpack.c.h.b16 %v1390
    %v1484 = vunpack.c.l.b16 %v1391
    %v1485 = vunpack.c.h.b16 %v1391
    %v1486 = vunpack.c.l.b16 %v1392
    %v1487 = vunpack.c.h.b16 %v1392
    %v1488 = vunpack.c.l.b16 %v1393
    %v1489 = vunpack.c.h.b16 %v1393
    %v1490 = vpack.c.b16 %v1428, %v1426
    %v1491 = vpack.c.b16 %v1429, %v1427
    %v1492 = vpack.c.b16 %v1432, %v1430
    %v1493 = vpack.c.b16 %v1433, %v1431
    %v1494 = vpack.c.b16 %v1436, %v1434
    %v1495 = vpack.c.b16 %v1437, %v1435
    %v1496 = vpack.c.b16 %v1440, %v1438
    %v1497 = vpack.c.b16 %v1441, %v1439
    %v1498 = vpack.c.b16 %v1444, %v1442
    %v1499 = vpack.c.b16 %v1445, %v1443
    %v1500 = vpack.c.b16 %v1448, %v1446
    %v1501 = vpack.c.b16 %v1449, %v1447
    %v1502 = vpack.c.b16 %v1452, %v1450
    %v1503 = vpack.c.b16 %v1453, %v1451
    %v1504 = vpack.c.b16 %v1456, %v1454
    %v1505 = vpack.c.b16 %v1457, %v1455
    %v1506 = vpack.c.b16 %v1460, %v1458
    %v1507 = vpack.c.b16 %v1461, %v1459
    %v1508 = vpack.c.b16 %v1464, %v1462
    %v1509 = vpack.c.b16 %v1465, %v1463
    %v1510 = vpack.c.b16 %v1468, %v1466
    %v1511 = vpack.c.b16 %v1469, %v1467
    %v1512 = vpack.c.b16 %v1472, %v1470
    %v1513 = vpack.c.b16 %v1473, %v1471
    %v1514 = vpack.c.b16 %v1476, %v1474
    %v1515 = vpack.c.b16 %v1477, %v1475
    %v1516 = vpack.c.b16 %v1480, %v1478
    %v1517 = vpack.c.b16 %v1481, %v1479
    %v1518 = vpack.c.b16 %v1484, %v1482
    %v1519 = vpack.c.b16 %v1485, %v1483
    %v1520 = vpack.c.b16 %v1488, %v1486
    %v1521 = vpack.c.b16 %v1489, %v1487
    %1554 = vmatprep.subr.bf16.mxu0 0
    %1555 = vmatpush1.bf16.msra.mxu0 %v1346
    %1556 = vmatprep.subr.bf16.mxu0 0
    %1557 = vmatpush1.bf16.msra.mxu0 %v1347
    %1558 = vmatprep.subr.bf16.mxu0 0
    %1559 = vmatpush1.bf16.msra.mxu0 %v1348
    %1560 = vmatprep.subr.bf16.mxu0 0
    %1561 = vmatpush1.bf16.msra.mxu0 %v1349
    %1562 = vmatprep.subr.bf16.mxu0 0
    %1563 = vmatpush1.bf16.msra.mxu0 %v1350
    %1564 = vmatprep.subr.bf16.mxu0 0
    %1565 = vmatpush1.bf16.msra.mxu0 %v1351
    %1566 = vmatprep.subr.bf16.mxu0 0
    %1567 = vmatpush1.bf16.msra.mxu0 %v1352
    %1568 = vmatprep.subr.bf16.mxu0 0
    %1569 = vmatpush1.bf16.msra.mxu0 %v1353
    %1570 = vmatprep.subr.bf16.mxu0 0
    %1571 = vmatpush1.bf16.msra.mxu0 %v1354
    %1572 = vmatprep.subr.bf16.mxu0 0
    %1573 = vmatpush1.bf16.msra.mxu0 %v1355
    %1574 = vmatprep.subr.bf16.mxu0 0
    %1575 = vmatpush1.bf16.msra.mxu0 %v1356
    %1576 = vmatprep.subr.bf16.mxu0 0
    %1577 = vmatpush1.bf16.msra.mxu0 %v1357
    %1578 = vmatprep.subr.bf16.mxu0 0
    %1579 = vmatpush1.bf16.msra.mxu0 %v1358
    %1580 = vmatprep.subr.bf16.mxu0 0
    %1581 = vmatpush1.bf16.msra.mxu0 %v1359
    %1582 = vmatprep.subr.bf16.mxu0 0
    %1583 = vmatpush1.bf16.msra.mxu0 %v1360
    %1584 = vmatprep.subr.bf16.mxu0 0
    %1585 = vmatpush1.bf16.msra.mxu0 %v1361
    %1586 = vmatprep.mubr.bf16.mxu0 %v1491
    %1587 = vmatmul.mubr.bf16.gmra.mrb[0].mxu0 %v1490
    %v1588 = vpop.f32.mrb[0].mxu0
    %v1589 = vadd.f32 0.0, %v1588
    %v1590 = vpop.f32.mrb[0].mxu0
    %v1591 = vpop.f32.mrb[0].mxu0
    %v1592 = vadd.f32 0.0, %v1591
    %v1593 = vpop.f32.mrb[0].mxu0
    %1594 = vmatprep.mubr.bf16.mxu0 %v1493
    %1595 = vmatmul.mubr.bf16.gmra.mrb[0].mxu0 %v1492
    %v1596 = vpop.f32.mrb[0].mxu0
    %v1597 = vadd.f32 0.0, %v1596
    %v1598 = vpop.f32.mrb[0].mxu0
    %v1599 = vpop.f32.mrb[0].mxu0
    %v1600 = vadd.f32 0.0, %v1599
    %v1601 = vpop.f32.mrb[0].mxu0
    %1602 = vmatprep.mubr.bf16.mxu0 %v1495
    %1603 = vmatmul.mubr.bf16.gmra.mrb[0].mxu0 %v1494
    %v1604 = vpop.f32.mrb[0].mxu0
    %v1605 = vadd.f32 0.0, %v1604
    %v1606 = vpop.f32.mrb[0].mxu0
    %v1607 = vpop.f32.mrb[0].mxu0
    %v1608 = vadd.f32 0.0, %v1607
    %v1609 = vpop.f32.mrb[0].mxu0
    %1610 = vmatprep.mubr.bf16.mxu0 %v1497
    %1611 = vmatmul.mubr.bf16.gmra.mrb[0].mxu0 %v1496
    %v1612 = vpop.f32.mrb[0].mxu0
    %v1613 = vadd.f32 0.0, %v1612
    %v1614 = vpop.f32.mrb[0].mxu0
    %v1615 = vpop.f32.mrb[0].mxu0
    %v1616 = vadd.f32 0.0, %v1615
    %v1617 = vpop.f32.mrb[0].mxu0
    %1618 = vmatprep.mubr.bf16.mxu0 %v1499
    %1619 = vmatmul.mubr.bf16.gmra.mrb[0].mxu0 %v1498
    %v1620 = vpop.f32.mrb[0].mxu0
    %v1621 = vadd.f32 0.0, %v1620
    %v1622 = vpop.f32.mrb[0].mxu0
    %v1623 = vpop.f32.mrb[0].mxu0
    %v1624 = vadd.f32 0.0, %v1623
    %v1625 = vpop.f32.mrb[0].mxu0
    %1626 = vmatprep.mubr.bf16.mxu0 %v1501
    %1627 = vmatmul.mubr.bf16.gmra.mrb[0].mxu0 %v1500
    %v1628 = vpop.f32.mrb[0].mxu0
    %v1629 = vadd.f32 0.0, %v1628
    %v1630 = vpop.f32.mrb[0].mxu0
    %v1631 = vpop.f32.mrb[0].mxu0
    %v1632 = vadd.f32 0.0, %v1631
    %v1633 = vpop.f32.mrb[0].mxu0
    %1634 = vmatprep.mubr.bf16.mxu0 %v1503
    %1635 = vmatmul.mubr.bf16.gmra.mrb[0].mxu0 %v1502
    %v1636 = vpop.f32.mrb[0].mxu0
    %v1637 = vadd.f32 0.0, %v1636
    %v1638 = vpop.f32.mrb[0].mxu0
    %v1639 = vpop.f32.mrb[0].mxu0
    %v1640 = vadd.f32 0.0, %v1639
    %v1641 = vpop.f32.mrb[0].mxu0
    %1642 = vmatprep.mubr.bf16.mxu0 %v1505
    %1643 = vmatmul.mubr.bf16.gmra.mrb[0].mxu0 %v1504
    %v1644 = vpop.f32.mrb[0].mxu0
    %v1645 = vadd.f32 0.0, %v1644
    %v1646 = vpop.f32.mrb[0].mxu0
    %v1647 = vpop.f32.mrb[0].mxu0
    %v1648 = vadd.f32 0.0, %v1647
    %v1649 = vpop.f32.mrb[0].mxu0
    %1650 = vmatprep.mubr.bf16.mxu0 %v1507
    %1651 = vmatmul.mubr.bf16.gmra.mrb[0].mxu0 %v1506
    %v1652 = vpop.f32.mrb[0].mxu0
    %v1653 = vadd.f32 0.0, %v1652
    %v1654 = vpop.f32.mrb[0].mxu0
    %v1655 = vpop.f32.mrb[0].mxu0
    %v1656 = vadd.f32 0.0, %v1655
    %v1657 = vpop.f32.mrb[0].mxu0
    %1658 = vmatprep.mubr.bf16.mxu0 %v1509
    %1659 = vmatmul.mubr.bf16.gmra.mrb[0].mxu0 %v1508
    %v1660 = vpop.f32.mrb[0].mxu0
    %v1661 = vadd.f32 0.0, %v1660
    %v1662 = vpop.f32.mrb[0].mxu0
    %v1663 = vpop.f32.mrb[0].mxu0
    %v1664 = vadd.f32 0.0, %v1663
    %v1665 = vpop.f32.mrb[0].mxu0
    %1666 = vmatprep.mubr.bf16.mxu0 %v1511
    %1667 = vmatmul.mubr.bf16.gmra.mrb[0].mxu0 %v1510
    %v1668 = vpop.f32.mrb[0].mxu0
    %v1669 = vadd.f32 0.0, %v1668
    %v1670 = vpop.f32.mrb[0].mxu0
    %v1671 = vpop.f32.mrb[0].mxu0
    %v1672 = vadd.f32 0.0, %v1671
    %v1673 = vpop.f32.mrb[0].mxu0
    %1674 = vmatprep.mubr.bf16.mxu0 %v1513
    %1675 = vmatmul.mubr.bf16.gmra.mrb[0].mxu0 %v1512
    %v1676 = vpop.f32.mrb[0].mxu0
    %v1677 = vadd.f32 0.0, %v1676
    %v1678 = vpop.f32.mrb[0].mxu0
    %v1679 = vpop.f32.mrb[0].mxu0
    %v1680 = vadd.f32 0.0, %v1679
    %v1681 = vpop.f32.mrb[0].mxu0
    %1682 = vmatprep.mubr.bf16.mxu0 %v1515
    %1683 = vmatmul.mubr.bf16.gmra.mrb[0].mxu0 %v1514
    %v1684 = vpop.f32.mrb[0].mxu0
    %v1685 = vadd.f32 0.0, %v1684
    %v1686 = vpop.f32.mrb[0].mxu0
    %v1687 = vpop.f32.mrb[0].mxu0
    %v1688 = vadd.f32 0.0, %v1687
    %v1689 = vpop.f32.mrb[0].mxu0
    %1690 = vmatprep.mubr.bf16.mxu0 %v1517
    %1691 = vmatmul.mubr.bf16.gmra.mrb[0].mxu0 %v1516
    %v1692 = vpop.f32.mrb[0].mxu0
    %v1693 = vadd.f32 0.0, %v1692
    %v1694 = vpop.f32.mrb[0].mxu0
    %v1695 = vpop.f32.mrb[0].mxu0
    %v1696 = vadd.f32 0.0, %v1695
    %v1697 = vpop.f32.mrb[0].mxu0
    %1698 = vmatprep.mubr.bf16.mxu0 %v1519
    %1699 = vmatmul.mubr.bf16.gmra.mrb[0].mxu0 %v1518
    %v1700 = vpop.f32.mrb[0].mxu0
    %v1701 = vadd.f32 0.0, %v1700
    %v1702 = vpop.f32.mrb[0].mxu0
    %v1703 = vpop.f32.mrb[0].mxu0
    %v1704 = vadd.f32 0.0, %v1703
    %v1705 = vpop.f32.mrb[0].mxu0
    %1706 = vmatprep.mubr.bf16.mxu0 %v1521
    %1707 = vmatmul.mubr.bf16.gmra.mrb[0].mxu0 %v1520
    %v1708 = vpop.f32.mrb[0].mxu0
    %v1709 = vadd.f32 0.0, %v1708
    %v1710 = vpop.f32.mrb[0].mxu0
    %v1711 = vpop.f32.mrb[0].mxu0
    %v1712 = vadd.f32 0.0, %v1711
    %v1713 = vpop.f32.mrb[0].mxu0
    %1714 = vdwg.mxu0
    %v1715 = vld [vmem:[#allocation10] sm:$0xff]
    %v1716 = vld [vmem:[#allocation10 + $0x8] sm:$0xff]
    %v1717 = vld [vmem:[#allocation10 + $0x10] sm:$0xff]
    %v1718 = vld [vmem:[#allocation10 + $0x18] sm:$0xff]
    %v1719 = vld [vmem:[#allocation10 + $0x20] sm:$0xff]
    %v1720 = vld [vmem:[#allocation10 + $0x28] sm:$0xff]
    %v1721 = vld [vmem:[#allocation10 + $0x30] sm:$0xff]
    %v1722 = vld [vmem:[#allocation10 + $0x38] sm:$0xff]
    %v1723 = vld [vmem:[#allocation10 + $0x40] sm:$0xff]
    %v1724 = vld [vmem:[#allocation10 + $0x48] sm:$0xff]
    %v1725 = vld [vmem:[#allocation10 + $0x50] sm:$0xff]
    %v1726 = vld [vmem:[#allocation10 + $0x58] sm:$0xff]
    %v1727 = vld [vmem:[#allocation10 + $0x60] sm:$0xff]
    %v1728 = vld [vmem:[#allocation10 + $0x68] sm:$0xff]
    %v1729 = vld [vmem:[#allocation10 + $0x70] sm:$0xff]
    %v1730 = vld [vmem:[#allocation10 + $0x78] sm:$0xff]
    %v1731 = vld [vmem:[#allocation10 + $0x80] sm:$0xff]
    %v1732 = vld [vmem:[#allocation10 + $0x88] sm:$0xff]
    %v1733 = vld [vmem:[#allocation10 + $0x90] sm:$0xff]
    %v1734 = vld [vmem:[#allocation10 + $0x98] sm:$0xff]
    %v1735 = vld [vmem:[#allocation10 + $0xa0] sm:$0xff]
    %v1736 = vld [vmem:[#allocation10 + $0xa8] sm:$0xff]
    %v1737 = vld [vmem:[#allocation10 + $0xb0] sm:$0xff]
    %v1738 = vld [vmem:[#allocation10 + $0xb8] sm:$0xff]
    %v1739 = vld [vmem:[#allocation10 + $0xc0] sm:$0xff]
    %v1740 = vld [vmem:[#allocation10 + $0xc8] sm:$0xff]
    %v1741 = vld [vmem:[#allocation10 + $0xd0] sm:$0xff]
    %v1742 = vld [vmem:[#allocation10 + $0xd8] sm:$0xff]
    %v1743 = vld [vmem:[#allocation10 + $0xe0] sm:$0xff]
    %v1744 = vld [vmem:[#allocation10 + $0xe8] sm:$0xff]
    %v1745 = vld [vmem:[#allocation10 + $0xf0] sm:$0xff]
    %v1746 = vld [vmem:[#allocation10 + $0xf8] sm:$0xff]
    %v1779 = vunpack.c.l.b16 %v1715
    %v1780 = vunpack.c.h.b16 %v1715
    %v1781 = vunpack.c.l.b16 %v1716
    %v1782 = vunpack.c.h.b16 %v1716
    %v1783 = vunpack.c.l.b16 %v1717
    %v1784 = vunpack.c.h.b16 %v1717
    %v1785 = vunpack.c.l.b16 %v1718
    %v1786 = vunpack.c.h.b16 %v1718
    %v1787 = vunpack.c.l.b16 %v1719
    %v1788 = vunpack.c.h.b16 %v1719
    %v1789 = vunpack.c.l.b16 %v1720
    %v1790 = vunpack.c.h.b16 %v1720
    %v1791 = vunpack.c.l.b16 %v1721
    %v1792 = vunpack.c.h.b16 %v1721
    %v1793 = vunpack.c.l.b16 %v1722
    %v1794 = vunpack.c.h.b16 %v1722
    %v1795 = vunpack.c.l.b16 %v1723
    %v1796 = vunpack.c.h.b16 %v1723
    %v1797 = vunpack.c.l.b16 %v1724
    %v1798 = vunpack.c.h.b16 %v1724
    %v1799 = vunpack.c.l.b16 %v1725
    %v1800 = vunpack.c.h.b16 %v1725
    %v1801 = vunpack.c.l.b16 %v1726
    %v1802 = vunpack.c.h.b16 %v1726
    %v1803 = vunpack.c.l.b16 %v1727
    %v1804 = vunpack.c.h.b16 %v1727
    %v1805 = vunpack.c.l.b16 %v1728
    %v1806 = vunpack.c.h.b16 %v1728
    %v1807 = vunpack.c.l.b16 %v1729
    %v1808 = vunpack.c.h.b16 %v1729
    %v1809 = vunpack.c.l.b16 %v1730
    %v1810 = vunpack.c.h.b16 %v1730
    %v1811 = vunpack.c.l.b16 %v1731
    %v1812 = vunpack.c.h.b16 %v1731
    %v1813 = vunpack.c.l.b16 %v1732
    %v1814 = vunpack.c.h.b16 %v1732
    %v1815 = vunpack.c.l.b16 %v1733
    %v1816 = vunpack.c.h.b16 %v1733
    %v1817 = vunpack.c.l.b16 %v1734
    %v1818 = vunpack.c.h.b16 %v1734
    %v1819 = vunpack.c.l.b16 %v1735
    %v1820 = vunpack.c.h.b16 %v1735
    %v1821 = vunpack.c.l.b16 %v1736
    %v1822 = vunpack.c.h.b16 %v1736
    %v1823 = vunpack.c.l.b16 %v1737
    %v1824 = vunpack.c.h.b16 %v1737
    %v1825 = vunpack.c.l.b16 %v1738
    %v1826 = vunpack.c.h.b16 %v1738
    %v1827 = vunpack.c.l.b16 %v1739
    %v1828 = vunpack.c.h.b16 %v1739
    %v1829 = vunpack.c.l.b16 %v1740
    %v1830 = vunpack.c.h.b16 %v1740
    %v1831 = vunpack.c.l.b16 %v1741
    %v1832 = vunpack.c.h.b16 %v1741
    %v1833 = vunpack.c.l.b16 %v1742
    %v1834 = vunpack.c.h.b16 %v1742
    %v1835 = vunpack.c.l.b16 %v1743
    %v1836 = vunpack.c.h.b16 %v1743
    %v1837 = vunpack.c.l.b16 %v1744
    %v1838 = vunpack.c.h.b16 %v1744
    %v1839 = vunpack.c.l.b16 %v1745
    %v1840 = vunpack.c.h.b16 %v1745
    %v1841 = vunpack.c.l.b16 %v1746
    %v1842 = vunpack.c.h.b16 %v1746
    %v1843 = vpack.c.b16 %v1781, %v1779
    %v1844 = vpack.c.b16 %v1782, %v1780
    %v1845 = vpack.c.b16 %v1785, %v1783
    %v1846 = vpack.c.b16 %v1786, %v1784
    %v1847 = vpack.c.b16 %v1789, %v1787
    %v1848 = vpack.c.b16 %v1790, %v1788
    %v1849 = vpack.c.b16 %v1793, %v1791
    %v1850 = vpack.c.b16 %v1794, %v1792
    %v1851 = vpack.c.b16 %v1797, %v1795
    %v1852 = vpack.c.b16 %v1798, %v1796
    %v1853 = vpack.c.b16 %v1801, %v1799
    %v1854 = vpack.c.b16 %v1802, %v1800
    %v1855 = vpack.c.b16 %v1805, %v1803
    %v1856 = vpack.c.b16 %v1806, %v1804
    %v1857 = vpack.c.b16 %v1809, %v1807
    %v1858 = vpack.c.b16 %v1810, %v1808
    %v1859 = vpack.c.b16 %v1813, %v1811
    %v1860 = vpack.c.b16 %v1814, %v1812
    %v1861 = vpack.c.b16 %v1817, %v1815
    %v1862 = vpack.c.b16 %v1818, %v1816
    %v1863 = vpack.c.b16 %v1821, %v1819
    %v1864 = vpack.c.b16 %v1822, %v1820
    %v1865 = vpack.c.b16 %v1825, %v1823
    %v1866 = vpack.c.b16 %v1826, %v1824
    %v1867 = vpack.c.b16 %v1829, %v1827
    %v1868 = vpack.c.b16 %v1830, %v1828
    %v1869 = vpack.c.b16 %v1833, %v1831
    %v1870 = vpack.c.b16 %v1834, %v1832
    %v1871 = vpack.c.b16 %v1837, %v1835
    %v1872 = vpack.c.b16 %v1838, %v1836
    %v1873 = vpack.c.b16 %v1841, %v1839
    %v1874 = vpack.c.b16 %v1842, %v1840
    %1907 = vmatprep.subr.bf16.mxu0 0
    %1908 = vmatpush1.bf16.msra.mxu0 %v1346
    %1909 = vmatprep.subr.bf16.mxu0 0
    %1910 = vmatpush1.bf16.msra.mxu0 %v1347
    %1911 = vmatprep.subr.bf16.mxu0 0
    %1912 = vmatpush1.bf16.msra.mxu0 %v1348
    %1913 = vmatprep.subr.bf16.mxu0 0
    %1914 = vmatpush1.bf16.msra.mxu0 %v1349
    %1915 = vmatprep.subr.bf16.mxu0 0
    %1916 = vmatpush1.bf16.msra.mxu0 %v1350
    %1917 = vmatprep.subr.bf16.mxu0 0
    %1918 = vmatpush1.bf16.msra.mxu0 %v1351
    %1919 = vmatprep.subr.bf16.mxu0 0
    %1920 = vmatpush1.bf16.msra.mxu0 %v1352
    %1921 = vmatprep.subr.bf16.mxu0 0
    %1922 = vmatpush1.bf16.msra.mxu0 %v1353
    %1923 = vmatprep.subr.bf16.mxu0 0
    %1924 = vmatpush1.bf16.msra.mxu0 %v1354
    %1925 = vmatprep.subr.bf16.mxu0 0
    %1926 = vmatpush1.bf16.msra.mxu0 %v1355
    %1927 = vmatprep.subr.bf16.mxu0 0
    %1928 = vmatpush1.bf16.msra.mxu0 %v1356
    %1929 = vmatprep.subr.bf16.mxu0 0
    %1930 = vmatpush1.bf16.msra.mxu0 %v1357
    %1931 = vmatprep.subr.bf16.mxu0 0
    %1932 = vmatpush1.bf16.msra.mxu0 %v1358
    %1933 = vmatprep.subr.bf16.mxu0 0
    %1934 = vmatpush1.bf16.msra.mxu0 %v1359
    %1935 = vmatprep.subr.bf16.mxu0 0
    %1936 = vmatpush1.bf16.msra.mxu0 %v1360
    %1937 = vmatprep.subr.bf16.mxu0 0
    %1938 = vmatpush1.bf16.msra.mxu0 %v1361
    %1939 = vmatprep.mubr.bf16.mxu0 %v1844
    %1940 = vmatmul.mubr.bf16.gmra.mrb[0].mxu0 %v1843
    %v1941 = vpop.f32.mrb[0].mxu0
    %v1942 = vadd.f32 0.0, %v1941
    %v1943 = vpop.f32.mrb[0].mxu0
    %v1944 = vpop.f32.mrb[0].mxu0
    %v1945 = vadd.f32 0.0, %v1944
    %v1946 = vpop.f32.mrb[0].mxu0
    %1947 = vmatprep.mubr.bf16.mxu0 %v1846
    %1948 = vmatmul.mubr.bf16.gmra.mrb[0].mxu0 %v1845
    %v1949 = vpop.f32.mrb[0].mxu0
    %v1950 = vadd.f32 0.0, %v1949
    %v1951 = vpop.f32.mrb[0].mxu0
    %v1952 = vpop.f32.mrb[0].mxu0
    %v1953 = vadd.f32 0.0, %v1952
    %v1954 = vpop.f32.mrb[0].mxu0
    %1955 = vmatprep.mubr.bf16.mxu0 %v1848
    %1956 = vmatmul.mubr.bf16.gmra.mrb[0].mxu0 %v1847
    %v1957 = vpop.f32.mrb[0].mxu0
    %v1958 = vadd.f32 0.0, %v1957
    %v1959 = vpop.f32.mrb[0].mxu0
    %v1960 = vpop.f32.mrb[0].mxu0
    %v1961 = vadd.f32 0.0, %v1960
    %v1962 = vpop.f32.mrb[0].mxu0
    %1963 = vmatprep.mubr.bf16.mxu0 %v1850
    %1964 = vmatmul.mubr.bf16.gmra.mrb[0].mxu0 %v1849
    %v1965 = vpop.f32.mrb[0].mxu0
    %v1966 = vadd.f32 0.0, %v1965
    %v1967 = vpop.f32.mrb[0].mxu0
    %v1968 = vpop.f32.mrb[0].mxu0
    %v1969 = vadd.f32 0.0, %v1968
    %v1970 = vpop.f32.mrb[0].mxu0
    %1971 = vmatprep.mubr.bf16.mxu0 %v1852
    %1972 = vmatmul.mubr.bf16.gmra.mrb[0].mxu0 %v1851
    %v1973 = vpop.f32.mrb[0].mxu0
    %v1974 = vadd.f32 0.0, %v1973
    %v1975 = vpop.f32.mrb[0].mxu0
    %v1976 = vpop.f32.mrb[0].mxu0
    %v1977 = vadd.f32 0.0, %v1976
    %v1978 = vpop.f32.mrb[0].mxu0
    %1979 = vmatprep.mubr.bf16.mxu0 %v1854
    %1980 = vmatmul.mubr.bf16.gmra.mrb[0].mxu0 %v1853
    %v1981 = vpop.f32.mrb[0].mxu0
    %v1982 = vadd.f32 0.0, %v1981
    %v1983 = vpop.f32.mrb[0].mxu0
    %v1984 = vpop.f32.mrb[0].mxu0
    %v1985 = vadd.f32 0.0, %v1984
    %v1986 = vpop.f32.mrb[0].mxu0
    %1987 = vmatprep.mubr.bf16.mxu0 %v1856
    %1988 = vmatmul.mubr.bf16.gmra.mrb[0].mxu0 %v1855
    %v1989 = vpop.f32.mrb[0].mxu0
    %v1990 = vadd.f32 0.0, %v1989
    %v1991 = vpop.f32.mrb[0].mxu0
    %v1992 = vpop.f32.mrb[0].mxu0
    %v1993 = vadd.f32 0.0, %v1992
    %v1994 = vpop.f32.mrb[0].mxu0
    %1995 = vmatprep.mubr.bf16.mxu0 %v1858
    %1996 = vmatmul.mubr.bf16.gmra.mrb[0].mxu0 %v1857
    %v1997 = vpop.f32.mrb[0].mxu0
    %v1998 = vadd.f32 0.0, %v1997
    %v1999 = vpop.f32.mrb[0].mxu0
    %v2000 = vpop.f32.mrb[0].mxu0
    %v2001 = vadd.f32 0.0, %v2000
    %v2002 = vpop.f32.mrb[0].mxu0
    %2003 = vmatprep.mubr.bf16.mxu0 %v1860
    %2004 = vmatmul.mubr.bf16.gmra.mrb[0].mxu0 %v1859
    %v2005 = vpop.f32.mrb[0].mxu0
    %v2006 = vadd.f32 0.0, %v2005
    %v2007 = vpop.f32.mrb[0].mxu0
    %v2008 = vpop.f32.mrb[0].mxu0
    %v2009 = vadd.f32 0.0, %v2008
    %v2010 = vpop.f32.mrb[0].mxu0
    %2011 = vmatprep.mubr.bf16.mxu0 %v1862
    %2012 = vmatmul.mubr.bf16.gmra.mrb[0].mxu0 %v1861
    %v2013 = vpop.f32.mrb[0].mxu0
    %v2014 = vadd.f32 0.0, %v2013
    %v2015 = vpop.f32.mrb[0].mxu0
    %v2016 = vpop.f32.mrb[0].mxu0
    %v2017 = vadd.f32 0.0, %v2016
    %v2018 = vpop.f32.mrb[0].mxu0
    %2019 = vmatprep.mubr.bf16.mxu0 %v1864
    %2020 = vmatmul.mubr.bf16.gmra.mrb[0].mxu0 %v1863
    %v2021 = vpop.f32.mrb[0].mxu0
    %v2022 = vadd.f32 0.0, %v2021
    %v2023 = vpop.f32.mrb[0].mxu0
    %v2024 = vpop.f32.mrb[0].mxu0
    %v2025 = vadd.f32 0.0, %v2024
    %v2026 = vpop.f32.mrb[0].mxu0
    %2027 = vmatprep.mubr.bf16.mxu0 %v1866
    %2028 = vmatmul.mubr.bf16.gmra.mrb[0].mxu0 %v1865
    %v2029 = vpop.f32.mrb[0].mxu0
    %v2030 = vadd.f32 0.0, %v2029
    %v2031 = vpop.f32.mrb[0].mxu0
    %v2032 = vpop.f32.mrb[0].mxu0
    %v2033 = vadd.f32 0.0, %v2032
    %v2034 = vpop.f32.mrb[0].mxu0
    %2035 = vmatprep.mubr.bf16.mxu0 %v1868
    %2036 = vmatmul.mubr.bf16.gmra.mrb[0].mxu0 %v1867
    %v2037 = vpop.f32.mrb[0].mxu0
    %v2038 = vadd.f32 0.0, %v2037
    %v2039 = vpop.f32.mrb[0].mxu0
    %v2040 = vpop.f32.mrb[0].mxu0
    %v2041 = vadd.f32 0.0, %v2040
    %v2042 = vpop.f32.mrb[0].mxu0
    %2043 = vmatprep.mubr.bf16.mxu0 %v1870
    %2044 = vmatmul.mubr.bf16.gmra.mrb[0].mxu0 %v1869
    %v2045 = vpop.f32.mrb[0].mxu0
    %v2046 = vadd.f32 0.0, %v2045
    %v2047 = vpop.f32.mrb[0].mxu0
    %v2048 = vpop.f32.mrb[0].mxu0
    %v2049 = vadd.f32 0.0, %v2048
    %v2050 = vpop.f32.mrb[0].mxu0
    %2051 = vmatprep.mubr.bf16.mxu0 %v1872
    %2052 = vmatmul.mubr.bf16.gmra.mrb[0].mxu0 %v1871
    %v2053 = vpop.f32.mrb[0].mxu0
    %v2054 = vadd.f32 0.0, %v2053
    %v2055 = vpop.f32.mrb[0].mxu0
    %v2056 = vpop.f32.mrb[0].mxu0
    %v2057 = vadd.f32 0.0, %v2056
    %v2058 = vpop.f32.mrb[0].mxu0
    %2059 = vmatprep.mubr.bf16.mxu0 %v1874
    %2060 = vmatmul.mubr.bf16.gmra.mrb[0].mxu0 %v1873
    %v2061 = vpop.f32.mrb[0].mxu0
    %v2062 = vadd.f32 0.0, %v2061
    %v2063 = vpop.f32.mrb[0].mxu0
    %v2064 = vpop.f32.mrb[0].mxu0
    %v2065 = vadd.f32 0.0, %v2064
    %v2066 = vpop.f32.mrb[0].mxu0
    %2067 = vdwg.mxu0
    %vm2068 = vcmp.lt.s32.totalorder %v94, 64
    %2070 = vset.pattern.permute.xlu0 0
    %2071 = vperm.xlu0 %2070, %v1589
    %v2072 = vpop.permute.xlu0 %2071
    %2075 = vset.pattern.permute.xlu0 0
    %2076 = vperm.xlu0 %2075, %v1592
    %v2077 = vpop.permute.xlu0 %2076
    %2080 = vset.pattern.permute.xlu0 0
    %2081 = vperm.xlu0 %2080, %v1597
    %v2082 = vpop.permute.xlu0 %2081
    %2085 = vset.pattern.permute.xlu0 0
    %2086 = vperm.xlu0 %2085, %v1600
    %v2087 = vpop.permute.xlu0 %2086
    %2090 = vset.pattern.permute.xlu0 0
    %2091 = vperm.xlu0 %2090, %v1605
    %v2092 = vpop.permute.xlu0 %2091
    %2095 = vset.pattern.permute.xlu0 0
    %2096 = vperm.xlu0 %2095, %v1608
    %v2097 = vpop.permute.xlu0 %2096
    %2100 = vset.pattern.permute.xlu0 0
    %2101 = vperm.xlu0 %2100, %v1613
    %v2102 = vpop.permute.xlu0 %2101
    %2105 = vset.pattern.permute.xlu0 0
    %2106 = vperm.xlu0 %2105, %v1616
    %v2107 = vpop.permute.xlu0 %2106
    %2110 = vset.pattern.permute.xlu0 0
    %2111 = vperm.xlu0 %2110, %v1621
    %v2112 = vpop.permute.xlu0 %2111
    %2115 = vset.pattern.permute.xlu0 0
    %2116 = vperm.xlu0 %2115, %v1624
    %v2117 = vpop.permute.xlu0 %2116
    %2120 = vset.pattern.permute.xlu0 0
    %2121 = vperm.xlu0 %2120, %v1629
    %v2122 = vpop.permute.xlu0 %2121
    %2125 = vset.pattern.permute.xlu0 0
    %2126 = vperm.xlu0 %2125, %v1632
    %v2127 = vpop.permute.xlu0 %2126
    %2130 = vset.pattern.permute.xlu0 0
    %2131 = vperm.xlu0 %2130, %v1637
    %v2132 = vpop.permute.xlu0 %2131
    %2135 = vset.pattern.permute.xlu0 0
    %2136 = vperm.xlu0 %2135, %v1640
    %v2137 = vpop.permute.xlu0 %2136
    %2140 = vset.pattern.permute.xlu0 0
    %2141 = vperm.xlu0 %2140, %v1645
    %v2142 = vpop.permute.xlu0 %2141
    %2145 = vset.pattern.permute.xlu0 0
    %2146 = vperm.xlu0 %2145, %v1648
    %v2147 = vpop.permute.xlu0 %2146
    %2150 = vset.pattern.permute.xlu0 0
    %2151 = vperm.xlu0 %2150, %v1653
    %v2152 = vpop.permute.xlu0 %2151
    %2155 = vset.pattern.permute.xlu0 0
    %2156 = vperm.xlu0 %2155, %v1656
    %v2157 = vpop.permute.xlu0 %2156
    %2160 = vset.pattern.permute.xlu0 0
    %2161 = vperm.xlu0 %2160, %v1661
    %v2162 = vpop.permute.xlu0 %2161
    %2165 = vset.pattern.permute.xlu0 0
    %2166 = vperm.xlu0 %2165, %v1664
    %v2167 = vpop.permute.xlu0 %2166
    %2170 = vset.pattern.permute.xlu0 0
    %2171 = vperm.xlu0 %2170, %v1669
    %v2172 = vpop.permute.xlu0 %2171
    %2175 = vset.pattern.permute.xlu0 0
    %2176 = vperm.xlu0 %2175, %v1672
    %v2177 = vpop.permute.xlu0 %2176
    %2180 = vset.pattern.permute.xlu0 0
    %2181 = vperm.xlu0 %2180, %v1677
    %v2182 = vpop.permute.xlu0 %2181
    %2185 = vset.pattern.permute.xlu0 0
    %2186 = vperm.xlu0 %2185, %v1680
    %v2187 = vpop.permute.xlu0 %2186
    %2190 = vset.pattern.permute.xlu0 0
    %2191 = vperm.xlu0 %2190, %v1685
    %v2192 = vpop.permute.xlu0 %2191
    %2195 = vset.pattern.permute.xlu0 0
    %2196 = vperm.xlu0 %2195, %v1688
    %v2197 = vpop.permute.xlu0 %2196
    %2200 = vset.pattern.permute.xlu0 0
    %2201 = vperm.xlu0 %2200, %v1693
    %v2202 = vpop.permute.xlu0 %2201
    %2205 = vset.pattern.permute.xlu0 0
    %2206 = vperm.xlu0 %2205, %v1696
    %v2207 = vpop.permute.xlu0 %2206
    %2210 = vset.pattern.permute.xlu0 0
    %2211 = vperm.xlu0 %2210, %v1701
    %v2212 = vpop.permute.xlu0 %2211
    %2215 = vset.pattern.permute.xlu0 0
    %2216 = vperm.xlu0 %2215, %v1704
    %v2217 = vpop.permute.xlu0 %2216
    %2220 = vset.pattern.permute.xlu0 0
    %2221 = vperm.xlu0 %2220, %v1709
    %v2222 = vpop.permute.xlu0 %2221
    %2225 = vset.pattern.permute.xlu0 0
    %2226 = vperm.xlu0 %2225, %v1712
    %v2227 = vpop.permute.xlu0 %2226
    %2230 = vset.pattern.permute.xlu0 0
    %2231 = vperm.xlu0 %2230, %v1942
    %v2232 = vpop.permute.xlu0 %2231
    %2235 = vset.pattern.permute.xlu0 0
    %2236 = vperm.xlu0 %2235, %v1945
    %v2237 = vpop.permute.xlu0 %2236
    %2240 = vset.pattern.permute.xlu0 0
    %2241 = vperm.xlu0 %2240, %v1950
    %v2242 = vpop.permute.xlu0 %2241
    %2245 = vset.pattern.permute.xlu0 0
    %2246 = vperm.xlu0 %2245, %v1953
    %v2247 = vpop.permute.xlu0 %2246
    %2250 = vset.pattern.permute.xlu0 0
    %2251 = vperm.xlu0 %2250, %v1958
    %v2252 = vpop.permute.xlu0 %2251
    %2255 = vset.pattern.permute.xlu0 0
    %2256 = vperm.xlu0 %2255, %v1961
    %v2257 = vpop.permute.xlu0 %2256
    %2260 = vset.pattern.permute.xlu0 0
    %2261 = vperm.xlu0 %2260, %v1966
    %v2262 = vpop.permute.xlu0 %2261
    %2265 = vset.pattern.permute.xlu0 0
    %2266 = vperm.xlu0 %2265, %v1969
    %v2267 = vpop.permute.xlu0 %2266
    %2270 = vset.pattern.permute.xlu0 0
    %2271 = vperm.xlu0 %2270, %v1974
    %v2272 = vpop.permute.xlu0 %2271
    %2275 = vset.pattern.permute.xlu0 0
    %2276 = vperm.xlu0 %2275, %v1977
    %v2277 = vpop.permute.xlu0 %2276
    %2280 = vset.pattern.permute.xlu0 0
    %2281 = vperm.xlu0 %2280, %v1982
    %v2282 = vpop.permute.xlu0 %2281
    %2285 = vset.pattern.permute.xlu0 0
    %2286 = vperm.xlu0 %2285, %v1985
    %v2287 = vpop.permute.xlu0 %2286
    %2290 = vset.pattern.permute.xlu0 0
    %2291 = vperm.xlu0 %2290, %v1990
    %v2292 = vpop.permute.xlu0 %2291
    %2295 = vset.pattern.permute.xlu0 0
    %2296 = vperm.xlu0 %2295, %v1993
    %v2297 = vpop.permute.xlu0 %2296
    %2300 = vset.pattern.permute.xlu0 0
    %2301 = vperm.xlu0 %2300, %v1998
    %v2302 = vpop.permute.xlu0 %2301
    %2305 = vset.pattern.permute.xlu0 0
    %2306 = vperm.xlu0 %2305, %v2001
    %v2307 = vpop.permute.xlu0 %2306
    %2310 = vset.pattern.permute.xlu0 0
    %2311 = vperm.xlu0 %2310, %v2006
    %v2312 = vpop.permute.xlu0 %2311
    %2315 = vset.pattern.permute.xlu0 0
    %2316 = vperm.xlu0 %2315, %v2009
    %v2317 = vpop.permute.xlu0 %2316
    %2320 = vset.pattern.permute.xlu0 0
    %2321 = vperm.xlu0 %2320, %v2014
    %v2322 = vpop.permute.xlu0 %2321
    %2325 = vset.pattern.permute.xlu0 0
    %2326 = vperm.xlu0 %2325, %v2017
    %v2327 = vpop.permute.xlu0 %2326
    %2330 = vset.pattern.permute.xlu0 0
    %2331 = vperm.xlu0 %2330, %v2022
    %v2332 = vpop.permute.xlu0 %2331
    %2335 = vset.pattern.permute.xlu0 0
    %2336 = vperm.xlu0 %2335, %v2025
    %v2337 = vpop.permute.xlu0 %2336
    %2340 = vset.pattern.permute.xlu0 0
    %2341 = vperm.xlu0 %2340, %v2030
    %v2342 = vpop.permute.xlu0 %2341
    %2345 = vset.pattern.permute.xlu0 0
    %2346 = vperm.xlu0 %2345, %v2033
    %v2347 = vpop.permute.xlu0 %2346
    %2350 = vset.pattern.permute.xlu0 0
    %2351 = vperm.xlu0 %2350, %v2038
    %v2352 = vpop.permute.xlu0 %2351
    %2355 = vset.pattern.permute.xlu0 0
    %2356 = vperm.xlu0 %2355, %v2041
    %v2357 = vpop.permute.xlu0 %2356
    %2360 = vset.pattern.permute.xlu0 0
    %2361 = vperm.xlu0 %2360, %v2046
    %v2362 = vpop.permute.xlu0 %2361
    %2365 = vset.pattern.permute.xlu0 0
    %2366 = vperm.xlu0 %2365, %v2049
    %v2367 = vpop.permute.xlu0 %2366
    %2370 = vset.pattern.permute.xlu0 0
    %2371 = vperm.xlu0 %2370, %v2054
    %v2372 = vpop.permute.xlu0 %2371
    %2375 = vset.pattern.permute.xlu0 0
    %2376 = vperm.xlu0 %2375, %v2057
    %v2377 = vpop.permute.xlu0 %2376
    %2380 = vset.pattern.permute.xlu0 0
    %2381 = vperm.xlu0 %2380, %v2062
    %v2382 = vpop.permute.xlu0 %2381
    %2385 = vset.pattern.permute.xlu0 0
    %2386 = vperm.xlu0 %2385, %v2065
    %v2387 = vpop.permute.xlu0 %2386
    %v2389 = vsel %vm2068, %v2072, %v2232
    %v2390 = vsel %vm2068, %v2077, %v2237
    %v2391 = vsel %vm2068, %v2082, %v2242
    %v2392 = vsel %vm2068, %v2087, %v2247
    %v2393 = vsel %vm2068, %v2092, %v2252
    %v2394 = vsel %vm2068, %v2097, %v2257
    %v2395 = vsel %vm2068, %v2102, %v2262
    %v2396 = vsel %vm2068, %v2107, %v2267
    %v2397 = vsel %vm2068, %v2112, %v2272
    %v2398 = vsel %vm2068, %v2117, %v2277
    %v2399 = vsel %vm2068, %v2122, %v2282
    %v2400 = vsel %vm2068, %v2127, %v2287
    %v2401 = vsel %vm2068, %v2132, %v2292
    %v2402 = vsel %vm2068, %v2137, %v2297
    %v2403 = vsel %vm2068, %v2142, %v2302
    %v2404 = vsel %vm2068, %v2147, %v2307
    %v2405 = vsel %vm2068, %v2152, %v2312
    %v2406 = vsel %vm2068, %v2157, %v2317
    %v2407 = vsel %vm2068, %v2162, %v2322
    %v2408 = vsel %vm2068, %v2167, %v2327
    %v2409 = vsel %vm2068, %v2172, %v2332
    %v2410 = vsel %vm2068, %v2177, %v2337
    %v2411 = vsel %vm2068, %v2182, %v2342
    %v2412 = vsel %vm2068, %v2187, %v2347
    %v2413 = vsel %vm2068, %v2192, %v2352
    %v2414 = vsel %vm2068, %v2197, %v2357
    %v2415 = vsel %vm2068, %v2202, %v2362
    %v2416 = vsel %vm2068, %v2207, %v2367
    %v2417 = vsel %vm2068, %v2212, %v2372
    %v2418 = vsel %vm2068, %v2217, %v2377
    %v2419 = vsel %vm2068, %v2222, %v2382
    %v2420 = vsel %vm2068, %v2227, %v2387
    %v2421 = vadd.f32 %v95, %v2389
    %v2422 = vadd.f32 %v96, %v2390
    %v2423 = vadd.f32 %v97, %v2391
    %v2424 = vadd.f32 %v98, %v2392
    %v2425 = vadd.f32 %v99, %v2393
    %v2426 = vadd.f32 %v100, %v2394
    %v2427 = vadd.f32 %v101, %v2395
    %v2428 = vadd.f32 %v102, %v2396
    %v2429 = vadd.f32 %v103, %v2397
    %v2430 = vadd.f32 %v104, %v2398
    %v2431 = vadd.f32 %v105, %v2399
    %v2432 = vadd.f32 %v106, %v2400
    %v2433 = vadd.f32 %v107, %v2401
    %v2434 = vadd.f32 %v108, %v2402
    %v2435 = vadd.f32 %v109, %v2403
    %v2436 = vadd.f32 %v110, %v2404
    %v2437 = vadd.f32 %v111, %v2405
    %v2438 = vadd.f32 %v112, %v2406
    %v2439 = vadd.f32 %v113, %v2407
    %v2440 = vadd.f32 %v114, %v2408
    %v2441 = vadd.f32 %v115, %v2409
    %v2442 = vadd.f32 %v116, %v2410
    %v2443 = vadd.f32 %v117, %v2411
    %v2444 = vadd.f32 %v118, %v2412
    %v2445 = vadd.f32 %v119, %v2413
    %v2446 = vadd.f32 %v120, %v2414
    %v2447 = vadd.f32 %v121, %v2415
    %v2448 = vadd.f32 %v122, %v2416
    %v2449 = vadd.f32 %v123, %v2417
    %v2450 = vadd.f32 %v124, %v2418
    %v2451 = vadd.f32 %v125, %v2419
    %v2452 = vadd.f32 %v126, %v2420
    %2453 = vst [vmem:[#allocation11] sm:$0xff] %v2421
    %2454 = vst [vmem:[#allocation11 + $0x8] sm:$0xff] %v2422
    %2455 = vst [vmem:[#allocation11 + $0x10] sm:$0xff] %v2423
    %2456 = vst [vmem:[#allocation11 + $0x18] sm:$0xff] %v2424
    %2457 = vst [vmem:[#allocation11 + $0x20] sm:$0xff] %v2425
    %2458 = vst [vmem:[#allocation11 + $0x28] sm:$0xff] %v2426
    %2459 = vst [vmem:[#allocation11 + $0x30] sm:$0xff] %v2427
    %2460 = vst [vmem:[#allocation11 + $0x38] sm:$0xff] %v2428
    %2461 = vst [vmem:[#allocation11 + $0x40] sm:$0xff] %v2429
    %2462 = vst [vmem:[#allocation11 + $0x48] sm:$0xff] %v2430
    %2463 = vst [vmem:[#allocation11 + $0x50] sm:$0xff] %v2431
    %2464 = vst [vmem:[#allocation11 + $0x58] sm:$0xff] %v2432
    %2465 = vst [vmem:[#allocation11 + $0x60] sm:$0xff] %v2433
    %2466 = vst [vmem:[#allocation11 + $0x68] sm:$0xff] %v2434
    %2467 = vst [vmem:[#allocation11 + $0x70] sm:$0xff] %v2435
    %2468 = vst [vmem:[#allocation11 + $0x78] sm:$0xff] %v2436
    %2469 = vst [vmem:[#allocation11 + $0x80] sm:$0xff] %v2437
    %2470 = vst [vmem:[#allocation11 + $0x88] sm:$0xff] %v2438
    %2471 = vst [vmem:[#allocation11 + $0x90] sm:$0xff] %v2439
    %2472 = vst [vmem:[#allocation11 + $0x98] sm:$0xff] %v2440
    %2473 = vst [vmem:[#allocation11 + $0xa0] sm:$0xff] %v2441
    %2474 = vst [vmem:[#allocation11 + $0xa8] sm:$0xff] %v2442
    %2475 = vst [vmem:[#allocation11 + $0xb0] sm:$0xff] %v2443
    %2476 = vst [vmem:[#allocation11 + $0xb8] sm:$0xff] %v2444
    %2477 = vst [vmem:[#allocation11 + $0xc0] sm:$0xff] %v2445
    %2478 = vst [vmem:[#allocation11 + $0xc8] sm:$0xff] %v2446
    %2479 = vst [vmem:[#allocation11 + $0xd0] sm:$0xff] %v2447
    %2480 = vst [vmem:[#allocation11 + $0xd8] sm:$0xff] %v2448
    %2481 = vst [vmem:[#allocation11 + $0xe0] sm:$0xff] %v2449
    %2482 = vst [vmem:[#allocation11 + $0xe8] sm:$0xff] %v2450
    %2483 = vst [vmem:[#allocation11 + $0xf0] sm:$0xff] %v2451
    %2484 = vst [vmem:[#allocation11 + $0xf8] sm:$0xff] %v2452
    %s2485 = scalar_lea.vmem [#allocation2], 256
    %v2486 = vld [vmem:[%s2485] sm:$0xff]
    %v2487 = vld [vmem:[%s2485 + $0x8] sm:$0xff]
    %v2488 = vld [vmem:[%s2485 + $0x10] sm:$0xff]
    %v2489 = vld [vmem:[%s2485 + $0x18] sm:$0xff]
    %v2490 = vld [vmem:[%s2485 + $0x20] sm:$0xff]
    %v2491 = vld [vmem:[%s2485 + $0x28] sm:$0xff]
    %v2492 = vld [vmem:[%s2485 + $0x30] sm:$0xff]
    %v2493 = vld [vmem:[%s2485 + $0x38] sm:$0xff]
    %v2494 = vld [vmem:[%s2485 + $0x40] sm:$0xff]
    %v2495 = vld [vmem:[%s2485 + $0x48] sm:$0xff]
    %v2496 = vld [vmem:[%s2485 + $0x50] sm:$0xff]
    %v2497 = vld [vmem:[%s2485 + $0x58] sm:$0xff]
    %v2498 = vld [vmem:[%s2485 + $0x60] sm:$0xff]
    %v2499 = vld [vmem:[%s2485 + $0x68] sm:$0xff]
    %v2500 = vld [vmem:[%s2485 + $0x70] sm:$0xff]
    %v2501 = vld [vmem:[%s2485 + $0x78] sm:$0xff]
    %v2502 = vld [vmem:[%s2485 + $0x80] sm:$0xff]
    %v2503 = vld [vmem:[%s2485 + $0x88] sm:$0xff]
    %v2504 = vld [vmem:[%s2485 + $0x90] sm:$0xff]
    %v2505 = vld [vmem:[%s2485 + $0x98] sm:$0xff]
    %v2506 = vld [vmem:[%s2485 + $0xa0] sm:$0xff]
    %v2507 = vld [vmem:[%s2485 + $0xa8] sm:$0xff]
    %v2508 = vld [vmem:[%s2485 + $0xb0] sm:$0xff]
    %v2509 = vld [vmem:[%s2485 + $0xb8] sm:$0xff]
    %v2510 = vld [vmem:[%s2485 + $0xc0] sm:$0xff]
    %v2511 = vld [vmem:[%s2485 + $0xc8] sm:$0xff]
    %v2512 = vld [vmem:[%s2485 + $0xd0] sm:$0xff]
    %v2513 = vld [vmem:[%s2485 + $0xd8] sm:$0xff]
    %v2514 = vld [vmem:[%s2485 + $0xe0] sm:$0xff]
    %v2515 = vld [vmem:[%s2485 + $0xe8] sm:$0xff]
    %v2516 = vld [vmem:[%s2485 + $0xf0] sm:$0xff]
    %v2517 = vld [vmem:[%s2485 + $0xf8] sm:$0xff]
    %v2518 = vsel %vm127, %v2486, 0.0
    %2519 = vadd.xlane.f32.xlu0 %v2518
    %v2520 = vpop.xlane.xlu0 %2519
    %v2521 = vsel %vm127, %v2487, 0.0
    %2522 = vadd.xlane.f32.xlu0 %v2521
    %v2523 = vpop.xlane.xlu0 %2522
    %v2524 = vsel %vm127, %v2488, 0.0
    %2525 = vadd.xlane.f32.xlu0 %v2524
    %v2526 = vpop.xlane.xlu0 %2525
    %v2527 = vsel %vm127, %v2489, 0.0
    %2528 = vadd.xlane.f32.xlu0 %v2527
    %v2529 = vpop.xlane.xlu0 %2528
    %v2530 = vsel %vm127, %v2490, 0.0
    %2531 = vadd.xlane.f32.xlu0 %v2530
    %v2532 = vpop.xlane.xlu0 %2531
    %v2533 = vsel %vm127, %v2491, 0.0
    %2534 = vadd.xlane.f32.xlu0 %v2533
    %v2535 = vpop.xlane.xlu0 %2534
    %v2536 = vsel %vm127, %v2492, 0.0
    %2537 = vadd.xlane.f32.xlu0 %v2536
    %v2538 = vpop.xlane.xlu0 %2537
    %v2539 = vsel %vm127, %v2493, 0.0
    %2540 = vadd.xlane.f32.xlu0 %v2539
    %v2541 = vpop.xlane.xlu0 %2540
    %v2542 = vsel %vm127, %v2494, 0.0
    %2543 = vadd.xlane.f32.xlu0 %v2542
    %v2544 = vpop.xlane.xlu0 %2543
    %v2545 = vsel %vm127, %v2495, 0.0
    %2546 = vadd.xlane.f32.xlu0 %v2545
    %v2547 = vpop.xlane.xlu0 %2546
    %v2548 = vsel %vm127, %v2496, 0.0
    %2549 = vadd.xlane.f32.xlu0 %v2548
    %v2550 = vpop.xlane.xlu0 %2549
    %v2551 = vsel %vm127, %v2497, 0.0
    %2552 = vadd.xlane.f32.xlu0 %v2551
    %v2553 = vpop.xlane.xlu0 %2552
    %v2554 = vsel %vm127, %v2498, 0.0
    %2555 = vadd.xlane.f32.xlu0 %v2554
    %v2556 = vpop.xlane.xlu0 %2555
    %v2557 = vsel %vm127, %v2499, 0.0
    %2558 = vadd.xlane.f32.xlu0 %v2557
    %v2559 = vpop.xlane.xlu0 %2558
    %v2560 = vsel %vm127, %v2500, 0.0
    %2561 = vadd.xlane.f32.xlu0 %v2560
    %v2562 = vpop.xlane.xlu0 %2561
    %v2563 = vsel %vm127, %v2501, 0.0
    %2564 = vadd.xlane.f32.xlu0 %v2563
    %v2565 = vpop.xlane.xlu0 %2564
    %v2566 = vsel %vm127, %v2502, 0.0
    %2567 = vadd.xlane.f32.xlu0 %v2566
    %v2568 = vpop.xlane.xlu0 %2567
    %v2569 = vsel %vm127, %v2503, 0.0
    %2570 = vadd.xlane.f32.xlu0 %v2569
    %v2571 = vpop.xlane.xlu0 %2570
    %v2572 = vsel %vm127, %v2504, 0.0
    %2573 = vadd.xlane.f32.xlu0 %v2572
    %v2574 = vpop.xlane.xlu0 %2573
    %v2575 = vsel %vm127, %v2505, 0.0
    %2576 = vadd.xlane.f32.xlu0 %v2575
    %v2577 = vpop.xlane.xlu0 %2576
    %v2578 = vsel %vm127, %v2506, 0.0
    %2579 = vadd.xlane.f32.xlu0 %v2578
    %v2580 = vpop.xlane.xlu0 %2579
    %v2581 = vsel %vm127, %v2507, 0.0
    %2582 = vadd.xlane.f32.xlu0 %v2581
    %v2583 = vpop.xlane.xlu0 %2582
    %v2584 = vsel %vm127, %v2508, 0.0
    %2585 = vadd.xlane.f32.xlu0 %v2584
    %v2586 = vpop.xlane.xlu0 %2585
    %v2587 = vsel %vm127, %v2509, 0.0
    %2588 = vadd.xlane.f32.xlu0 %v2587
    %v2589 = vpop.xlane.xlu0 %2588
    %v2590 = vsel %vm127, %v2510, 0.0
    %2591 = vadd.xlane.f32.xlu0 %v2590
    %v2592 = vpop.xlane.xlu0 %2591
    %v2593 = vsel %vm127, %v2511, 0.0
    %2594 = vadd.xlane.f32.xlu0 %v2593
    %v2595 = vpop.xlane.xlu0 %2594
    %v2596 = vsel %vm127, %v2512, 0.0
    %2597 = vadd.xlane.f32.xlu0 %v2596
    %v2598 = vpop.xlane.xlu0 %2597
    %v2599 = vsel %vm127, %v2513, 0.0
    %2600 = vadd.xlane.f32.xlu0 %v2599
    %v2601 = vpop.xlane.xlu0 %2600
    %v2602 = vsel %vm127, %v2514, 0.0
    %2603 = vadd.xlane.f32.xlu0 %v2602
    %v2604 = vpop.xlane.xlu0 %2603
    %v2605 = vsel %vm127, %v2515, 0.0
    %2606 = vadd.xlane.f32.xlu0 %v2605
    %v2607 = vpop.xlane.xlu0 %2606
    %v2608 = vsel %vm127, %v2516, 0.0
    %2609 = vadd.xlane.f32.xlu0 %v2608
    %v2610 = vpop.xlane.xlu0 %2609
    %v2611 = vsel %vm127, %v2517, 0.0
    %2612 = vadd.xlane.f32.xlu0 %v2611
    %v2613 = vpop.xlane.xlu0 %2612
    %v2614 = vmul.f32 %v2520, 0.015625
    %v2615 = vmul.f32 %v2523, 0.015625
    %v2616 = vmul.f32 %v2526, 0.015625
    %v2617 = vmul.f32 %v2529, 0.015625
    %v2618 = vmul.f32 %v2532, 0.015625
    %v2619 = vmul.f32 %v2535, 0.015625
    %v2620 = vmul.f32 %v2538, 0.015625
    %v2621 = vmul.f32 %v2541, 0.015625
    %v2622 = vmul.f32 %v2544, 0.015625
    %v2623 = vmul.f32 %v2547, 0.015625
    %v2624 = vmul.f32 %v2550, 0.015625
    %v2625 = vmul.f32 %v2553, 0.015625
    %v2626 = vmul.f32 %v2556, 0.015625
    %v2627 = vmul.f32 %v2559, 0.015625
    %v2628 = vmul.f32 %v2562, 0.015625
    %v2629 = vmul.f32 %v2565, 0.015625
    %v2630 = vmul.f32 %v2568, 0.015625
    %v2631 = vmul.f32 %v2571, 0.015625
    %v2632 = vmul.f32 %v2574, 0.015625
    %v2633 = vmul.f32 %v2577, 0.015625
    %v2634 = vmul.f32 %v2580, 0.015625
    %v2635 = vmul.f32 %v2583, 0.015625
    %v2636 = vmul.f32 %v2586, 0.015625
    %v2637 = vmul.f32 %v2589, 0.015625
    %v2638 = vmul.f32 %v2592, 0.015625
    %v2639 = vmul.f32 %v2595, 0.015625
    %v2640 = vmul.f32 %v2598, 0.015625
    %v2641 = vmul.f32 %v2601, 0.015625
    %v2642 = vmul.f32 %v2604, 0.015625
    %v2643 = vmul.f32 %v2607, 0.015625
    %v2644 = vmul.f32 %v2610, 0.015625
    %v2645 = vmul.f32 %v2613, 0.015625
    %2678 = vrot.lane.b32.xlu0 %v2486, 64
    %v2679 = vpop.permute.xlu0 %2678
    %2680 = vrot.lane.b32.xlu0 %v2487, 64
    %v2681 = vpop.permute.xlu0 %2680
    %2682 = vrot.lane.b32.xlu0 %v2488, 64
    %v2683 = vpop.permute.xlu0 %2682
    %2684 = vrot.lane.b32.xlu0 %v2489, 64
    %v2685 = vpop.permute.xlu0 %2684
    %2686 = vrot.lane.b32.xlu0 %v2490, 64
    %v2687 = vpop.permute.xlu0 %2686
    %2688 = vrot.lane.b32.xlu0 %v2491, 64
    %v2689 = vpop.permute.xlu0 %2688
    %2690 = vrot.lane.b32.xlu0 %v2492, 64
    %v2691 = vpop.permute.xlu0 %2690
    %2692 = vrot.lane.b32.xlu0 %v2493, 64
    %v2693 = vpop.permute.xlu0 %2692
    %2694 = vrot.lane.b32.xlu0 %v2494, 64
    %v2695 = vpop.permute.xlu0 %2694
    %2696 = vrot.lane.b32.xlu0 %v2495, 64
    %v2697 = vpop.permute.xlu0 %2696
    %2698 = vrot.lane.b32.xlu0 %v2496, 64
    %v2699 = vpop.permute.xlu0 %2698
    %2700 = vrot.lane.b32.xlu0 %v2497, 64
    %v2701 = vpop.permute.xlu0 %2700
    %2702 = vrot.lane.b32.xlu0 %v2498, 64
    %v2703 = vpop.permute.xlu0 %2702
    %2704 = vrot.lane.b32.xlu0 %v2499, 64
    %v2705 = vpop.permute.xlu0 %2704
    %2706 = vrot.lane.b32.xlu0 %v2500, 64
    %v2707 = vpop.permute.xlu0 %2706
    %2708 = vrot.lane.b32.xlu0 %v2501, 64
    %v2709 = vpop.permute.xlu0 %2708
    %2710 = vrot.lane.b32.xlu0 %v2502, 64
    %v2711 = vpop.permute.xlu0 %2710
    %2712 = vrot.lane.b32.xlu0 %v2503, 64
    %v2713 = vpop.permute.xlu0 %2712
    %2714 = vrot.lane.b32.xlu0 %v2504, 64
    %v2715 = vpop.permute.xlu0 %2714
    %2716 = vrot.lane.b32.xlu0 %v2505, 64
    %v2717 = vpop.permute.xlu0 %2716
    %2718 = vrot.lane.b32.xlu0 %v2506, 64
    %v2719 = vpop.permute.xlu0 %2718
    %2720 = vrot.lane.b32.xlu0 %v2507, 64
    %v2721 = vpop.permute.xlu0 %2720
    %2722 = vrot.lane.b32.xlu0 %v2508, 64
    %v2723 = vpop.permute.xlu0 %2722
    %2724 = vrot.lane.b32.xlu0 %v2509, 64
    %v2725 = vpop.permute.xlu0 %2724
    %2726 = vrot.lane.b32.xlu0 %v2510, 64
    %v2727 = vpop.permute.xlu0 %2726
    %2728 = vrot.lane.b32.xlu0 %v2511, 64
    %v2729 = vpop.permute.xlu0 %2728
    %2730 = vrot.lane.b32.xlu0 %v2512, 64
    %v2731 = vpop.permute.xlu0 %2730
    %2732 = vrot.lane.b32.xlu0 %v2513, 64
    %v2733 = vpop.permute.xlu0 %2732
    %2734 = vrot.lane.b32.xlu0 %v2514, 64
    %v2735 = vpop.permute.xlu0 %2734
    %2736 = vrot.lane.b32.xlu0 %v2515, 64
    %v2737 = vpop.permute.xlu0 %2736
    %2738 = vrot.lane.b32.xlu0 %v2516, 64
    %v2739 = vpop.permute.xlu0 %2738
    %2740 = vrot.lane.b32.xlu0 %v2517, 64
    %v2741 = vpop.permute.xlu0 %2740
    %v2774 = vsel %vm127, %v2679, 0.0
    %2775 = vadd.xlane.f32.xlu0 %v2774
    %v2776 = vpop.xlane.xlu0 %2775
    %v2777 = vsel %vm127, %v2681, 0.0
    %2778 = vadd.xlane.f32.xlu0 %v2777
    %v2779 = vpop.xlane.xlu0 %2778
    %v2780 = vsel %vm127, %v2683, 0.0
    %2781 = vadd.xlane.f32.xlu0 %v2780
    %v2782 = vpop.xlane.xlu0 %2781
    %v2783 = vsel %vm127, %v2685, 0.0
    %2784 = vadd.xlane.f32.xlu0 %v2783
    %v2785 = vpop.xlane.xlu0 %2784
    %v2786 = vsel %vm127, %v2687, 0.0
    %2787 = vadd.xlane.f32.xlu0 %v2786
    %v2788 = vpop.xlane.xlu0 %2787
    %v2789 = vsel %vm127, %v2689, 0.0
    %2790 = vadd.xlane.f32.xlu0 %v2789
    %v2791 = vpop.xlane.xlu0 %2790
    %v2792 = vsel %vm127, %v2691, 0.0
    %2793 = vadd.xlane.f32.xlu0 %v2792
    %v2794 = vpop.xlane.xlu0 %2793
    %v2795 = vsel %vm127, %v2693, 0.0
    %2796 = vadd.xlane.f32.xlu0 %v2795
    %v2797 = vpop.xlane.xlu0 %2796
    %v2798 = vsel %vm127, %v2695, 0.0
    %2799 = vadd.xlane.f32.xlu0 %v2798
    %v2800 = vpop.xlane.xlu0 %2799
    %v2801 = vsel %vm127, %v2697, 0.0
    %2802 = vadd.xlane.f32.xlu0 %v2801
    %v2803 = vpop.xlane.xlu0 %2802
    %v2804 = vsel %vm127, %v2699, 0.0
    %2805 = vadd.xlane.f32.xlu0 %v2804
    %v2806 = vpop.xlane.xlu0 %2805
    %v2807 = vsel %vm127, %v2701, 0.0
    %2808 = vadd.xlane.f32.xlu0 %v2807
    %v2809 = vpop.xlane.xlu0 %2808
    %v2810 = vsel %vm127, %v2703, 0.0
    %2811 = vadd.xlane.f32.xlu0 %v2810
    %v2812 = vpop.xlane.xlu0 %2811
    %v2813 = vsel %vm127, %v2705, 0.0
    %2814 = vadd.xlane.f32.xlu0 %v2813
    %v2815 = vpop.xlane.xlu0 %2814
    %v2816 = vsel %vm127, %v2707, 0.0
    %2817 = vadd.xlane.f32.xlu0 %v2816
    %v2818 = vpop.xlane.xlu0 %2817
    %v2819 = vsel %vm127, %v2709, 0.0
    %2820 = vadd.xlane.f32.xlu0 %v2819
    %v2821 = vpop.xlane.xlu0 %2820
    %v2822 = vsel %vm127, %v2711, 0.0
    %2823 = vadd.xlane.f32.xlu0 %v2822
    %v2824 = vpop.xlane.xlu0 %2823
    %v2825 = vsel %vm127, %v2713, 0.0
    %2826 = vadd.xlane.f32.xlu0 %v2825
    %v2827 = vpop.xlane.xlu0 %2826
    %v2828 = vsel %vm127, %v2715, 0.0
    %2829 = vadd.xlane.f32.xlu0 %v2828
    %v2830 = vpop.xlane.xlu0 %2829
    %v2831 = vsel %vm127, %v2717, 0.0
    %2832 = vadd.xlane.f32.xlu0 %v2831
    %v2833 = vpop.xlane.xlu0 %2832
    %v2834 = vsel %vm127, %v2719, 0.0
    %2835 = vadd.xlane.f32.xlu0 %v2834
    %v2836 = vpop.xlane.xlu0 %2835
    %v2837 = vsel %vm127, %v2721, 0.0
    %2838 = vadd.xlane.f32.xlu0 %v2837
    %v2839 = vpop.xlane.xlu0 %2838
    %v2840 = vsel %vm127, %v2723, 0.0
    %2841 = vadd.xlane.f32.xlu0 %v2840
    %v2842 = vpop.xlane.xlu0 %2841
    %v2843 = vsel %vm127, %v2725, 0.0
    %2844 = vadd.xlane.f32.xlu0 %v2843
    %v2845 = vpop.xlane.xlu0 %2844
    %v2846 = vsel %vm127, %v2727, 0.0
    %2847 = vadd.xlane.f32.xlu0 %v2846
    %v2848 = vpop.xlane.xlu0 %2847
    %v2849 = vsel %vm127, %v2729, 0.0
    %2850 = vadd.xlane.f32.xlu0 %v2849
    %v2851 = vpop.xlane.xlu0 %2850
    %v2852 = vsel %vm127, %v2731, 0.0
    %2853 = vadd.xlane.f32.xlu0 %v2852
    %v2854 = vpop.xlane.xlu0 %2853
    %v2855 = vsel %vm127, %v2733, 0.0
    %2856 = vadd.xlane.f32.xlu0 %v2855
    %v2857 = vpop.xlane.xlu0 %2856
    %v2858 = vsel %vm127, %v2735, 0.0
    %2859 = vadd.xlane.f32.xlu0 %v2858
    %v2860 = vpop.xlane.xlu0 %2859
    %v2861 = vsel %vm127, %v2737, 0.0
    %2862 = vadd.xlane.f32.xlu0 %v2861
    %v2863 = vpop.xlane.xlu0 %2862
    %v2864 = vsel %vm127, %v2739, 0.0
    %2865 = vadd.xlane.f32.xlu0 %v2864
    %v2866 = vpop.xlane.xlu0 %2865
    %v2867 = vsel %vm127, %v2741, 0.0
    %2868 = vadd.xlane.f32.xlu0 %v2867
    %v2869 = vpop.xlane.xlu0 %2868
    %v2870 = vmul.f32 %v2776, 0.015625
    %v2871 = vmul.f32 %v2779, 0.015625
    %v2872 = vmul.f32 %v2782, 0.015625
    %v2873 = vmul.f32 %v2785, 0.015625
    %v2874 = vmul.f32 %v2788, 0.015625
    %v2875 = vmul.f32 %v2791, 0.015625
    %v2876 = vmul.f32 %v2794, 0.015625
    %v2877 = vmul.f32 %v2797, 0.015625
    %v2878 = vmul.f32 %v2800, 0.015625
    %v2879 = vmul.f32 %v2803, 0.015625
    %v2880 = vmul.f32 %v2806, 0.015625
    %v2881 = vmul.f32 %v2809, 0.015625
    %v2882 = vmul.f32 %v2812, 0.015625
    %v2883 = vmul.f32 %v2815, 0.015625
    %v2884 = vmul.f32 %v2818, 0.015625
    %v2885 = vmul.f32 %v2821, 0.015625
    %v2886 = vmul.f32 %v2824, 0.015625
    %v2887 = vmul.f32 %v2827, 0.015625
    %v2888 = vmul.f32 %v2830, 0.015625
    %v2889 = vmul.f32 %v2833, 0.015625
    %v2890 = vmul.f32 %v2836, 0.015625
    %v2891 = vmul.f32 %v2839, 0.015625
    %v2892 = vmul.f32 %v2842, 0.015625
    %v2893 = vmul.f32 %v2845, 0.015625
    %v2894 = vmul.f32 %v2848, 0.015625
    %v2895 = vmul.f32 %v2851, 0.015625
    %v2896 = vmul.f32 %v2854, 0.015625
    %v2897 = vmul.f32 %v2857, 0.015625
    %v2898 = vmul.f32 %v2860, 0.015625
    %v2899 = vmul.f32 %v2863, 0.015625
    %v2900 = vmul.f32 %v2866, 0.015625
    %v2901 = vmul.f32 %v2869, 0.015625
    %v2902 = vld [vmem:[#allocation5] sm:$0xff]
    %v2903 = vld [vmem:[#allocation5 + $0x8] sm:$0xff]
    %v2904 = vld [vmem:[#allocation5 + $0x10] sm:$0xff]
    %v2905 = vld [vmem:[#allocation5 + $0x18] sm:$0xff]
    %v2906 = vld [vmem:[#allocation5 + $0x20] sm:$0xff]
    %v2907 = vld [vmem:[#allocation5 + $0x28] sm:$0xff]
    %v2908 = vld [vmem:[#allocation5 + $0x30] sm:$0xff]
    %v2909 = vld [vmem:[#allocation5 + $0x38] sm:$0xff]
    %v2910 = vld [vmem:[#allocation5 + $0x40] sm:$0xff]
    %v2911 = vld [vmem:[#allocation5 + $0x48] sm:$0xff]
    %v2912 = vld [vmem:[#allocation5 + $0x50] sm:$0xff]
    %v2913 = vld [vmem:[#allocation5 + $0x58] sm:$0xff]
    %v2914 = vld [vmem:[#allocation5 + $0x60] sm:$0xff]
    %v2915 = vld [vmem:[#allocation5 + $0x68] sm:$0xff]
    %v2916 = vld [vmem:[#allocation5 + $0x70] sm:$0xff]
    %v2917 = vld [vmem:[#allocation5 + $0x78] sm:$0xff]
    %v2918 = vld [vmem:[#allocation5 + $0x80] sm:$0xff]
    %v2919 = vld [vmem:[#allocation5 + $0x88] sm:$0xff]
    %v2920 = vld [vmem:[#allocation5 + $0x90] sm:$0xff]
    %v2921 = vld [vmem:[#allocation5 + $0x98] sm:$0xff]
    %v2922 = vld [vmem:[#allocation5 + $0xa0] sm:$0xff]
    %v2923 = vld [vmem:[#allocation5 + $0xa8] sm:$0xff]
    %v2924 = vld [vmem:[#allocation5 + $0xb0] sm:$0xff]
    %v2925 = vld [vmem:[#allocation5 + $0xb8] sm:$0xff]
    %v2926 = vld [vmem:[#allocation5 + $0xc0] sm:$0xff]
    %v2927 = vld [vmem:[#allocation5 + $0xc8] sm:$0xff]
    %v2928 = vld [vmem:[#allocation5 + $0xd0] sm:$0xff]
    %v2929 = vld [vmem:[#allocation5 + $0xd8] sm:$0xff]
    %v2930 = vld [vmem:[#allocation5 + $0xe0] sm:$0xff]
    %v2931 = vld [vmem:[#allocation5 + $0xe8] sm:$0xff]
    %v2932 = vld [vmem:[#allocation5 + $0xf0] sm:$0xff]
    %v2933 = vld [vmem:[#allocation5 + $0xf8] sm:$0xff]
    %v2934 = vpack.c.bf16 %v2615, %v2614
    %v2935 = vpack.c.bf16 %v2617, %v2616
    %v2936 = vpack.c.bf16 %v2619, %v2618
    %v2937 = vpack.c.bf16 %v2621, %v2620
    %v2938 = vpack.c.bf16 %v2623, %v2622
    %v2939 = vpack.c.bf16 %v2625, %v2624
    %v2940 = vpack.c.bf16 %v2627, %v2626
    %v2941 = vpack.c.bf16 %v2629, %v2628
    %v2942 = vpack.c.bf16 %v2631, %v2630
    %v2943 = vpack.c.bf16 %v2633, %v2632
    %v2944 = vpack.c.bf16 %v2635, %v2634
    %v2945 = vpack.c.bf16 %v2637, %v2636
    %v2946 = vpack.c.bf16 %v2639, %v2638
    %v2947 = vpack.c.bf16 %v2641, %v2640
    %v2948 = vpack.c.bf16 %v2643, %v2642
    %v2949 = vpack.c.bf16 %v2645, %v2644
    %v2950 = vld [vmem:[#allocation7] sm:$0xff]
    %v2951 = vld [vmem:[#allocation7 + $0x8] sm:$0xff]
    %v2952 = vld [vmem:[#allocation7 + $0x10] sm:$0xff]
    %v2953 = vld [vmem:[#allocation7 + $0x18] sm:$0xff]
    %v2954 = vld [vmem:[#allocation7 + $0x20] sm:$0xff]
    %v2955 = vld [vmem:[#allocation7 + $0x28] sm:$0xff]
    %v2956 = vld [vmem:[#allocation7 + $0x30] sm:$0xff]
    %v2957 = vld [vmem:[#allocation7 + $0x38] sm:$0xff]
    %v2958 = vld [vmem:[#allocation7 + $0x40] sm:$0xff]
    %v2959 = vld [vmem:[#allocation7 + $0x48] sm:$0xff]
    %v2960 = vld [vmem:[#allocation7 + $0x50] sm:$0xff]
    %v2961 = vld [vmem:[#allocation7 + $0x58] sm:$0xff]
    %v2962 = vld [vmem:[#allocation7 + $0x60] sm:$0xff]
    %v2963 = vld [vmem:[#allocation7 + $0x68] sm:$0xff]
    %v2964 = vld [vmem:[#allocation7 + $0x70] sm:$0xff]
    %v2965 = vld [vmem:[#allocation7 + $0x78] sm:$0xff]
    %v2966 = vld [vmem:[#allocation7 + $0x80] sm:$0xff]
    %v2967 = vld [vmem:[#allocation7 + $0x88] sm:$0xff]
    %v2968 = vld [vmem:[#allocation7 + $0x90] sm:$0xff]
    %v2969 = vld [vmem:[#allocation7 + $0x98] sm:$0xff]
    %v2970 = vld [vmem:[#allocation7 + $0xa0] sm:$0xff]
    %v2971 = vld [vmem:[#allocation7 + $0xa8] sm:$0xff]
    %v2972 = vld [vmem:[#allocation7 + $0xb0] sm:$0xff]
    %v2973 = vld [vmem:[#allocation7 + $0xb8] sm:$0xff]
    %v2974 = vld [vmem:[#allocation7 + $0xc0] sm:$0xff]
    %v2975 = vld [vmem:[#allocation7 + $0xc8] sm:$0xff]
    %v2976 = vld [vmem:[#allocation7 + $0xd0] sm:$0xff]
    %v2977 = vld [vmem:[#allocation7 + $0xd8] sm:$0xff]
    %v2978 = vld [vmem:[#allocation7 + $0xe0] sm:$0xff]
    %v2979 = vld [vmem:[#allocation7 + $0xe8] sm:$0xff]
    %v2980 = vld [vmem:[#allocation7 + $0xf0] sm:$0xff]
    %v2981 = vld [vmem:[#allocation7 + $0xf8] sm:$0xff]
    %v2982 = vpack.c.bf16 %v2871, %v2870
    %v2983 = vpack.c.bf16 %v2873, %v2872
    %v2984 = vpack.c.bf16 %v2875, %v2874
    %v2985 = vpack.c.bf16 %v2877, %v2876
    %v2986 = vpack.c.bf16 %v2879, %v2878
    %v2987 = vpack.c.bf16 %v2881, %v2880
    %v2988 = vpack.c.bf16 %v2883, %v2882
    %v2989 = vpack.c.bf16 %v2885, %v2884
    %v2990 = vpack.c.bf16 %v2887, %v2886
    %v2991 = vpack.c.bf16 %v2889, %v2888
    %v2992 = vpack.c.bf16 %v2891, %v2890
    %v2993 = vpack.c.bf16 %v2893, %v2892
    %v2994 = vpack.c.bf16 %v2895, %v2894
    %v2995 = vpack.c.bf16 %v2897, %v2896
    %v2996 = vpack.c.bf16 %v2899, %v2898
    %v2997 = vpack.c.bf16 %v2901, %v2900
    %v3030 = vunpack.c.l.b16 %v2950
    %v3031 = vunpack.c.h.b16 %v2950
    %v3032 = vunpack.c.l.b16 %v2951
    %v3033 = vunpack.c.h.b16 %v2951
    %v3034 = vunpack.c.l.b16 %v2952
    %v3035 = vunpack.c.h.b16 %v2952
    %v3036 = vunpack.c.l.b16 %v2953
    %v3037 = vunpack.c.h.b16 %v2953
    %v3038 = vunpack.c.l.b16 %v2954
    %v3039 = vunpack.c.h.b16 %v2954
    %v3040 = vunpack.c.l.b16 %v2955
    %v3041 = vunpack.c.h.b16 %v2955
    %v3042 = vunpack.c.l.b16 %v2956
    %v3043 = vunpack.c.h.b16 %v2956
    %v3044 = vunpack.c.l.b16 %v2957
    %v3045 = vunpack.c.h.b16 %v2957
    %v3046 = vunpack.c.l.b16 %v2958
    %v3047 = vunpack.c.h.b16 %v2958
    %v3048 = vunpack.c.l.b16 %v2959
    %v3049 = vunpack.c.h.b16 %v2959
    %v3050 = vunpack.c.l.b16 %v2960
    %v3051 = vunpack.c.h.b16 %v2960
    %v3052 = vunpack.c.l.b16 %v2961
    %v3053 = vunpack.c.h.b16 %v2961
    %v3054 = vunpack.c.l.b16 %v2962
    %v3055 = vunpack.c.h.b16 %v2962
    %v3056 = vunpack.c.l.b16 %v2963
    %v3057 = vunpack.c.h.b16 %v2963
    %v3058 = vunpack.c.l.b16 %v2964
    %v3059 = vunpack.c.h.b16 %v2964
    %v3060 = vunpack.c.l.b16 %v2965
    %v3061 = vunpack.c.h.b16 %v2965
    %v3062 = vunpack.c.l.b16 %v2966
    %v3063 = vunpack.c.h.b16 %v2966
    %v3064 = vunpack.c.l.b16 %v2967
    %v3065 = vunpack.c.h.b16 %v2967
    %v3066 = vunpack.c.l.b16 %v2968
    %v3067 = vunpack.c.h.b16 %v2968
    %v3068 = vunpack.c.l.b16 %v2969
    %v3069 = vunpack.c.h.b16 %v2969
    %v3070 = vunpack.c.l.b16 %v2970
    %v3071 = vunpack.c.h.b16 %v2970
    %v3072 = vunpack.c.l.b16 %v2971
    %v3073 = vunpack.c.h.b16 %v2971
    %v3074 = vunpack.c.l.b16 %v2972
    %v3075 = vunpack.c.h.b16 %v2972
    %v3076 = vunpack.c.l.b16 %v2973
    %v3077 = vunpack.c.h.b16 %v2973
    %v3078 = vunpack.c.l.b16 %v2974
    %v3079 = vunpack.c.h.b16 %v2974
    %v3080 = vunpack.c.l.b16 %v2975
    %v3081 = vunpack.c.h.b16 %v2975
    %v3082 = vunpack.c.l.b16 %v2976
    %v3083 = vunpack.c.h.b16 %v2976
    %v3084 = vunpack.c.l.b16 %v2977
    %v3085 = vunpack.c.h.b16 %v2977
    %v3086 = vunpack.c.l.b16 %v2978
    %v3087 = vunpack.c.h.b16 %v2978
    %v3088 = vunpack.c.l.b16 %v2979
    %v3089 = vunpack.c.h.b16 %v2979
    %v3090 = vunpack.c.l.b16 %v2980
    %v3091 = vunpack.c.h.b16 %v2980
    %v3092 = vunpack.c.l.b16 %v2981
    %v3093 = vunpack.c.h.b16 %v2981
    %v3094 = vpack.c.b16 %v3032, %v3030
    %v3095 = vpack.c.b16 %v3033, %v3031
    %v3096 = vpack.c.b16 %v3036, %v3034
    %v3097 = vpack.c.b16 %v3037, %v3035
    %v3098 = vpack.c.b16 %v3040, %v3038
    %v3099 = vpack.c.b16 %v3041, %v3039
    %v3100 = vpack.c.b16 %v3044, %v3042
    %v3101 = vpack.c.b16 %v3045, %v3043
    %v3102 = vpack.c.b16 %v3048, %v3046
    %v3103 = vpack.c.b16 %v3049, %v3047
    %v3104 = vpack.c.b16 %v3052, %v3050
    %v3105 = vpack.c.b16 %v3053, %v3051
    %v3106 = vpack.c.b16 %v3056, %v3054
    %v3107 = vpack.c.b16 %v3057, %v3055
    %v3108 = vpack.c.b16 %v3060, %v3058
    %v3109 = vpack.c.b16 %v3061, %v3059
    %v3110 = vpack.c.b16 %v3064, %v3062
    %v3111 = vpack.c.b16 %v3065, %v3063
    %v3112 = vpack.c.b16 %v3068, %v3066
    %v3113 = vpack.c.b16 %v3069, %v3067
    %v3114 = vpack.c.b16 %v3072, %v3070
    %v3115 = vpack.c.b16 %v3073, %v3071
    %v3116 = vpack.c.b16 %v3076, %v3074
    %v3117 = vpack.c.b16 %v3077, %v3075
    %v3118 = vpack.c.b16 %v3080, %v3078
    %v3119 = vpack.c.b16 %v3081, %v3079
    %v3120 = vpack.c.b16 %v3084, %v3082
    %v3121 = vpack.c.b16 %v3085, %v3083
    %v3122 = vpack.c.b16 %v3088, %v3086
    %v3123 = vpack.c.b16 %v3089, %v3087
    %v3124 = vpack.c.b16 %v3092, %v3090
    %v3125 = vpack.c.b16 %v3093, %v3091
    %3158 = vmatprep.subr.bf16.mxu0 0
    %3159 = vmatpush1.bf16.msra.mxu0 %v2982
    %3160 = vmatprep.subr.bf16.mxu0 0
    %3161 = vmatpush1.bf16.msra.mxu0 %v2983
    %3162 = vmatprep.subr.bf16.mxu0 0
    %3163 = vmatpush1.bf16.msra.mxu0 %v2984
    %3164 = vmatprep.subr.bf16.mxu0 0
    %3165 = vmatpush1.bf16.msra.mxu0 %v2985
    %3166 = vmatprep.subr.bf16.mxu0 0
    %3167 = vmatpush1.bf16.msra.mxu0 %v2986
    %3168 = vmatprep.subr.bf16.mxu0 0
    %3169 = vmatpush1.bf16.msra.mxu0 %v2987
    %3170 = vmatprep.subr.bf16.mxu0 0
    %3171 = vmatpush1.bf16.msra.mxu0 %v2988
    %3172 = vmatprep.subr.bf16.mxu0 0
    %3173 = vmatpush1.bf16.msra.mxu0 %v2989
    %3174 = vmatprep.subr.bf16.mxu0 0
    %3175 = vmatpush1.bf16.msra.mxu0 %v2990
    %3176 = vmatprep.subr.bf16.mxu0 0
    %3177 = vmatpush1.bf16.msra.mxu0 %v2991
    %3178 = vmatprep.subr.bf16.mxu0 0
    %3179 = vmatpush1.bf16.msra.mxu0 %v2992
    %3180 = vmatprep.subr.bf16.mxu0 0
    %3181 = vmatpush1.bf16.msra.mxu0 %v2993
    %3182 = vmatprep.subr.bf16.mxu0 0
    %3183 = vmatpush1.bf16.msra.mxu0 %v2994
    %3184 = vmatprep.subr.bf16.mxu0 0
    %3185 = vmatpush1.bf16.msra.mxu0 %v2995
    %3186 = vmatprep.subr.bf16.mxu0 0
    %3187 = vmatpush1.bf16.msra.mxu0 %v2996
    %3188 = vmatprep.subr.bf16.mxu0 0
    %3189 = vmatpush1.bf16.msra.mxu0 %v2997
    %3190 = vmatprep.mubr.bf16.mxu0 %v3095
    %3191 = vmatmul.mubr.bf16.gmra.mrb[0].mxu0 %v3094
    %v3192 = vpop.f32.mrb[0].mxu0
    %v3193 = vadd.f32 0.0, %v3192
    %v3194 = vpop.f32.mrb[0].mxu0
    %v3195 = vpop.f32.mrb[0].mxu0
    %v3196 = vadd.f32 0.0, %v3195
    %v3197 = vpop.f32.mrb[0].mxu0
    %3198 = vmatprep.mubr.bf16.mxu0 %v3097
    %3199 = vmatmul.mubr.bf16.gmra.mrb[0].mxu0 %v3096
    %v3200 = vpop.f32.mrb[0].mxu0
    %v3201 = vadd.f32 0.0, %v3200
    %v3202 = vpop.f32.mrb[0].mxu0
    %v3203 = vpop.f32.mrb[0].mxu0
    %v3204 = vadd.f32 0.0, %v3203
    %v3205 = vpop.f32.mrb[0].mxu0
    %3206 = vmatprep.mubr.bf16.mxu0 %v3099
    %3207 = vmatmul.mubr.bf16.gmra.mrb[0].mxu0 %v3098
    %v3208 = vpop.f32.mrb[0].mxu0
    %v3209 = vadd.f32 0.0, %v3208
    %v3210 = vpop.f32.mrb[0].mxu0
    %v3211 = vpop.f32.mrb[0].mxu0
    %v3212 = vadd.f32 0.0, %v3211
    %v3213 = vpop.f32.mrb[0].mxu0
    %3214 = vmatprep.mubr.bf16.mxu0 %v3101
    %3215 = vmatmul.mubr.bf16.gmra.mrb[0].mxu0 %v3100
    %v3216 = vpop.f32.mrb[0].mxu0
    %v3217 = vadd.f32 0.0, %v3216
    %v3218 = vpop.f32.mrb[0].mxu0
    %v3219 = vpop.f32.mrb[0].mxu0
    %v3220 = vadd.f32 0.0, %v3219
    %v3221 = vpop.f32.mrb[0].mxu0
    %3222 = vmatprep.mubr.bf16.mxu0 %v3103
    %3223 = vmatmul.mubr.bf16.gmra.mrb[0].mxu0 %v3102
    %v3224 = vpop.f32.mrb[0].mxu0
    %v3225 = vadd.f32 0.0, %v3224
    %v3226 = vpop.f32.mrb[0].mxu0
    %v3227 = vpop.f32.mrb[0].mxu0
    %v3228 = vadd.f32 0.0, %v3227
    %v3229 = vpop.f32.mrb[0].mxu0
    %3230 = vmatprep.mubr.bf16.mxu0 %v3105
    %3231 = vmatmul.mubr.bf16.gmra.mrb[0].mxu0 %v3104
    %v3232 = vpop.f32.mrb[0].mxu0
    %v3233 = vadd.f32 0.0, %v3232
    %v3234 = vpop.f32.mrb[0].mxu0
    %v3235 = vpop.f32.mrb[0].mxu0
    %v3236 = vadd.f32 0.0, %v3235
    %v3237 = vpop.f32.mrb[0].mxu0
    %3238 = vmatprep.mubr.bf16.mxu0 %v3107
    %3239 = vmatmul.mubr.bf16.gmra.mrb[0].mxu0 %v3106
    %v3240 = vpop.f32.mrb[0].mxu0
    %v3241 = vadd.f32 0.0, %v3240
    %v3242 = vpop.f32.mrb[0].mxu0
    %v3243 = vpop.f32.mrb[0].mxu0
    %v3244 = vadd.f32 0.0, %v3243
    %v3245 = vpop.f32.mrb[0].mxu0
    %3246 = vmatprep.mubr.bf16.mxu0 %v3109
    %3247 = vmatmul.mubr.bf16.gmra.mrb[0].mxu0 %v3108
    %v3248 = vpop.f32.mrb[0].mxu0
    %v3249 = vadd.f32 0.0, %v3248
    %v3250 = vpop.f32.mrb[0].mxu0
    %v3251 = vpop.f32.mrb[0].mxu0
    %v3252 = vadd.f32 0.0, %v3251
    %v3253 = vpop.f32.mrb[0].mxu0
    %3254 = vmatprep.mubr.bf16.mxu0 %v3111
    %3255 = vmatmul.mubr.bf16.gmra.mrb[0].mxu0 %v3110
    %v3256 = vpop.f32.mrb[0].mxu0
    %v3257 = vadd.f32 0.0, %v3256
    %v3258 = vpop.f32.mrb[0].mxu0
    %v3259 = vpop.f32.mrb[0].mxu0
    %v3260 = vadd.f32 0.0, %v3259
    %v3261 = vpop.f32.mrb[0].mxu0
    %3262 = vmatprep.mubr.bf16.mxu0 %v3113
    %3263 = vmatmul.mubr.bf16.gmra.mrb[0].mxu0 %v3112
    %v3264 = vpop.f32.mrb[0].mxu0
    %v3265 = vadd.f32 0.0, %v3264
    %v3266 = vpop.f32.mrb[0].mxu0
    %v3267 = vpop.f32.mrb[0].mxu0
    %v3268 = vadd.f32 0.0, %v3267
    %v3269 = vpop.f32.mrb[0].mxu0
    %3270 = vmatprep.mubr.bf16.mxu0 %v3115
    %3271 = vmatmul.mubr.bf16.gmra.mrb[0].mxu0 %v3114
    %v3272 = vpop.f32.mrb[0].mxu0
    %v3273 = vadd.f32 0.0, %v3272
    %v3274 = vpop.f32.mrb[0].mxu0
    %v3275 = vpop.f32.mrb[0].mxu0
    %v3276 = vadd.f32 0.0, %v3275
    %v3277 = vpop.f32.mrb[0].mxu0
    %3278 = vmatprep.mubr.bf16.mxu0 %v3117
    %3279 = vmatmul.mubr.bf16.gmra.mrb[0].mxu0 %v3116
    %v3280 = vpop.f32.mrb[0].mxu0
    %v3281 = vadd.f32 0.0, %v3280
    %v3282 = vpop.f32.mrb[0].mxu0
    %v3283 = vpop.f32.mrb[0].mxu0
    %v3284 = vadd.f32 0.0, %v3283
    %v3285 = vpop.f32.mrb[0].mxu0
    %3286 = vmatprep.mubr.bf16.mxu0 %v3119
    %3287 = vmatmul.mubr.bf16.gmra.mrb[0].mxu0 %v3118
    %v3288 = vpop.f32.mrb[0].mxu0
    %v3289 = vadd.f32 0.0, %v3288
    %v3290 = vpop.f32.mrb[0].mxu0
    %v3291 = vpop.f32.mrb[0].mxu0
    %v3292 = vadd.f32 0.0, %v3291
    %v3293 = vpop.f32.mrb[0].mxu0
    %3294 = vmatprep.mubr.bf16.mxu0 %v3121
    %3295 = vmatmul.mubr.bf16.gmra.mrb[0].mxu0 %v3120
    %v3296 = vpop.f32.mrb[0].mxu0
    %v3297 = vadd.f32 0.0, %v3296
    %v3298 = vpop.f32.mrb[0].mxu0
    %v3299 = vpop.f32.mrb[0].mxu0
    %v3300 = vadd.f32 0.0, %v3299
    %v3301 = vpop.f32.mrb[0].mxu0
    %3302 = vmatprep.mubr.bf16.mxu0 %v3123
    %3303 = vmatmul.mubr.bf16.gmra.mrb[0].mxu0 %v3122
    %v3304 = vpop.f32.mrb[0].mxu0
    %v3305 = vadd.f32 0.0, %v3304
    %v3306 = vpop.f32.mrb[0].mxu0
    %v3307 = vpop.f32.mrb[0].mxu0
    %v3308 = vadd.f32 0.0, %v3307
    %v3309 = vpop.f32.mrb[0].mxu0
    %3310 = vmatprep.mubr.bf16.mxu0 %v3125
    %3311 = vmatmul.mubr.bf16.gmra.mrb[0].mxu0 %v3124
    %v3312 = vpop.f32.mrb[0].mxu0
    %v3313 = vadd.f32 0.0, %v3312
    %v3314 = vpop.f32.mrb[0].mxu0
    %v3315 = vpop.f32.mrb[0].mxu0
    %v3316 = vadd.f32 0.0, %v3315
    %v3317 = vpop.f32.mrb[0].mxu0
    %3318 = vdwg.mxu0
    %v3351 = vunpack.c.l.b16 %v2902
    %v3352 = vunpack.c.h.b16 %v2902
    %v3353 = vunpack.c.l.b16 %v2903
    %v3354 = vunpack.c.h.b16 %v2903
    %v3355 = vunpack.c.l.b16 %v2904
    %v3356 = vunpack.c.h.b16 %v2904
    %v3357 = vunpack.c.l.b16 %v2905
    %v3358 = vunpack.c.h.b16 %v2905
    %v3359 = vunpack.c.l.b16 %v2906
    %v3360 = vunpack.c.h.b16 %v2906
    %v3361 = vunpack.c.l.b16 %v2907
    %v3362 = vunpack.c.h.b16 %v2907
    %v3363 = vunpack.c.l.b16 %v2908
    %v3364 = vunpack.c.h.b16 %v2908
    %v3365 = vunpack.c.l.b16 %v2909
    %v3366 = vunpack.c.h.b16 %v2909
    %v3367 = vunpack.c.l.b16 %v2910
    %v3368 = vunpack.c.h.b16 %v2910
    %v3369 = vunpack.c.l.b16 %v2911
    %v3370 = vunpack.c.h.b16 %v2911
    %v3371 = vunpack.c.l.b16 %v2912
    %v3372 = vunpack.c.h.b16 %v2912
    %v3373 = vunpack.c.l.b16 %v2913
    %v3374 = vunpack.c.h.b16 %v2913
    %v3375 = vunpack.c.l.b16 %v2914
    %v3376 = vunpack.c.h.b16 %v2914
    %v3377 = vunpack.c.l.b16 %v2915
    %v3378 = vunpack.c.h.b16 %v2915
    %v3379 = vunpack.c.l.b16 %v2916
    %v3380 = vunpack.c.h.b16 %v2916
    %v3381 = vunpack.c.l.b16 %v2917
    %v3382 = vunpack.c.h.b16 %v2917
    %v3383 = vunpack.c.l.b16 %v2918
    %v3384 = vunpack.c.h.b16 %v2918
    %v3385 = vunpack.c.l.b16 %v2919
    %v3386 = vunpack.c.h.b16 %v2919
    %v3387 = vunpack.c.l.b16 %v2920
    %v3388 = vunpack.c.h.b16 %v2920
    %v3389 = vunpack.c.l.b16 %v2921
    %v3390 = vunpack.c.h.b16 %v2921
    %v3391 = vunpack.c.l.b16 %v2922
    %v3392 = vunpack.c.h.b16 %v2922
    %v3393 = vunpack.c.l.b16 %v2923
    %v3394 = vunpack.c.h.b16 %v2923
    %v3395 = vunpack.c.l.b16 %v2924
    %v3396 = vunpack.c.h.b16 %v2924
    %v3397 = vunpack.c.l.b16 %v2925
    %v3398 = vunpack.c.h.b16 %v2925
    %v3399 = vunpack.c.l.b16 %v2926
    %v3400 = vunpack.c.h.b16 %v2926
    %v3401 = vunpack.c.l.b16 %v2927
    %v3402 = vunpack.c.h.b16 %v2927
    %v3403 = vunpack.c.l.b16 %v2928
    %v3404 = vunpack.c.h.b16 %v2928
    %v3405 = vunpack.c.l.b16 %v2929
    %v3406 = vunpack.c.h.b16 %v2929
    %v3407 = vunpack.c.l.b16 %v2930
    %v3408 = vunpack.c.h.b16 %v2930
    %v3409 = vunpack.c.l.b16 %v2931
    %v3410 = vunpack.c.h.b16 %v2931
    %v3411 = vunpack.c.l.b16 %v2932
    %v3412 = vunpack.c.h.b16 %v2932
    %v3413 = vunpack.c.l.b16 %v2933
    %v3414 = vunpack.c.h.b16 %v2933
    %v3415 = vpack.c.b16 %v3353, %v3351
    %v3416 = vpack.c.b16 %v3354, %v3352
    %v3417 = vpack.c.b16 %v3357, %v3355
    %v3418 = vpack.c.b16 %v3358, %v3356
    %v3419 = vpack.c.b16 %v3361, %v3359
    %v3420 = vpack.c.b16 %v3362, %v3360
    %v3421 = vpack.c.b16 %v3365, %v3363
    %v3422 = vpack.c.b16 %v3366, %v3364
    %v3423 = vpack.c.b16 %v3369, %v3367
    %v3424 = vpack.c.b16 %v3370, %v3368
    %v3425 = vpack.c.b16 %v3373, %v3371
    %v3426 = vpack.c.b16 %v3374, %v3372
    %v3427 = vpack.c.b16 %v3377, %v3375
    %v3428 = vpack.c.b16 %v3378, %v3376
    %v3429 = vpack.c.b16 %v3381, %v3379
    %v3430 = vpack.c.b16 %v3382, %v3380
    %v3431 = vpack.c.b16 %v3385, %v3383
    %v3432 = vpack.c.b16 %v3386, %v3384
    %v3433 = vpack.c.b16 %v3389, %v3387
    %v3434 = vpack.c.b16 %v3390, %v3388
    %v3435 = vpack.c.b16 %v3393, %v3391
    %v3436 = vpack.c.b16 %v3394, %v3392
    %v3437 = vpack.c.b16 %v3397, %v3395
    %v3438 = vpack.c.b16 %v3398, %v3396
    %v3439 = vpack.c.b16 %v3401, %v3399
    %v3440 = vpack.c.b16 %v3402, %v3400
    %v3441 = vpack.c.b16 %v3405, %v3403
    %v3442 = vpack.c.b16 %v3406, %v3404
    %v3443 = vpack.c.b16 %v3409, %v3407
    %v3444 = vpack.c.b16 %v3410, %v3408
    %v3445 = vpack.c.b16 %v3413, %v3411
    %v3446 = vpack.c.b16 %v3414, %v3412
    %3479 = vmatprep.subr.bf16.mxu0 0
    %3480 = vmatpush1.bf16.msra.mxu0 %v2934
    %3481 = vmatprep.subr.bf16.mxu0 0
    %3482 = vmatpush1.bf16.msra.mxu0 %v2935
    %3483 = vmatprep.subr.bf16.mxu0 0
    %3484 = vmatpush1.bf16.msra.mxu0 %v2936
    %3485 = vmatprep.subr.bf16.mxu0 0
    %3486 = vmatpush1.bf16.msra.mxu0 %v2937
    %3487 = vmatprep.subr.bf16.mxu0 0
    %3488 = vmatpush1.bf16.msra.mxu0 %v2938
    %3489 = vmatprep.subr.bf16.mxu0 0
    %3490 = vmatpush1.bf16.msra.mxu0 %v2939
    %3491 = vmatprep.subr.bf16.mxu0 0
    %3492 = vmatpush1.bf16.msra.mxu0 %v2940
    %3493 = vmatprep.subr.bf16.mxu0 0
    %3494 = vmatpush1.bf16.msra.mxu0 %v2941
    %3495 = vmatprep.subr.bf16.mxu0 0
    %3496 = vmatpush1.bf16.msra.mxu0 %v2942
    %3497 = vmatprep.subr.bf16.mxu0 0
    %3498 = vmatpush1.bf16.msra.mxu0 %v2943
    %3499 = vmatprep.subr.bf16.mxu0 0
    %3500 = vmatpush1.bf16.msra.mxu0 %v2944
    %3501 = vmatprep.subr.bf16.mxu0 0
    %3502 = vmatpush1.bf16.msra.mxu0 %v2945
    %3503 = vmatprep.subr.bf16.mxu0 0
    %3504 = vmatpush1.bf16.msra.mxu0 %v2946
    %3505 = vmatprep.subr.bf16.mxu0 0
    %3506 = vmatpush1.bf16.msra.mxu0 %v2947
    %3507 = vmatprep.subr.bf16.mxu0 0
    %3508 = vmatpush1.bf16.msra.mxu0 %v2948
    %3509 = vmatprep.subr.bf16.mxu0 0
    %3510 = vmatpush1.bf16.msra.mxu0 %v2949
    %3511 = vmatprep.mubr.bf16.mxu0 %v3416
    %3512 = vmatmul.mubr.bf16.gmra.mrb[0].mxu0 %v3415
    %v3513 = vpop.f32.mrb[0].mxu0
    %v3514 = vadd.f32 %v3193, %v3513
    %v3515 = vpop.f32.mrb[0].mxu0
    %v3516 = vpop.f32.mrb[0].mxu0
    %v3517 = vadd.f32 %v3196, %v3516
    %v3518 = vpop.f32.mrb[0].mxu0
    %3519 = vmatprep.mubr.bf16.mxu0 %v3418
    %3520 = vmatmul.mubr.bf16.gmra.mrb[0].mxu0 %v3417
    %v3521 = vpop.f32.mrb[0].mxu0
    %v3522 = vadd.f32 %v3201, %v3521
    %v3523 = vpop.f32.mrb[0].mxu0
    %v3524 = vpop.f32.mrb[0].mxu0
    %v3525 = vadd.f32 %v3204, %v3524
    %v3526 = vpop.f32.mrb[0].mxu0
    %3527 = vmatprep.mubr.bf16.mxu0 %v3420
    %3528 = vmatmul.mubr.bf16.gmra.mrb[0].mxu0 %v3419
    %v3529 = vpop.f32.mrb[0].mxu0
    %v3530 = vadd.f32 %v3209, %v3529
    %v3531 = vpop.f32.mrb[0].mxu0
    %v3532 = vpop.f32.mrb[0].mxu0
    %v3533 = vadd.f32 %v3212, %v3532
    %v3534 = vpop.f32.mrb[0].mxu0
    %3535 = vmatprep.mubr.bf16.mxu0 %v3422
    %3536 = vmatmul.mubr.bf16.gmra.mrb[0].mxu0 %v3421
    %v3537 = vpop.f32.mrb[0].mxu0
    %v3538 = vadd.f32 %v3217, %v3537
    %v3539 = vpop.f32.mrb[0].mxu0
    %v3540 = vpop.f32.mrb[0].mxu0
    %v3541 = vadd.f32 %v3220, %v3540
    %v3542 = vpop.f32.mrb[0].mxu0
    %3543 = vmatprep.mubr.bf16.mxu0 %v3424
    %3544 = vmatmul.mubr.bf16.gmra.mrb[0].mxu0 %v3423
    %v3545 = vpop.f32.mrb[0].mxu0
    %v3546 = vadd.f32 %v3225, %v3545
    %v3547 = vpop.f32.mrb[0].mxu0
    %v3548 = vpop.f32.mrb[0].mxu0
    %v3549 = vadd.f32 %v3228, %v3548
    %v3550 = vpop.f32.mrb[0].mxu0
    %3551 = vmatprep.mubr.bf16.mxu0 %v3426
    %3552 = vmatmul.mubr.bf16.gmra.mrb[0].mxu0 %v3425
    %v3553 = vpop.f32.mrb[0].mxu0
    %v3554 = vadd.f32 %v3233, %v3553
    %v3555 = vpop.f32.mrb[0].mxu0
    %v3556 = vpop.f32.mrb[0].mxu0
    %v3557 = vadd.f32 %v3236, %v3556
    %v3558 = vpop.f32.mrb[0].mxu0
    %3559 = vmatprep.mubr.bf16.mxu0 %v3428
    %3560 = vmatmul.mubr.bf16.gmra.mrb[0].mxu0 %v3427
    %v3561 = vpop.f32.mrb[0].mxu0
    %v3562 = vadd.f32 %v3241, %v3561
    %v3563 = vpop.f32.mrb[0].mxu0
    %v3564 = vpop.f32.mrb[0].mxu0
    %v3565 = vadd.f32 %v3244, %v3564
    %v3566 = vpop.f32.mrb[0].mxu0
    %3567 = vmatprep.mubr.bf16.mxu0 %v3430
    %3568 = vmatmul.mubr.bf16.gmra.mrb[0].mxu0 %v3429
    %v3569 = vpop.f32.mrb[0].mxu0
    %v3570 = vadd.f32 %v3249, %v3569
    %v3571 = vpop.f32.mrb[0].mxu0
    %v3572 = vpop.f32.mrb[0].mxu0
    %v3573 = vadd.f32 %v3252, %v3572
    %v3574 = vpop.f32.mrb[0].mxu0
    %3575 = vmatprep.mubr.bf16.mxu0 %v3432
    %3576 = vmatmul.mubr.bf16.gmra.mrb[0].mxu0 %v3431
    %v3577 = vpop.f32.mrb[0].mxu0
    %v3578 = vadd.f32 %v3257, %v3577
    %v3579 = vpop.f32.mrb[0].mxu0
    %v3580 = vpop.f32.mrb[0].mxu0
    %v3581 = vadd.f32 %v3260, %v3580
    %v3582 = vpop.f32.mrb[0].mxu0
    %3583 = vmatprep.mubr.bf16.mxu0 %v3434
    %3584 = vmatmul.mubr.bf16.gmra.mrb[0].mxu0 %v3433
    %v3585 = vpop.f32.mrb[0].mxu0
    %v3586 = vadd.f32 %v3265, %v3585
    %v3587 = vpop.f32.mrb[0].mxu0
    %v3588 = vpop.f32.mrb[0].mxu0
    %v3589 = vadd.f32 %v3268, %v3588
    %v3590 = vpop.f32.mrb[0].mxu0
    %3591 = vmatprep.mubr.bf16.mxu0 %v3436
    %3592 = vmatmul.mubr.bf16.gmra.mrb[0].mxu0 %v3435
    %v3593 = vpop.f32.mrb[0].mxu0
    %v3594 = vadd.f32 %v3273, %v3593
    %v3595 = vpop.f32.mrb[0].mxu0
    %v3596 = vpop.f32.mrb[0].mxu0
    %v3597 = vadd.f32 %v3276, %v3596
    %v3598 = vpop.f32.mrb[0].mxu0
    %3599 = vmatprep.mubr.bf16.mxu0 %v3438
    %3600 = vmatmul.mubr.bf16.gmra.mrb[0].mxu0 %v3437
    %v3601 = vpop.f32.mrb[0].mxu0
    %v3602 = vadd.f32 %v3281, %v3601
    %v3603 = vpop.f32.mrb[0].mxu0
    %v3604 = vpop.f32.mrb[0].mxu0
    %v3605 = vadd.f32 %v3284, %v3604
    %v3606 = vpop.f32.mrb[0].mxu0
    %3607 = vmatprep.mubr.bf16.mxu0 %v3440
    %3608 = vmatmul.mubr.bf16.gmra.mrb[0].mxu0 %v3439
    %v3609 = vpop.f32.mrb[0].mxu0
    %v3610 = vadd.f32 %v3289, %v3609
    %v3611 = vpop.f32.mrb[0].mxu0
    %v3612 = vpop.f32.mrb[0].mxu0
    %v3613 = vadd.f32 %v3292, %v3612
    %v3614 = vpop.f32.mrb[0].mxu0
    %3615 = vmatprep.mubr.bf16.mxu0 %v3442
    %3616 = vmatmul.mubr.bf16.gmra.mrb[0].mxu0 %v3441
    %v3617 = vpop.f32.mrb[0].mxu0
    %v3618 = vadd.f32 %v3297, %v3617
    %v3619 = vpop.f32.mrb[0].mxu0
    %v3620 = vpop.f32.mrb[0].mxu0
    %v3621 = vadd.f32 %v3300, %v3620
    %v3622 = vpop.f32.mrb[0].mxu0
    %3623 = vmatprep.mubr.bf16.mxu0 %v3444
    %3624 = vmatmul.mubr.bf16.gmra.mrb[0].mxu0 %v3443
    %v3625 = vpop.f32.mrb[0].mxu0
    %v3626 = vadd.f32 %v3305, %v3625
    %v3627 = vpop.f32.mrb[0].mxu0
    %v3628 = vpop.f32.mrb[0].mxu0
    %v3629 = vadd.f32 %v3308, %v3628
    %v3630 = vpop.f32.mrb[0].mxu0
    %3631 = vmatprep.mubr.bf16.mxu0 %v3446
    %3632 = vmatmul.mubr.bf16.gmra.mrb[0].mxu0 %v3445
    %v3633 = vpop.f32.mrb[0].mxu0
    %v3634 = vadd.f32 %v3313, %v3633
    %v3635 = vpop.f32.mrb[0].mxu0
    %v3636 = vpop.f32.mrb[0].mxu0
    %v3637 = vadd.f32 %v3316, %v3636
    %v3638 = vpop.f32.mrb[0].mxu0
    %3639 = vdwg.mxu0
    %v3640 = vld [vmem:[%s3] sm:$0xf]
    %v3641 = vld [vmem:[%s3 + $0x4] sm:$0xf]
    %v3642 = vld [vmem:[%s3 + $0x8] sm:$0xf]
    %v3643 = vld [vmem:[%s3 + $0xc] sm:$0xf]
    %v3644 = vld [vmem:[%s3 + $0x10] sm:$0xf]
    %v3645 = vld [vmem:[%s3 + $0x14] sm:$0xf]
    %v3646 = vld [vmem:[%s3 + $0x18] sm:$0xf]
    %v3647 = vld [vmem:[%s3 + $0x1c] sm:$0xf]
    %v3648 = vld [vmem:[%s3 + $0x20] sm:$0xf]
    %v3649 = vld [vmem:[%s3 + $0x24] sm:$0xf]
    %v3650 = vld [vmem:[%s3 + $0x28] sm:$0xf]
    %v3651 = vld [vmem:[%s3 + $0x2c] sm:$0xf]
    %v3652 = vld [vmem:[%s3 + $0x30] sm:$0xf]
    %v3653 = vld [vmem:[%s3 + $0x34] sm:$0xf]
    %v3654 = vld [vmem:[%s3 + $0x38] sm:$0xf]
    %v3655 = vld [vmem:[%s3 + $0x3c] sm:$0xf]
    %v3656 = vld [vmem:[%s3 + $0x40] sm:$0xf]
    %v3657 = vld [vmem:[%s3 + $0x44] sm:$0xf]
    %v3658 = vld [vmem:[%s3 + $0x48] sm:$0xf]
    %v3659 = vld [vmem:[%s3 + $0x4c] sm:$0xf]
    %v3660 = vld [vmem:[%s3 + $0x50] sm:$0xf]
    %v3661 = vld [vmem:[%s3 + $0x54] sm:$0xf]
    %v3662 = vld [vmem:[%s3 + $0x58] sm:$0xf]
    %v3663 = vld [vmem:[%s3 + $0x5c] sm:$0xf]
    %v3664 = vld [vmem:[%s3 + $0x60] sm:$0xf]
    %v3665 = vld [vmem:[%s3 + $0x64] sm:$0xf]
    %v3666 = vld [vmem:[%s3 + $0x68] sm:$0xf]
    %v3667 = vld [vmem:[%s3 + $0x6c] sm:$0xf]
    %v3668 = vld [vmem:[%s3 + $0x70] sm:$0xf]
    %v3669 = vld [vmem:[%s3 + $0x74] sm:$0xf]
    %v3670 = vld [vmem:[%s3 + $0x78] sm:$0xf]
    %v3671 = vld [vmem:[%s3 + $0x7c] sm:$0xf]
    %v3672 = vunpack.c.l.bf16 %v3640
    %v3673 = vunpack.c.l.bf16 %v3641
    %v3674 = vunpack.c.l.bf16 %v3642
    %v3675 = vunpack.c.l.bf16 %v3643
    %v3676 = vunpack.c.l.bf16 %v3644
    %v3677 = vunpack.c.l.bf16 %v3645
    %v3678 = vunpack.c.l.bf16 %v3646
    %v3679 = vunpack.c.l.bf16 %v3647
    %v3680 = vunpack.c.l.bf16 %v3648
    %v3681 = vunpack.c.l.bf16 %v3649
    %v3682 = vunpack.c.l.bf16 %v3650
    %v3683 = vunpack.c.l.bf16 %v3651
    %v3684 = vunpack.c.l.bf16 %v3652
    %v3685 = vunpack.c.l.bf16 %v3653
    %v3686 = vunpack.c.l.bf16 %v3654
    %v3687 = vunpack.c.l.bf16 %v3655
    %v3688 = vunpack.c.l.bf16 %v3656
    %v3689 = vunpack.c.l.bf16 %v3657
    %v3690 = vunpack.c.l.bf16 %v3658
    %v3691 = vunpack.c.l.bf16 %v3659
    %v3692 = vunpack.c.l.bf16 %v3660
    %v3693 = vunpack.c.l.bf16 %v3661
    %v3694 = vunpack.c.l.bf16 %v3662
    %v3695 = vunpack.c.l.bf16 %v3663
    %v3696 = vunpack.c.l.bf16 %v3664
    %v3697 = vunpack.c.l.bf16 %v3665
    %v3698 = vunpack.c.l.bf16 %v3666
    %v3699 = vunpack.c.l.bf16 %v3667
    %v3700 = vunpack.c.l.bf16 %v3668
    %v3701 = vunpack.c.l.bf16 %v3669
    %v3702 = vunpack.c.l.bf16 %v3670
    %v3703 = vunpack.c.l.bf16 %v3671
    %v3704 = vadd.f32 %v3514, %v3672
    %v3705 = vadd.f32 %v3517, %v3673
    %v3706 = vadd.f32 %v3522, %v3674
    %v3707 = vadd.f32 %v3525, %v3675
    %v3708 = vadd.f32 %v3530, %v3676
    %v3709 = vadd.f32 %v3533, %v3677
    %v3710 = vadd.f32 %v3538, %v3678
    %v3711 = vadd.f32 %v3541, %v3679
    %v3712 = vadd.f32 %v3546, %v3680
    %v3713 = vadd.f32 %v3549, %v3681
    %v3714 = vadd.f32 %v3554, %v3682
    %v3715 = vadd.f32 %v3557, %v3683
    %v3716 = vadd.f32 %v3562, %v3684
    %v3717 = vadd.f32 %v3565, %v3685
    %v3718 = vadd.f32 %v3570, %v3686
    %v3719 = vadd.f32 %v3573, %v3687
    %v3720 = vadd.f32 %v3578, %v3688
    %v3721 = vadd.f32 %v3581, %v3689
    %v3722 = vadd.f32 %v3586, %v3690
    %v3723 = vadd.f32 %v3589, %v3691
    %v3724 = vadd.f32 %v3594, %v3692
    %v3725 = vadd.f32 %v3597, %v3693
    %v3726 = vadd.f32 %v3602, %v3694
    %v3727 = vadd.f32 %v3605, %v3695
    %v3728 = vadd.f32 %v3610, %v3696
    %v3729 = vadd.f32 %v3613, %v3697
    %v3730 = vadd.f32 %v3618, %v3698
    %v3731 = vadd.f32 %v3621, %v3699
    %v3732 = vadd.f32 %v3626, %v3700
    %v3733 = vadd.f32 %v3629, %v3701
    %v3734 = vadd.f32 %v3634, %v3702
    %v3735 = vadd.f32 %v3637, %v3703
    %v3736 = vpack.c.bf16 %v3705, %v3704
    %v3737 = vpack.c.bf16 %v3707, %v3706
    %v3738 = vpack.c.bf16 %v3709, %v3708
    %v3739 = vpack.c.bf16 %v3711, %v3710
    %v3740 = vpack.c.bf16 %v3713, %v3712
    %v3741 = vpack.c.bf16 %v3715, %v3714
    %v3742 = vpack.c.bf16 %v3717, %v3716
    %v3743 = vpack.c.bf16 %v3719, %v3718
    %v3744 = vpack.c.bf16 %v3721, %v3720
    %v3745 = vpack.c.bf16 %v3723, %v3722
    %v3746 = vpack.c.bf16 %v3725, %v3724
    %v3747 = vpack.c.bf16 %v3727, %v3726
    %v3748 = vpack.c.bf16 %v3729, %v3728
    %v3749 = vpack.c.bf16 %v3731, %v3730
    %v3750 = vpack.c.bf16 %v3733, %v3732
    %v3751 = vpack.c.bf16 %v3735, %v3734
    %v3752 = vld [vmem:[#allocation8] sm:$0xff]
    %v3753 = vld [vmem:[#allocation8 + $0x8] sm:$0xff]
    %v3754 = vld [vmem:[#allocation8 + $0x10] sm:$0xff]
    %v3755 = vld [vmem:[#allocation8 + $0x18] sm:$0xff]
    %v3756 = vld [vmem:[#allocation8 + $0x20] sm:$0xff]
    %v3757 = vld [vmem:[#allocation8 + $0x28] sm:$0xff]
    %v3758 = vld [vmem:[#allocation8 + $0x30] sm:$0xff]
    %v3759 = vld [vmem:[#allocation8 + $0x38] sm:$0xff]
    %v3760 = vld [vmem:[#allocation8 + $0x40] sm:$0xff]
    %v3761 = vld [vmem:[#allocation8 + $0x48] sm:$0xff]
    %v3762 = vld [vmem:[#allocation8 + $0x50] sm:$0xff]
    %v3763 = vld [vmem:[#allocation8 + $0x58] sm:$0xff]
    %v3764 = vld [vmem:[#allocation8 + $0x60] sm:$0xff]
    %v3765 = vld [vmem:[#allocation8 + $0x68] sm:$0xff]
    %v3766 = vld [vmem:[#allocation8 + $0x70] sm:$0xff]
    %v3767 = vld [vmem:[#allocation8 + $0x78] sm:$0xff]
    %v3768 = vld [vmem:[#allocation8 + $0x80] sm:$0xff]
    %v3769 = vld [vmem:[#allocation8 + $0x88] sm:$0xff]
    %v3770 = vld [vmem:[#allocation8 + $0x90] sm:$0xff]
    %v3771 = vld [vmem:[#allocation8 + $0x98] sm:$0xff]
    %v3772 = vld [vmem:[#allocation8 + $0xa0] sm:$0xff]
    %v3773 = vld [vmem:[#allocation8 + $0xa8] sm:$0xff]
    %v3774 = vld [vmem:[#allocation8 + $0xb0] sm:$0xff]
    %v3775 = vld [vmem:[#allocation8 + $0xb8] sm:$0xff]
    %v3776 = vld [vmem:[#allocation8 + $0xc0] sm:$0xff]
    %v3777 = vld [vmem:[#allocation8 + $0xc8] sm:$0xff]
    %v3778 = vld [vmem:[#allocation8 + $0xd0] sm:$0xff]
    %v3779 = vld [vmem:[#allocation8 + $0xd8] sm:$0xff]
    %v3780 = vld [vmem:[#allocation8 + $0xe0] sm:$0xff]
    %v3781 = vld [vmem:[#allocation8 + $0xe8] sm:$0xff]
    %v3782 = vld [vmem:[#allocation8 + $0xf0] sm:$0xff]
    %v3783 = vld [vmem:[#allocation8 + $0xf8] sm:$0xff]
    %v3816 = vunpack.c.l.b16 %v3752
    %v3817 = vunpack.c.h.b16 %v3752
    %v3818 = vunpack.c.l.b16 %v3753
    %v3819 = vunpack.c.h.b16 %v3753
    %v3820 = vunpack.c.l.b16 %v3754
    %v3821 = vunpack.c.h.b16 %v3754
    %v3822 = vunpack.c.l.b16 %v3755
    %v3823 = vunpack.c.h.b16 %v3755
    %v3824 = vunpack.c.l.b16 %v3756
    %v3825 = vunpack.c.h.b16 %v3756
    %v3826 = vunpack.c.l.b16 %v3757
    %v3827 = vunpack.c.h.b16 %v3757
    %v3828 = vunpack.c.l.b16 %v3758
    %v3829 = vunpack.c.h.b16 %v3758
    %v3830 = vunpack.c.l.b16 %v3759
    %v3831 = vunpack.c.h.b16 %v3759
    %v3832 = vunpack.c.l.b16 %v3760
    %v3833 = vunpack.c.h.b16 %v3760
    %v3834 = vunpack.c.l.b16 %v3761
    %v3835 = vunpack.c.h.b16 %v3761
    %v3836 = vunpack.c.l.b16 %v3762
    %v3837 = vunpack.c.h.b16 %v3762
    %v3838 = vunpack.c.l.b16 %v3763
    %v3839 = vunpack.c.h.b16 %v3763
    %v3840 = vunpack.c.l.b16 %v3764
    %v3841 = vunpack.c.h.b16 %v3764
    %v3842 = vunpack.c.l.b16 %v3765
    %v3843 = vunpack.c.h.b16 %v3765
    %v3844 = vunpack.c.l.b16 %v3766
    %v3845 = vunpack.c.h.b16 %v3766
    %v3846 = vunpack.c.l.b16 %v3767
    %v3847 = vunpack.c.h.b16 %v3767
    %v3848 = vunpack.c.l.b16 %v3768
    %v3849 = vunpack.c.h.b16 %v3768
    %v3850 = vunpack.c.l.b16 %v3769
    %v3851 = vunpack.c.h.b16 %v3769
    %v3852 = vunpack.c.l.b16 %v3770
    %v3853 = vunpack.c.h.b16 %v3770
    %v3854 = vunpack.c.l.b16 %v3771
    %v3855 = vunpack.c.h.b16 %v3771
    %v3856 = vunpack.c.l.b16 %v3772
    %v3857 = vunpack.c.h.b16 %v3772
    %v3858 = vunpack.c.l.b16 %v3773
    %v3859 = vunpack.c.h.b16 %v3773
    %v3860 = vunpack.c.l.b16 %v3774
    %v3861 = vunpack.c.h.b16 %v3774
    %v3862 = vunpack.c.l.b16 %v3775
    %v3863 = vunpack.c.h.b16 %v3775
    %v3864 = vunpack.c.l.b16 %v3776
    %v3865 = vunpack.c.h.b16 %v3776
    %v3866 = vunpack.c.l.b16 %v3777
    %v3867 = vunpack.c.h.b16 %v3777
    %v3868 = vunpack.c.l.b16 %v3778
    %v3869 = vunpack.c.h.b16 %v3778
    %v3870 = vunpack.c.l.b16 %v3779
    %v3871 = vunpack.c.h.b16 %v3779
    %v3872 = vunpack.c.l.b16 %v3780
    %v3873 = vunpack.c.h.b16 %v3780
    %v3874 = vunpack.c.l.b16 %v3781
    %v3875 = vunpack.c.h.b16 %v3781
    %v3876 = vunpack.c.l.b16 %v3782
    %v3877 = vunpack.c.h.b16 %v3782
    %v3878 = vunpack.c.l.b16 %v3783
    %v3879 = vunpack.c.h.b16 %v3783
    %v3880 = vpack.c.b16 %v3818, %v3816
    %v3881 = vpack.c.b16 %v3819, %v3817
    %v3882 = vpack.c.b16 %v3822, %v3820
    %v3883 = vpack.c.b16 %v3823, %v3821
    %v3884 = vpack.c.b16 %v3826, %v3824
    %v3885 = vpack.c.b16 %v3827, %v3825
    %v3886 = vpack.c.b16 %v3830, %v3828
    %v3887 = vpack.c.b16 %v3831, %v3829
    %v3888 = vpack.c.b16 %v3834, %v3832
    %v3889 = vpack.c.b16 %v3835, %v3833
    %v3890 = vpack.c.b16 %v3838, %v3836
    %v3891 = vpack.c.b16 %v3839, %v3837
    %v3892 = vpack.c.b16 %v3842, %v3840
    %v3893 = vpack.c.b16 %v3843, %v3841
    %v3894 = vpack.c.b16 %v3846, %v3844
    %v3895 = vpack.c.b16 %v3847, %v3845
    %v3896 = vpack.c.b16 %v3850, %v3848
    %v3897 = vpack.c.b16 %v3851, %v3849
    %v3898 = vpack.c.b16 %v3854, %v3852
    %v3899 = vpack.c.b16 %v3855, %v3853
    %v3900 = vpack.c.b16 %v3858, %v3856
    %v3901 = vpack.c.b16 %v3859, %v3857
    %v3902 = vpack.c.b16 %v3862, %v3860
    %v3903 = vpack.c.b16 %v3863, %v3861
    %v3904 = vpack.c.b16 %v3866, %v3864
    %v3905 = vpack.c.b16 %v3867, %v3865
    %v3906 = vpack.c.b16 %v3870, %v3868
    %v3907 = vpack.c.b16 %v3871, %v3869
    %v3908 = vpack.c.b16 %v3874, %v3872
    %v3909 = vpack.c.b16 %v3875, %v3873
    %v3910 = vpack.c.b16 %v3878, %v3876
    %v3911 = vpack.c.b16 %v3879, %v3877
    %3944 = vmatprep.subr.bf16.mxu0 0
    %3945 = vmatpush1.bf16.msra.mxu0 %v3736
    %3946 = vmatprep.subr.bf16.mxu0 0
    %3947 = vmatpush1.bf16.msra.mxu0 %v3737
    %3948 = vmatprep.subr.bf16.mxu0 0
    %3949 = vmatpush1.bf16.msra.mxu0 %v3738
    %3950 = vmatprep.subr.bf16.mxu0 0
    %3951 = vmatpush1.bf16.msra.mxu0 %v3739
    %3952 = vmatprep.subr.bf16.mxu0 0
    %3953 = vmatpush1.bf16.msra.mxu0 %v3740
    %3954 = vmatprep.subr.bf16.mxu0 0
    %3955 = vmatpush1.bf16.msra.mxu0 %v3741
    %3956 = vmatprep.subr.bf16.mxu0 0
    %3957 = vmatpush1.bf16.msra.mxu0 %v3742
    %3958 = vmatprep.subr.bf16.mxu0 0
    %3959 = vmatpush1.bf16.msra.mxu0 %v3743
    %3960 = vmatprep.subr.bf16.mxu0 0
    %3961 = vmatpush1.bf16.msra.mxu0 %v3744
    %3962 = vmatprep.subr.bf16.mxu0 0
    %3963 = vmatpush1.bf16.msra.mxu0 %v3745
    %3964 = vmatprep.subr.bf16.mxu0 0
    %3965 = vmatpush1.bf16.msra.mxu0 %v3746
    %3966 = vmatprep.subr.bf16.mxu0 0
    %3967 = vmatpush1.bf16.msra.mxu0 %v3747
    %3968 = vmatprep.subr.bf16.mxu0 0
    %3969 = vmatpush1.bf16.msra.mxu0 %v3748
    %3970 = vmatprep.subr.bf16.mxu0 0
    %3971 = vmatpush1.bf16.msra.mxu0 %v3749
    %3972 = vmatprep.subr.bf16.mxu0 0
    %3973 = vmatpush1.bf16.msra.mxu0 %v3750
    %3974 = vmatprep.subr.bf16.mxu0 0
    %3975 = vmatpush1.bf16.msra.mxu0 %v3751
    %3976 = vmatprep.mubr.bf16.mxu0 %v3881
    %3977 = vmatmul.mubr.bf16.gmra.mrb[0].mxu0 %v3880
    %v3978 = vpop.f32.mrb[0].mxu0
    %v3979 = vadd.f32 0.0, %v3978
    %v3980 = vpop.f32.mrb[0].mxu0
    %v3981 = vpop.f32.mrb[0].mxu0
    %v3982 = vadd.f32 0.0, %v3981
    %v3983 = vpop.f32.mrb[0].mxu0
    %3984 = vmatprep.mubr.bf16.mxu0 %v3883
    %3985 = vmatmul.mubr.bf16.gmra.mrb[0].mxu0 %v3882
    %v3986 = vpop.f32.mrb[0].mxu0
    %v3987 = vadd.f32 0.0, %v3986
    %v3988 = vpop.f32.mrb[0].mxu0
    %v3989 = vpop.f32.mrb[0].mxu0
    %v3990 = vadd.f32 0.0, %v3989
    %v3991 = vpop.f32.mrb[0].mxu0
    %3992 = vmatprep.mubr.bf16.mxu0 %v3885
    %3993 = vmatmul.mubr.bf16.gmra.mrb[0].mxu0 %v3884
    %v3994 = vpop.f32.mrb[0].mxu0
    %v3995 = vadd.f32 0.0, %v3994
    %v3996 = vpop.f32.mrb[0].mxu0
    %v3997 = vpop.f32.mrb[0].mxu0
    %v3998 = vadd.f32 0.0, %v3997
    %v3999 = vpop.f32.mrb[0].mxu0
    %4000 = vmatprep.mubr.bf16.mxu0 %v3887
    %4001 = vmatmul.mubr.bf16.gmra.mrb[0].mxu0 %v3886
    %v4002 = vpop.f32.mrb[0].mxu0
    %v4003 = vadd.f32 0.0, %v4002
    %v4004 = vpop.f32.mrb[0].mxu0
    %v4005 = vpop.f32.mrb[0].mxu0
    %v4006 = vadd.f32 0.0, %v4005
    %v4007 = vpop.f32.mrb[0].mxu0
    %4008 = vmatprep.mubr.bf16.mxu0 %v3889
    %4009 = vmatmul.mubr.bf16.gmra.mrb[0].mxu0 %v3888
    %v4010 = vpop.f32.mrb[0].mxu0
    %v4011 = vadd.f32 0.0, %v4010
    %v4012 = vpop.f32.mrb[0].mxu0
    %v4013 = vpop.f32.mrb[0].mxu0
    %v4014 = vadd.f32 0.0, %v4013
    %v4015 = vpop.f32.mrb[0].mxu0
    %4016 = vmatprep.mubr.bf16.mxu0 %v3891
    %4017 = vmatmul.mubr.bf16.gmra.mrb[0].mxu0 %v3890
    %v4018 = vpop.f32.mrb[0].mxu0
    %v4019 = vadd.f32 0.0, %v4018
    %v4020 = vpop.f32.mrb[0].mxu0
    %v4021 = vpop.f32.mrb[0].mxu0
    %v4022 = vadd.f32 0.0, %v4021
    %v4023 = vpop.f32.mrb[0].mxu0
    %4024 = vmatprep.mubr.bf16.mxu0 %v3893
    %4025 = vmatmul.mubr.bf16.gmra.mrb[0].mxu0 %v3892
    %v4026 = vpop.f32.mrb[0].mxu0
    %v4027 = vadd.f32 0.0, %v4026
    %v4028 = vpop.f32.mrb[0].mxu0
    %v4029 = vpop.f32.mrb[0].mxu0
    %v4030 = vadd.f32 0.0, %v4029
    %v4031 = vpop.f32.mrb[0].mxu0
    %4032 = vmatprep.mubr.bf16.mxu0 %v3895
    %4033 = vmatmul.mubr.bf16.gmra.mrb[0].mxu0 %v3894
    %v4034 = vpop.f32.mrb[0].mxu0
    %v4035 = vadd.f32 0.0, %v4034
    %v4036 = vpop.f32.mrb[0].mxu0
    %v4037 = vpop.f32.mrb[0].mxu0
    %v4038 = vadd.f32 0.0, %v4037
    %v4039 = vpop.f32.mrb[0].mxu0
    %4040 = vmatprep.mubr.bf16.mxu0 %v3897
    %4041 = vmatmul.mubr.bf16.gmra.mrb[0].mxu0 %v3896
    %v4042 = vpop.f32.mrb[0].mxu0
    %v4043 = vadd.f32 0.0, %v4042
    %v4044 = vpop.f32.mrb[0].mxu0
    %v4045 = vpop.f32.mrb[0].mxu0
    %v4046 = vadd.f32 0.0, %v4045
    %v4047 = vpop.f32.mrb[0].mxu0
    %4048 = vmatprep.mubr.bf16.mxu0 %v3899
    %4049 = vmatmul.mubr.bf16.gmra.mrb[0].mxu0 %v3898
    %v4050 = vpop.f32.mrb[0].mxu0
    %v4051 = vadd.f32 0.0, %v4050
    %v4052 = vpop.f32.mrb[0].mxu0
    %v4053 = vpop.f32.mrb[0].mxu0
    %v4054 = vadd.f32 0.0, %v4053
    %v4055 = vpop.f32.mrb[0].mxu0
    %4056 = vmatprep.mubr.bf16.mxu0 %v3901
    %4057 = vmatmul.mubr.bf16.gmra.mrb[0].mxu0 %v3900
    %v4058 = vpop.f32.mrb[0].mxu0
    %v4059 = vadd.f32 0.0, %v4058
    %v4060 = vpop.f32.mrb[0].mxu0
    %v4061 = vpop.f32.mrb[0].mxu0
    %v4062 = vadd.f32 0.0, %v4061
    %v4063 = vpop.f32.mrb[0].mxu0
    %4064 = vmatprep.mubr.bf16.mxu0 %v3903
    %4065 = vmatmul.mubr.bf16.gmra.mrb[0].mxu0 %v3902
    %v4066 = vpop.f32.mrb[0].mxu0
    %v4067 = vadd.f32 0.0, %v4066
    %v4068 = vpop.f32.mrb[0].mxu0
    %v4069 = vpop.f32.mrb[0].mxu0
    %v4070 = vadd.f32 0.0, %v4069
    %v4071 = vpop.f32.mrb[0].mxu0
    %4072 = vmatprep.mubr.bf16.mxu0 %v3905
    %4073 = vmatmul.mubr.bf16.gmra.mrb[0].mxu0 %v3904
    %v4074 = vpop.f32.mrb[0].mxu0
    %v4075 = vadd.f32 0.0, %v4074
    %v4076 = vpop.f32.mrb[0].mxu0
    %v4077 = vpop.f32.mrb[0].mxu0
    %v4078 = vadd.f32 0.0, %v4077
    %v4079 = vpop.f32.mrb[0].mxu0
    %4080 = vmatprep.mubr.bf16.mxu0 %v3907
    %4081 = vmatmul.mubr.bf16.gmra.mrb[0].mxu0 %v3906
    %v4082 = vpop.f32.mrb[0].mxu0
    %v4083 = vadd.f32 0.0, %v4082
    %v4084 = vpop.f32.mrb[0].mxu0
    %v4085 = vpop.f32.mrb[0].mxu0
    %v4086 = vadd.f32 0.0, %v4085
    %v4087 = vpop.f32.mrb[0].mxu0
    %4088 = vmatprep.mubr.bf16.mxu0 %v3909
    %4089 = vmatmul.mubr.bf16.gmra.mrb[0].mxu0 %v3908
    %v4090 = vpop.f32.mrb[0].mxu0
    %v4091 = vadd.f32 0.0, %v4090
    %v4092 = vpop.f32.mrb[0].mxu0
    %v4093 = vpop.f32.mrb[0].mxu0
    %v4094 = vadd.f32 0.0, %v4093
    %v4095 = vpop.f32.mrb[0].mxu0
    %4096 = vmatprep.mubr.bf16.mxu0 %v3911
    %4097 = vmatmul.mubr.bf16.gmra.mrb[0].mxu0 %v3910
    %v4098 = vpop.f32.mrb[0].mxu0
    %v4099 = vadd.f32 0.0, %v4098
    %v4100 = vpop.f32.mrb[0].mxu0
    %v4101 = vpop.f32.mrb[0].mxu0
    %v4102 = vadd.f32 0.0, %v4101
    %v4103 = vpop.f32.mrb[0].mxu0
    %4104 = vdwg.mxu0
    %v4105 = vld [vmem:[#allocation10] sm:$0xff]
    %v4106 = vld [vmem:[#allocation10 + $0x8] sm:$0xff]
    %v4107 = vld [vmem:[#allocation10 + $0x10] sm:$0xff]
    %v4108 = vld [vmem:[#allocation10 + $0x18] sm:$0xff]
    %v4109 = vld [vmem:[#allocation10 + $0x20] sm:$0xff]
    %v4110 = vld [vmem:[#allocation10 + $0x28] sm:$0xff]
    %v4111 = vld [vmem:[#allocation10 + $0x30] sm:$0xff]
    %v4112 = vld [vmem:[#allocation10 + $0x38] sm:$0xff]
    %v4113 = vld [vmem:[#allocation10 + $0x40] sm:$0xff]
    %v4114 = vld [vmem:[#allocation10 + $0x48] sm:$0xff]
    %v4115 = vld [vmem:[#allocation10 + $0x50] sm:$0xff]
    %v4116 = vld [vmem:[#allocation10 + $0x58] sm:$0xff]
    %v4117 = vld [vmem:[#allocation10 + $0x60] sm:$0xff]
    %v4118 = vld [vmem:[#allocation10 + $0x68] sm:$0xff]
    %v4119 = vld [vmem:[#allocation10 + $0x70] sm:$0xff]
    %v4120 = vld [vmem:[#allocation10 + $0x78] sm:$0xff]
    %v4121 = vld [vmem:[#allocation10 + $0x80] sm:$0xff]
    %v4122 = vld [vmem:[#allocation10 + $0x88] sm:$0xff]
    %v4123 = vld [vmem:[#allocation10 + $0x90] sm:$0xff]
    %v4124 = vld [vmem:[#allocation10 + $0x98] sm:$0xff]
    %v4125 = vld [vmem:[#allocation10 + $0xa0] sm:$0xff]
    %v4126 = vld [vmem:[#allocation10 + $0xa8] sm:$0xff]
    %v4127 = vld [vmem:[#allocation10 + $0xb0] sm:$0xff]
    %v4128 = vld [vmem:[#allocation10 + $0xb8] sm:$0xff]
    %v4129 = vld [vmem:[#allocation10 + $0xc0] sm:$0xff]
    %v4130 = vld [vmem:[#allocation10 + $0xc8] sm:$0xff]
    %v4131 = vld [vmem:[#allocation10 + $0xd0] sm:$0xff]
    %v4132 = vld [vmem:[#allocation10 + $0xd8] sm:$0xff]
    %v4133 = vld [vmem:[#allocation10 + $0xe0] sm:$0xff]
    %v4134 = vld [vmem:[#allocation10 + $0xe8] sm:$0xff]
    %v4135 = vld [vmem:[#allocation10 + $0xf0] sm:$0xff]
    %v4136 = vld [vmem:[#allocation10 + $0xf8] sm:$0xff]
    %v4169 = vunpack.c.l.b16 %v4105
    %v4170 = vunpack.c.h.b16 %v4105
    %v4171 = vunpack.c.l.b16 %v4106
    %v4172 = vunpack.c.h.b16 %v4106
    %v4173 = vunpack.c.l.b16 %v4107
    %v4174 = vunpack.c.h.b16 %v4107
    %v4175 = vunpack.c.l.b16 %v4108
    %v4176 = vunpack.c.h.b16 %v4108
    %v4177 = vunpack.c.l.b16 %v4109
    %v4178 = vunpack.c.h.b16 %v4109
    %v4179 = vunpack.c.l.b16 %v4110
    %v4180 = vunpack.c.h.b16 %v4110
    %v4181 = vunpack.c.l.b16 %v4111
    %v4182 = vunpack.c.h.b16 %v4111
    %v4183 = vunpack.c.l.b16 %v4112
    %v4184 = vunpack.c.h.b16 %v4112
    %v4185 = vunpack.c.l.b16 %v4113
    %v4186 = vunpack.c.h.b16 %v4113
    %v4187 = vunpack.c.l.b16 %v4114
    %v4188 = vunpack.c.h.b16 %v4114
    %v4189 = vunpack.c.l.b16 %v4115
    %v4190 = vunpack.c.h.b16 %v4115
    %v4191 = vunpack.c.l.b16 %v4116
    %v4192 = vunpack.c.h.b16 %v4116
    %v4193 = vunpack.c.l.b16 %v4117
    %v4194 = vunpack.c.h.b16 %v4117
    %v4195 = vunpack.c.l.b16 %v4118
    %v4196 = vunpack.c.h.b16 %v4118
    %v4197 = vunpack.c.l.b16 %v4119
    %v4198 = vunpack.c.h.b16 %v4119
    %v4199 = vunpack.c.l.b16 %v4120
    %v4200 = vunpack.c.h.b16 %v4120
    %v4201 = vunpack.c.l.b16 %v4121
    %v4202 = vunpack.c.h.b16 %v4121
    %v4203 = vunpack.c.l.b16 %v4122
    %v4204 = vunpack.c.h.b16 %v4122
    %v4205 = vunpack.c.l.b16 %v4123
    %v4206 = vunpack.c.h.b16 %v4123
    %v4207 = vunpack.c.l.b16 %v4124
    %v4208 = vunpack.c.h.b16 %v4124
    %v4209 = vunpack.c.l.b16 %v4125
    %v4210 = vunpack.c.h.b16 %v4125
    %v4211 = vunpack.c.l.b16 %v4126
    %v4212 = vunpack.c.h.b16 %v4126
    %v4213 = vunpack.c.l.b16 %v4127
    %v4214 = vunpack.c.h.b16 %v4127
    %v4215 = vunpack.c.l.b16 %v4128
    %v4216 = vunpack.c.h.b16 %v4128
    %v4217 = vunpack.c.l.b16 %v4129
    %v4218 = vunpack.c.h.b16 %v4129
    %v4219 = vunpack.c.l.b16 %v4130
    %v4220 = vunpack.c.h.b16 %v4130
    %v4221 = vunpack.c.l.b16 %v4131
    %v4222 = vunpack.c.h.b16 %v4131
    %v4223 = vunpack.c.l.b16 %v4132
    %v4224 = vunpack.c.h.b16 %v4132
    %v4225 = vunpack.c.l.b16 %v4133
    %v4226 = vunpack.c.h.b16 %v4133
    %v4227 = vunpack.c.l.b16 %v4134
    %v4228 = vunpack.c.h.b16 %v4134
    %v4229 = vunpack.c.l.b16 %v4135
    %v4230 = vunpack.c.h.b16 %v4135
    %v4231 = vunpack.c.l.b16 %v4136
    %v4232 = vunpack.c.h.b16 %v4136
    %v4233 = vpack.c.b16 %v4171, %v4169
    %v4234 = vpack.c.b16 %v4172, %v4170
    %v4235 = vpack.c.b16 %v4175, %v4173
    %v4236 = vpack.c.b16 %v4176, %v4174
    %v4237 = vpack.c.b16 %v4179, %v4177
    %v4238 = vpack.c.b16 %v4180, %v4178
    %v4239 = vpack.c.b16 %v4183, %v4181
    %v4240 = vpack.c.b16 %v4184, %v4182
    %v4241 = vpack.c.b16 %v4187, %v4185
    %v4242 = vpack.c.b16 %v4188, %v4186
    %v4243 = vpack.c.b16 %v4191, %v4189
    %v4244 = vpack.c.b16 %v4192, %v4190
    %v4245 = vpack.c.b16 %v4195, %v4193
    %v4246 = vpack.c.b16 %v4196, %v4194
    %v4247 = vpack.c.b16 %v4199, %v4197
    %v4248 = vpack.c.b16 %v4200, %v4198
    %v4249 = vpack.c.b16 %v4203, %v4201
    %v4250 = vpack.c.b16 %v4204, %v4202
    %v4251 = vpack.c.b16 %v4207, %v4205
    %v4252 = vpack.c.b16 %v4208, %v4206
    %v4253 = vpack.c.b16 %v4211, %v4209
    %v4254 = vpack.c.b16 %v4212, %v4210
    %v4255 = vpack.c.b16 %v4215, %v4213
    %v4256 = vpack.c.b16 %v4216, %v4214
    %v4257 = vpack.c.b16 %v4219, %v4217
    %v4258 = vpack.c.b16 %v4220, %v4218
    %v4259 = vpack.c.b16 %v4223, %v4221
    %v4260 = vpack.c.b16 %v4224, %v4222
    %v4261 = vpack.c.b16 %v4227, %v4225
    %v4262 = vpack.c.b16 %v4228, %v4226
    %v4263 = vpack.c.b16 %v4231, %v4229
    %v4264 = vpack.c.b16 %v4232, %v4230
    %4297 = vmatprep.subr.bf16.mxu0 0
    %4298 = vmatpush1.bf16.msra.mxu0 %v3736
    %4299 = vmatprep.subr.bf16.mxu0 0
    %4300 = vmatpush1.bf16.msra.mxu0 %v3737
    %4301 = vmatprep.subr.bf16.mxu0 0
    %4302 = vmatpush1.bf16.msra.mxu0 %v3738
    %4303 = vmatprep.subr.bf16.mxu0 0
    %4304 = vmatpush1.bf16.msra.mxu0 %v3739
    %4305 = vmatprep.subr.bf16.mxu0 0
    %4306 = vmatpush1.bf16.msra.mxu0 %v3740
    %4307 = vmatprep.subr.bf16.mxu0 0
    %4308 = vmatpush1.bf16.msra.mxu0 %v3741
    %4309 = vmatprep.subr.bf16.mxu0 0
    %4310 = vmatpush1.bf16.msra.mxu0 %v3742
    %4311 = vmatprep.subr.bf16.mxu0 0
    %4312 = vmatpush1.bf16.msra.mxu0 %v3743
    %4313 = vmatprep.subr.bf16.mxu0 0
    %4314 = vmatpush1.bf16.msra.mxu0 %v3744
    %4315 = vmatprep.subr.bf16.mxu0 0
    %4316 = vmatpush1.bf16.msra.mxu0 %v3745
    %4317 = vmatprep.subr.bf16.mxu0 0
    %4318 = vmatpush1.bf16.msra.mxu0 %v3746
    %4319 = vmatprep.subr.bf16.mxu0 0
    %4320 = vmatpush1.bf16.msra.mxu0 %v3747
    %4321 = vmatprep.subr.bf16.mxu0 0
    %4322 = vmatpush1.bf16.msra.mxu0 %v3748
    %4323 = vmatprep.subr.bf16.mxu0 0
    %4324 = vmatpush1.bf16.msra.mxu0 %v3749
    %4325 = vmatprep.subr.bf16.mxu0 0
    %4326 = vmatpush1.bf16.msra.mxu0 %v3750
    %4327 = vmatprep.subr.bf16.mxu0 0
    %4328 = vmatpush1.bf16.msra.mxu0 %v3751
    %4329 = vmatprep.mubr.bf16.mxu0 %v4234
    %4330 = vmatmul.mubr.bf16.gmra.mrb[0].mxu0 %v4233
    %v4331 = vpop.f32.mrb[0].mxu0
    %v4332 = vadd.f32 0.0, %v4331
    %v4333 = vpop.f32.mrb[0].mxu0
    %v4334 = vpop.f32.mrb[0].mxu0
    %v4335 = vadd.f32 0.0, %v4334
    %v4336 = vpop.f32.mrb[0].mxu0
    %4337 = vmatprep.mubr.bf16.mxu0 %v4236
    %4338 = vmatmul.mubr.bf16.gmra.mrb[0].mxu0 %v4235
    %v4339 = vpop.f32.mrb[0].mxu0
    %v4340 = vadd.f32 0.0, %v4339
    %v4341 = vpop.f32.mrb[0].mxu0
    %v4342 = vpop.f32.mrb[0].mxu0
    %v4343 = vadd.f32 0.0, %v4342
    %v4344 = vpop.f32.mrb[0].mxu0
    %4345 = vmatprep.mubr.bf16.mxu0 %v4238
    %4346 = vmatmul.mubr.bf16.gmra.mrb[0].mxu0 %v4237
    %v4347 = vpop.f32.mrb[0].mxu0
    %v4348 = vadd.f32 0.0, %v4347
    %v4349 = vpop.f32.mrb[0].mxu0
    %v4350 = vpop.f32.mrb[0].mxu0
    %v4351 = vadd.f32 0.0, %v4350
    %v4352 = vpop.f32.mrb[0].mxu0
    %4353 = vmatprep.mubr.bf16.mxu0 %v4240
    %4354 = vmatmul.mubr.bf16.gmra.mrb[0].mxu0 %v4239
    %v4355 = vpop.f32.mrb[0].mxu0
    %v4356 = vadd.f32 0.0, %v4355
    %v4357 = vpop.f32.mrb[0].mxu0
    %v4358 = vpop.f32.mrb[0].mxu0
    %v4359 = vadd.f32 0.0, %v4358
    %v4360 = vpop.f32.mrb[0].mxu0
    %4361 = vmatprep.mubr.bf16.mxu0 %v4242
    %4362 = vmatmul.mubr.bf16.gmra.mrb[0].mxu0 %v4241
    %v4363 = vpop.f32.mrb[0].mxu0
    %v4364 = vadd.f32 0.0, %v4363
    %v4365 = vpop.f32.mrb[0].mxu0
    %v4366 = vpop.f32.mrb[0].mxu0
    %v4367 = vadd.f32 0.0, %v4366
    %v4368 = vpop.f32.mrb[0].mxu0
    %4369 = vmatprep.mubr.bf16.mxu0 %v4244
    %4370 = vmatmul.mubr.bf16.gmra.mrb[0].mxu0 %v4243
    %v4371 = vpop.f32.mrb[0].mxu0
    %v4372 = vadd.f32 0.0, %v4371
    %v4373 = vpop.f32.mrb[0].mxu0
    %v4374 = vpop.f32.mrb[0].mxu0
    %v4375 = vadd.f32 0.0, %v4374
    %v4376 = vpop.f32.mrb[0].mxu0
    %4377 = vmatprep.mubr.bf16.mxu0 %v4246
    %4378 = vmatmul.mubr.bf16.gmra.mrb[0].mxu0 %v4245
    %v4379 = vpop.f32.mrb[0].mxu0
    %v4380 = vadd.f32 0.0, %v4379
    %v4381 = vpop.f32.mrb[0].mxu0
    %v4382 = vpop.f32.mrb[0].mxu0
    %v4383 = vadd.f32 0.0, %v4382
    %v4384 = vpop.f32.mrb[0].mxu0
    %4385 = vmatprep.mubr.bf16.mxu0 %v4248
    %4386 = vmatmul.mubr.bf16.gmra.mrb[0].mxu0 %v4247
    %v4387 = vpop.f32.mrb[0].mxu0
    %v4388 = vadd.f32 0.0, %v4387
    %v4389 = vpop.f32.mrb[0].mxu0
    %v4390 = vpop.f32.mrb[0].mxu0
    %v4391 = vadd.f32 0.0, %v4390
    %v4392 = vpop.f32.mrb[0].mxu0
    %4393 = vmatprep.mubr.bf16.mxu0 %v4250
    %4394 = vmatmul.mubr.bf16.gmra.mrb[0].mxu0 %v4249
    %v4395 = vpop.f32.mrb[0].mxu0
    %v4396 = vadd.f32 0.0, %v4395
    %v4397 = vpop.f32.mrb[0].mxu0
    %v4398 = vpop.f32.mrb[0].mxu0
    %v4399 = vadd.f32 0.0, %v4398
    %v4400 = vpop.f32.mrb[0].mxu0
    %4401 = vmatprep.mubr.bf16.mxu0 %v4252
    %4402 = vmatmul.mubr.bf16.gmra.mrb[0].mxu0 %v4251
    %v4403 = vpop.f32.mrb[0].mxu0
    %v4404 = vadd.f32 0.0, %v4403
    %v4405 = vpop.f32.mrb[0].mxu0
    %v4406 = vpop.f32.mrb[0].mxu0
    %v4407 = vadd.f32 0.0, %v4406
    %v4408 = vpop.f32.mrb[0].mxu0
    %4409 = vmatprep.mubr.bf16.mxu0 %v4254
    %4410 = vmatmul.mubr.bf16.gmra.mrb[0].mxu0 %v4253
    %v4411 = vpop.f32.mrb[0].mxu0
    %v4412 = vadd.f32 0.0, %v4411
    %v4413 = vpop.f32.mrb[0].mxu0
    %v4414 = vpop.f32.mrb[0].mxu0
    %v4415 = vadd.f32 0.0, %v4414
    %v4416 = vpop.f32.mrb[0].mxu0
    %4417 = vmatprep.mubr.bf16.mxu0 %v4256
    %4418 = vmatmul.mubr.bf16.gmra.mrb[0].mxu0 %v4255
    %v4419 = vpop.f32.mrb[0].mxu0
    %v4420 = vadd.f32 0.0, %v4419
    %v4421 = vpop.f32.mrb[0].mxu0
    %v4422 = vpop.f32.mrb[0].mxu0
    %v4423 = vadd.f32 0.0, %v4422
    %v4424 = vpop.f32.mrb[0].mxu0
    %4425 = vmatprep.mubr.bf16.mxu0 %v4258
    %4426 = vmatmul.mubr.bf16.gmra.mrb[0].mxu0 %v4257
    %v4427 = vpop.f32.mrb[0].mxu0
    %v4428 = vadd.f32 0.0, %v4427
    %v4429 = vpop.f32.mrb[0].mxu0
    %v4430 = vpop.f32.mrb[0].mxu0
    %v4431 = vadd.f32 0.0, %v4430
    %v4432 = vpop.f32.mrb[0].mxu0
    %4433 = vmatprep.mubr.bf16.mxu0 %v4260
    %4434 = vmatmul.mubr.bf16.gmra.mrb[0].mxu0 %v4259
    %v4435 = vpop.f32.mrb[0].mxu0
    %v4436 = vadd.f32 0.0, %v4435
    %v4437 = vpop.f32.mrb[0].mxu0
    %v4438 = vpop.f32.mrb[0].mxu0
    %v4439 = vadd.f32 0.0, %v4438
    %v4440 = vpop.f32.mrb[0].mxu0
    %4441 = vmatprep.mubr.bf16.mxu0 %v4262
    %4442 = vmatmul.mubr.bf16.gmra.mrb[0].mxu0 %v4261
    %v4443 = vpop.f32.mrb[0].mxu0
    %v4444 = vadd.f32 0.0, %v4443
    %v4445 = vpop.f32.mrb[0].mxu0
    %v4446 = vpop.f32.mrb[0].mxu0
    %v4447 = vadd.f32 0.0, %v4446
    %v4448 = vpop.f32.mrb[0].mxu0
    %4449 = vmatprep.mubr.bf16.mxu0 %v4264
    %4450 = vmatmul.mubr.bf16.gmra.mrb[0].mxu0 %v4263
    %v4451 = vpop.f32.mrb[0].mxu0
    %v4452 = vadd.f32 0.0, %v4451
    %v4453 = vpop.f32.mrb[0].mxu0
    %v4454 = vpop.f32.mrb[0].mxu0
    %v4455 = vadd.f32 0.0, %v4454
    %v4456 = vpop.f32.mrb[0].mxu0
    %4457 = vdwg.mxu0
    %4459 = vset.pattern.permute.xlu0 0
    %4460 = vperm.xlu0 %4459, %v3979
    %v4461 = vpop.permute.xlu0 %4460
    %4464 = vset.pattern.permute.xlu0 0
    %4465 = vperm.xlu0 %4464, %v3982
    %v4466 = vpop.permute.xlu0 %4465
    %4469 = vset.pattern.permute.xlu0 0
    %4470 = vperm.xlu0 %4469, %v3987
    %v4471 = vpop.permute.xlu0 %4470
    %4474 = vset.pattern.permute.xlu0 0
    %4475 = vperm.xlu0 %4474, %v3990
    %v4476 = vpop.permute.xlu0 %4475
    %4479 = vset.pattern.permute.xlu0 0
    %4480 = vperm.xlu0 %4479, %v3995
    %v4481 = vpop.permute.xlu0 %4480
    %4484 = vset.pattern.permute.xlu0 0
    %4485 = vperm.xlu0 %4484, %v3998
    %v4486 = vpop.permute.xlu0 %4485
    %4489 = vset.pattern.permute.xlu0 0
    %4490 = vperm.xlu0 %4489, %v4003
    %v4491 = vpop.permute.xlu0 %4490
    %4494 = vset.pattern.permute.xlu0 0
    %4495 = vperm.xlu0 %4494, %v4006
    %v4496 = vpop.permute.xlu0 %4495
    %4499 = vset.pattern.permute.xlu0 0
    %4500 = vperm.xlu0 %4499, %v4011
    %v4501 = vpop.permute.xlu0 %4500
    %4504 = vset.pattern.permute.xlu0 0
    %4505 = vperm.xlu0 %4504, %v4014
    %v4506 = vpop.permute.xlu0 %4505
    %4509 = vset.pattern.permute.xlu0 0
    %4510 = vperm.xlu0 %4509, %v4019
    %v4511 = vpop.permute.xlu0 %4510
    %4514 = vset.pattern.permute.xlu0 0
    %4515 = vperm.xlu0 %4514, %v4022
    %v4516 = vpop.permute.xlu0 %4515
    %4519 = vset.pattern.permute.xlu0 0
    %4520 = vperm.xlu0 %4519, %v4027
    %v4521 = vpop.permute.xlu0 %4520
    %4524 = vset.pattern.permute.xlu0 0
    %4525 = vperm.xlu0 %4524, %v4030
    %v4526 = vpop.permute.xlu0 %4525
    %4529 = vset.pattern.permute.xlu0 0
    %4530 = vperm.xlu0 %4529, %v4035
    %v4531 = vpop.permute.xlu0 %4530
    %4534 = vset.pattern.permute.xlu0 0
    %4535 = vperm.xlu0 %4534, %v4038
    %v4536 = vpop.permute.xlu0 %4535
    %4539 = vset.pattern.permute.xlu0 0
    %4540 = vperm.xlu0 %4539, %v4043
    %v4541 = vpop.permute.xlu0 %4540
    %4544 = vset.pattern.permute.xlu0 0
    %4545 = vperm.xlu0 %4544, %v4046
    %v4546 = vpop.permute.xlu0 %4545
    %4549 = vset.pattern.permute.xlu0 0
    %4550 = vperm.xlu0 %4549, %v4051
    %v4551 = vpop.permute.xlu0 %4550
    %4554 = vset.pattern.permute.xlu0 0
    %4555 = vperm.xlu0 %4554, %v4054
    %v4556 = vpop.permute.xlu0 %4555
    %4559 = vset.pattern.permute.xlu0 0
    %4560 = vperm.xlu0 %4559, %v4059
    %v4561 = vpop.permute.xlu0 %4560
    %4564 = vset.pattern.permute.xlu0 0
    %4565 = vperm.xlu0 %4564, %v4062
    %v4566 = vpop.permute.xlu0 %4565
    %4569 = vset.pattern.permute.xlu0 0
    %4570 = vperm.xlu0 %4569, %v4067
    %v4571 = vpop.permute.xlu0 %4570
    %4574 = vset.pattern.permute.xlu0 0
    %4575 = vperm.xlu0 %4574, %v4070
    %v4576 = vpop.permute.xlu0 %4575
    %4579 = vset.pattern.permute.xlu0 0
    %4580 = vperm.xlu0 %4579, %v4075
    %v4581 = vpop.permute.xlu0 %4580
    %4584 = vset.pattern.permute.xlu0 0
    %4585 = vperm.xlu0 %4584, %v4078
    %v4586 = vpop.permute.xlu0 %4585
    %4589 = vset.pattern.permute.xlu0 0
    %4590 = vperm.xlu0 %4589, %v4083
    %v4591 = vpop.permute.xlu0 %4590
    %4594 = vset.pattern.permute.xlu0 0
    %4595 = vperm.xlu0 %4594, %v4086
    %v4596 = vpop.permute.xlu0 %4595
    %4599 = vset.pattern.permute.xlu0 0
    %4600 = vperm.xlu0 %4599, %v4091
    %v4601 = vpop.permute.xlu0 %4600
    %4604 = vset.pattern.permute.xlu0 0
    %4605 = vperm.xlu0 %4604, %v4094
    %v4606 = vpop.permute.xlu0 %4605
    %4609 = vset.pattern.permute.xlu0 0
    %4610 = vperm.xlu0 %4609, %v4099
    %v4611 = vpop.permute.xlu0 %4610
    %4614 = vset.pattern.permute.xlu0 0
    %4615 = vperm.xlu0 %4614, %v4102
    %v4616 = vpop.permute.xlu0 %4615
    %4619 = vset.pattern.permute.xlu0 0
    %4620 = vperm.xlu0 %4619, %v4332
    %v4621 = vpop.permute.xlu0 %4620
    %4624 = vset.pattern.permute.xlu0 0
    %4625 = vperm.xlu0 %4624, %v4335
    %v4626 = vpop.permute.xlu0 %4625
    %4629 = vset.pattern.permute.xlu0 0
    %4630 = vperm.xlu0 %4629, %v4340
    %v4631 = vpop.permute.xlu0 %4630
    %4634 = vset.pattern.permute.xlu0 0
    %4635 = vperm.xlu0 %4634, %v4343
    %v4636 = vpop.permute.xlu0 %4635
    %4639 = vset.pattern.permute.xlu0 0
    %4640 = vperm.xlu0 %4639, %v4348
    %v4641 = vpop.permute.xlu0 %4640
    %4644 = vset.pattern.permute.xlu0 0
    %4645 = vperm.xlu0 %4644, %v4351
    %v4646 = vpop.permute.xlu0 %4645
    %4649 = vset.pattern.permute.xlu0 0
    %4650 = vperm.xlu0 %4649, %v4356
    %v4651 = vpop.permute.xlu0 %4650
    %4654 = vset.pattern.permute.xlu0 0
    %4655 = vperm.xlu0 %4654, %v4359
    %v4656 = vpop.permute.xlu0 %4655
    %4659 = vset.pattern.permute.xlu0 0
    %4660 = vperm.xlu0 %4659, %v4364
    %v4661 = vpop.permute.xlu0 %4660
    %4664 = vset.pattern.permute.xlu0 0
    %4665 = vperm.xlu0 %4664, %v4367
    %v4666 = vpop.permute.xlu0 %4665
    %4669 = vset.pattern.permute.xlu0 0
    %4670 = vperm.xlu0 %4669, %v4372
    %v4671 = vpop.permute.xlu0 %4670
    %4674 = vset.pattern.permute.xlu0 0
    %4675 = vperm.xlu0 %4674, %v4375
    %v4676 = vpop.permute.xlu0 %4675
    %4679 = vset.pattern.permute.xlu0 0
    %4680 = vperm.xlu0 %4679, %v4380
    %v4681 = vpop.permute.xlu0 %4680
    %4684 = vset.pattern.permute.xlu0 0
    %4685 = vperm.xlu0 %4684, %v4383
    %v4686 = vpop.permute.xlu0 %4685
    %4689 = vset.pattern.permute.xlu0 0
    %4690 = vperm.xlu0 %4689, %v4388
    %v4691 = vpop.permute.xlu0 %4690
    %4694 = vset.pattern.permute.xlu0 0
    %4695 = vperm.xlu0 %4694, %v4391
    %v4696 = vpop.permute.xlu0 %4695
    %4699 = vset.pattern.permute.xlu0 0
    %4700 = vperm.xlu0 %4699, %v4396
    %v4701 = vpop.permute.xlu0 %4700
    %4704 = vset.pattern.permute.xlu0 0
    %4705 = vperm.xlu0 %4704, %v4399
    %v4706 = vpop.permute.xlu0 %4705
    %4709 = vset.pattern.permute.xlu0 0
    %4710 = vperm.xlu0 %4709, %v4404
    %v4711 = vpop.permute.xlu0 %4710
    %4714 = vset.pattern.permute.xlu0 0
    %4715 = vperm.xlu0 %4714, %v4407
    %v4716 = vpop.permute.xlu0 %4715
    %4719 = vset.pattern.permute.xlu0 0
    %4720 = vperm.xlu0 %4719, %v4412
    %v4721 = vpop.permute.xlu0 %4720
    %4724 = vset.pattern.permute.xlu0 0
    %4725 = vperm.xlu0 %4724, %v4415
    %v4726 = vpop.permute.xlu0 %4725
    %4729 = vset.pattern.permute.xlu0 0
    %4730 = vperm.xlu0 %4729, %v4420
    %v4731 = vpop.permute.xlu0 %4730
    %4734 = vset.pattern.permute.xlu0 0
    %4735 = vperm.xlu0 %4734, %v4423
    %v4736 = vpop.permute.xlu0 %4735
    %4739 = vset.pattern.permute.xlu0 0
    %4740 = vperm.xlu0 %4739, %v4428
    %v4741 = vpop.permute.xlu0 %4740
    %4744 = vset.pattern.permute.xlu0 0
    %4745 = vperm.xlu0 %4744, %v4431
    %v4746 = vpop.permute.xlu0 %4745
    %4749 = vset.pattern.permute.xlu0 0
    %4750 = vperm.xlu0 %4749, %v4436
    %v4751 = vpop.permute.xlu0 %4750
    %4754 = vset.pattern.permute.xlu0 0
    %4755 = vperm.xlu0 %4754, %v4439
    %v4756 = vpop.permute.xlu0 %4755
    %4759 = vset.pattern.permute.xlu0 0
    %4760 = vperm.xlu0 %4759, %v4444
    %v4761 = vpop.permute.xlu0 %4760
    %4764 = vset.pattern.permute.xlu0 0
    %4765 = vperm.xlu0 %4764, %v4447
    %v4766 = vpop.permute.xlu0 %4765
    %4769 = vset.pattern.permute.xlu0 0
    %4770 = vperm.xlu0 %4769, %v4452
    %v4771 = vpop.permute.xlu0 %4770
    %4774 = vset.pattern.permute.xlu0 0
    %4775 = vperm.xlu0 %4774, %v4455
    %v4776 = vpop.permute.xlu0 %4775
    %v4778 = vsel %vm2068, %v4461, %v4621
    %v4779 = vsel %vm2068, %v4466, %v4626
    %v4780 = vsel %vm2068, %v4471, %v4631
    %v4781 = vsel %vm2068, %v4476, %v4636
    %v4782 = vsel %vm2068, %v4481, %v4641
    %v4783 = vsel %vm2068, %v4486, %v4646
    %v4784 = vsel %vm2068, %v4491, %v4651
    %v4785 = vsel %vm2068, %v4496, %v4656
    %v4786 = vsel %vm2068, %v4501, %v4661
    %v4787 = vsel %vm2068, %v4506, %v4666
    %v4788 = vsel %vm2068, %v4511, %v4671
    %v4789 = vsel %vm2068, %v4516, %v4676
    %v4790 = vsel %vm2068, %v4521, %v4681
    %v4791 = vsel %vm2068, %v4526, %v4686
    %v4792 = vsel %vm2068, %v4531, %v4691
    %v4793 = vsel %vm2068, %v4536, %v4696
    %v4794 = vsel %vm2068, %v4541, %v4701
    %v4795 = vsel %vm2068, %v4546, %v4706
    %v4796 = vsel %vm2068, %v4551, %v4711
    %v4797 = vsel %vm2068, %v4556, %v4716
    %v4798 = vsel %vm2068, %v4561, %v4721
    %v4799 = vsel %vm2068, %v4566, %v4726
    %v4800 = vsel %vm2068, %v4571, %v4731
    %v4801 = vsel %vm2068, %v4576, %v4736
    %v4802 = vsel %vm2068, %v4581, %v4741
    %v4803 = vsel %vm2068, %v4586, %v4746
    %v4804 = vsel %vm2068, %v4591, %v4751
    %v4805 = vsel %vm2068, %v4596, %v4756
    %v4806 = vsel %vm2068, %v4601, %v4761
    %v4807 = vsel %vm2068, %v4606, %v4766
    %v4808 = vsel %vm2068, %v4611, %v4771
    %v4809 = vsel %vm2068, %v4616, %v4776
    %v4810 = vadd.f32 %v2486, %v4778
    %v4811 = vadd.f32 %v2487, %v4779
    %v4812 = vadd.f32 %v2488, %v4780
    %v4813 = vadd.f32 %v2489, %v4781
    %v4814 = vadd.f32 %v2490, %v4782
    %v4815 = vadd.f32 %v2491, %v4783
    %v4816 = vadd.f32 %v2492, %v4784
    %v4817 = vadd.f32 %v2493, %v4785
    %v4818 = vadd.f32 %v2494, %v4786
    %v4819 = vadd.f32 %v2495, %v4787
    %v4820 = vadd.f32 %v2496, %v4788
    %v4821 = vadd.f32 %v2497, %v4789
    %v4822 = vadd.f32 %v2498, %v4790
    %v4823 = vadd.f32 %v2499, %v4791
    %v4824 = vadd.f32 %v2500, %v4792
    %v4825 = vadd.f32 %v2501, %v4793
    %v4826 = vadd.f32 %v2502, %v4794
    %v4827 = vadd.f32 %v2503, %v4795
    %v4828 = vadd.f32 %v2504, %v4796
    %v4829 = vadd.f32 %v2505, %v4797
    %v4830 = vadd.f32 %v2506, %v4798
    %v4831 = vadd.f32 %v2507, %v4799
    %v4832 = vadd.f32 %v2508, %v4800
    %v4833 = vadd.f32 %v2509, %v4801
    %v4834 = vadd.f32 %v2510, %v4802
    %v4835 = vadd.f32 %v2511, %v4803
    %v4836 = vadd.f32 %v2512, %v4804
    %v4837 = vadd.f32 %v2513, %v4805
    %v4838 = vadd.f32 %v2514, %v4806
    %v4839 = vadd.f32 %v2515, %v4807
    %v4840 = vadd.f32 %v2516, %v4808
    %v4841 = vadd.f32 %v2517, %v4809
    %s4842 = scalar_lea.vmem [#allocation11], 256
    %4843 = vst [vmem:[%s4842] sm:$0xff] %v4810
    %4844 = vst [vmem:[%s4842 + $0x8] sm:$0xff] %v4811
    %4845 = vst [vmem:[%s4842 + $0x10] sm:$0xff] %v4812
    %4846 = vst [vmem:[%s4842 + $0x18] sm:$0xff] %v4813
    %4847 = vst [vmem:[%s4842 + $0x20] sm:$0xff] %v4814
    %4848 = vst [vmem:[%s4842 + $0x28] sm:$0xff] %v4815
    %4849 = vst [vmem:[%s4842 + $0x30] sm:$0xff] %v4816
    %4850 = vst [vmem:[%s4842 + $0x38] sm:$0xff] %v4817
    %4851 = vst [vmem:[%s4842 + $0x40] sm:$0xff] %v4818
    %4852 = vst [vmem:[%s4842 + $0x48] sm:$0xff] %v4819
    %4853 = vst [vmem:[%s4842 + $0x50] sm:$0xff] %v4820
    %4854 = vst [vmem:[%s4842 + $0x58] sm:$0xff] %v4821
    %4855 = vst [vmem:[%s4842 + $0x60] sm:$0xff] %v4822
    %4856 = vst [vmem:[%s4842 + $0x68] sm:$0xff] %v4823
    %4857 = vst [vmem:[%s4842 + $0x70] sm:$0xff] %v4824
    %4858 = vst [vmem:[%s4842 + $0x78] sm:$0xff] %v4825
    %4859 = vst [vmem:[%s4842 + $0x80] sm:$0xff] %v4826
    %4860 = vst [vmem:[%s4842 + $0x88] sm:$0xff] %v4827
    %4861 = vst [vmem:[%s4842 + $0x90] sm:$0xff] %v4828
    %4862 = vst [vmem:[%s4842 + $0x98] sm:$0xff] %v4829
    %4863 = vst [vmem:[%s4842 + $0xa0] sm:$0xff] %v4830
    %4864 = vst [vmem:[%s4842 + $0xa8] sm:$0xff] %v4831
    %4865 = vst [vmem:[%s4842 + $0xb0] sm:$0xff] %v4832
    %4866 = vst [vmem:[%s4842 + $0xb8] sm:$0xff] %v4833
    %4867 = vst [vmem:[%s4842 + $0xc0] sm:$0xff] %v4834
    %4868 = vst [vmem:[%s4842 + $0xc8] sm:$0xff] %v4835
    %4869 = vst [vmem:[%s4842 + $0xd0] sm:$0xff] %v4836
    %4870 = vst [vmem:[%s4842 + $0xd8] sm:$0xff] %v4837
    %4871 = vst [vmem:[%s4842 + $0xe0] sm:$0xff] %v4838
    %4872 = vst [vmem:[%s4842 + $0xe8] sm:$0xff] %v4839
    %4873 = vst [vmem:[%s4842 + $0xf0] sm:$0xff] %v4840
    %4874 = vst [vmem:[%s4842 + $0xf8] sm:$0xff] %v4841
    // Predicated region
    $region46: #{tpu_custom_call.1} parent=1 // pred_check
      _
    $region47: #{tpu_custom_call.1} parent=1 // pred_check_branch
      %4876 = sbr.rel (0) target = $region49
    $region48: #{tpu_custom_call.1} parent=1 // pred_region
      %s4878 = ssub.s32 8192, 8192
      %4879 = vsyncadd [#allocation4], %s4878
      %s4880 = sshll.u32 [#allocation11], 4
      %s4881 = int_to_ptr.vmem [resolvable:$true] %s4880
      %4886 = dma.vmem_to_hbm [thread:$0]  %s4881, 8192, %s6, [#allocation4], 128, 128, 8
    $region49: #{tpu_custom_call.1} parent=1 // pred_fallthru
      _
    // Predicated region
    $region50: #{tpu_custom_call.1} parent=1 // pred_check
      _
    $region51: #{tpu_custom_call.1} parent=1 // pred_check_branch
      %4888 = sbr.rel (0) target = $region53
    $region52: #{tpu_custom_call.1} parent=1 // pred_region
      %4889 = dma.done [#allocation4], 8192
    $region53: #{tpu_custom_call.1} parent=1 // pred_fallthru
      _
    %4890 = vsyncpa [#allocation3], 1
    %4891 = vsyncpa [#allocation6], 1
    %4892 = vsyncpa [#allocation9], 1
    %4893 = vsyncpa [#allocation4], 1

</llo_original>
